<compile_context>
chip_gen: v7x
topology: tpu7x:2x2x1
jax: 0.10.0
libtpu: 0.0.40
codegen_flags: <defaults>
</compile_context>

<pallas_src>
import math

import jax
import jax.numpy as jnp
from jax.experimental import pallas as pl
from jax.experimental.pallas import tpu as pltpu

# ---------------- model dims (small, consistent with the module) -------------
B = 2            # batch
S = 8            # seq_len
D = 32           # d_model
H = 4            # num_heads
HD = D // H      # head_dim
FFN = 64         # ffn_hidden
N = B * S        # folded rows
EPS = 1e-5
NEG = -1e9

WCOL = 3 * D     # padded column width of the packed slabs (96)

# packed-weight-slab row offsets (each block padded to WCOL columns)
R_WQKV = 0 * D        # (D, 3D)  qkv_layer weight (head-major Q|K|V)
R_WO_SELF = 1 * D     # (D, D)   self-attn output projection
R_WKV = 2 * D         # (D, 2D)  kv_layer weight (head-major K|V)
R_WQ = 3 * D          # (D, D)   q_layer weight
R_WO_CROSS = 4 * D    # (D, D)   cross-attn output projection
R_W1 = 5 * D          # (D, FFN) ffn linear1
R_W2 = 6 * D          # (FFN, D) ffn linear2
W_ROWS = 6 * D + FFN

# packed-vector-slab row indices (biases / gamma / beta, padded to WCOL)
(V_BQKV, V_BO_SELF, V_BKV, V_BQ, V_BO_CROSS, V_B1, V_B2,
 V_G1, V_BE1, V_G2, V_BE2, V_G3, V_BE3) = range(13)
V_ROWS = 13


# ------------------------------- Pallas kernel -------------------------------
def decoder_layer_kernel(y_ref, x_ref, smask_ref, cmask_ref, w_ref, v_ref, out_ref):
    inv_sqrt_dk = 1.0 / math.sqrt(HD)

    y0 = y_ref[...]          # (N, D)   decoder input (batch folded into rows)
    xe = x_ref[...]          # (N, D)   encoder output
    smask = smask_ref[...]   # (N, N)   self-attn additive mask (+ batch-block mask)
    cmask = cmask_ref[...]   # (N, N)   cross-attn additive mask (+ batch-block mask)
    vecs = v_ref[...]        # (V_ROWS, WCOL) packed biases / gamma / beta

    def vrow(idx, n):
        return vecs[idx:idx + 1, 0:n]            # (1, n) broadcastable row

    def layer_norm(t, g_idx, b_idx):
        m = jnp.mean(t, axis=-1, keepdims=True)
        var = jnp.mean((t - m) ** 2, axis=-1, keepdims=True)
        return vrow(g_idx, D) * ((t - m) * jax.lax.rsqrt(var + EPS)) + vrow(b_idx, D)

    def multi_head_attention(q_all, k_all, v_all, add_mask, wo):
        # q_all/k_all/v_all: (N, D) with head-major column blocks
        # add_mask: (N, N) additive; wo: (D, D) output projection weight
        out = None
        for h in range(H):
            c0 = h * HD
            q = q_all[:, c0:c0 + HD]             # (N, HD)
            k = k_all[:, c0:c0 + HD]
            v = v_all[:, c0:c0 + HD]
            # scores = Q K^T / sqrt(dk) + mask   (contraction on last dims)
            s = jax.lax.dot_general(
                q, k, (((1,), (1,)), ((), ())),
                preferred_element_type=jnp.float32) * inv_sqrt_dk + add_mask
            s = s - jnp.max(s, axis=-1, keepdims=True)
            p = jnp.exp(s)
            # TODO(synk): pl.reciprocal(approx=True) would use the free EUP slot but
            # its ~2^-12 relative error brushes the 1e-4 tolerance; keep exact divide.
            p = p / jnp.sum(p, axis=-1, keepdims=True)
            ctx = jnp.dot(p, v, preferred_element_type=jnp.float32)          # (N, HD)
            contrib = jnp.dot(ctx, wo[c0:c0 + HD, :],
                              preferred_element_type=jnp.float32)            # (N, D)
            out = contrib if out is None else out + contrib
        return out

    # ---- 1) masked self-attention on y ----
    wqkv = w_ref[R_WQKV:R_WQKV + D, 0:3 * D]               # (D, 3D), head-major Q|K|V
    qkv = jnp.dot(y0, wqkv, preferred_element_type=jnp.float32) + vrow(V_BQKV, 3 * D)
    wo_s = w_ref[R_WO_SELF:R_WO_SELF + D, 0:D]
    sa = multi_head_attention(qkv[:, 0:D], qkv[:, D:2 * D], qkv[:, 2 * D:3 * D],
                              smask, wo_s) + vrow(V_BO_SELF, D)
    y1 = layer_norm(sa + y0, V_G1, V_BE1)                  # dropout1 = identity

    # ---- 2) cross-attention: K,V from encoder output x, Q from y1 ----
    wkv = w_ref[R_WKV:R_WKV + D, 0:2 * D]                  # (D, 2D), head-major K|V
    kv = jnp.dot(xe, wkv, preferred_element_type=jnp.float32) + vrow(V_BKV, 2 * D)
    wq = w_ref[R_WQ:R_WQ + D, 0:D]
    q = jnp.dot(y1, wq, preferred_element_type=jnp.float32) + vrow(V_BQ, D)
    wo_c = w_ref[R_WO_CROSS:R_WO_CROSS + D, 0:D]
    ca = multi_head_attention(q, kv[:, 0:D], kv[:, D:2 * D],
                              cmask, wo_c) + vrow(V_BO_CROSS, D)
    y2 = layer_norm(ca + y1, V_G2, V_BE2)                  # dropout2 = identity

    # ---- 3) position-wise FFN: Linear -> ReLU -> Linear ----
    w1 = w_ref[R_W1:R_W1 + D, 0:FFN]
    w2 = w_ref[R_W2:R_W2 + FFN, 0:D]
    hmid = jnp.maximum(
        jnp.dot(y2, w1, preferred_element_type=jnp.float32) + vrow(V_B1, FFN), 0.0)
    ff = jnp.dot(hmid, w2, preferred_element_type=jnp.float32) + vrow(V_B2, D)
    out_ref[...] = layer_norm(ff + y2, V_G3, V_BE3)        # dropout3 = identity


# ------------------------ host-side packing helpers ---------------------------
def _head_major_perm(parts):
    """Column permutation turning the interleaved per-head (parts*HD) layout of the
    PyTorch projection into contiguous head-major [part0 | part1 | ...] blocks."""
    idx = []
    for part in range(parts):
        for h in range(H):
            base = h * parts * HD + part * HD
            idx.extend(range(base, base + HD))
    return jnp.asarray(idx, dtype=jnp.int32)


def _pack_params(params):
    perm3 = _head_major_perm(3)
    perm2 = _head_major_perm(2)
    wqkv = params["wqkv"][:, perm3]
    bqkv = params["bqkv"][perm3]
    wkv = params["wkv"][:, perm2]
    bkv = params["bkv"][perm2]

    def wpad(w):
        return jnp.pad(w, ((0, 0), (0, WCOL - w.shape[1])))

    w_slab = jnp.concatenate([
        wpad(wqkv), wpad(params["wo_self"]), wpad(wkv), wpad(params["wq"]),
        wpad(params["wo_cross"]), wpad(params["w1"]), wpad(params["w2"]),
    ], axis=0).astype(jnp.float32)                           # (W_ROWS, WCOL)

    def vrow(v):
        v = v.reshape(1, -1)
        return jnp.pad(v, ((0, 0), (0, WCOL - v.shape[1])))

    v_slab = jnp.concatenate([
        vrow(bqkv), vrow(params["bo_self"]), vrow(bkv), vrow(params["bq"]),
        vrow(params["bo_cross"]), vrow(params["b1"]), vrow(params["b2"]),
        vrow(params["gamma1"]), vrow(params["beta1"]),
        vrow(params["gamma2"]), vrow(params["beta2"]),
        vrow(params["gamma3"]), vrow(params["beta3"]),
    ], axis=0).astype(jnp.float32)                           # (V_ROWS, WCOL)
    return w_slab, v_slab


def _fold_batch_mask(mask_ss, batch):
    """Expand a shared (S, S) additive mask to (B*S, B*S): original mask inside each
    batch's diagonal block, -1e9 elsewhere so folded-batch attention never mixes
    batch elements (those terms exp() to exactly 0)."""
    s = mask_ss.shape[-1]
    same_batch = jnp.kron(jnp.eye(batch, dtype=jnp.float32),
                          jnp.ones((s, s), jnp.float32))
    return jnp.where(same_batch > 0,
                     jnp.tile(mask_ss.astype(jnp.float32), (batch, batch)), NEG)


# ------------------------------- wrapper --------------------------------------
def decoder_layer(x, y, self_attention_mask, cross_attention_mask, params):
    """x, y: (B, S, D); masks: (S, S) additive (shared across batch/heads)."""
    B_, S_, D_ = y.shape
    n = B_ * S_

    w_slab, v_slab = _pack_params(params)
    smask = _fold_batch_mask(self_attention_mask, B_)
    cmask = _fold_batch_mask(cross_attention_mask, B_)
    y2d = y.reshape(n, D_).astype(jnp.float32)
    x2d = x.reshape(n, D_).astype(jnp.float32)

    # rough, advisory cost numbers
    attn_flops = 2 * n * n * D_ + 2 * n * n * D_ + 2 * n * D_ * D_
    flops = (2 * n * D_ * (3 * D_) + 2 * n * D_ * (2 * D_) + 2 * n * D_ * D_
             + 2 * attn_flops + 4 * n * D_ * FFN)
    cost = pl.CostEstimate(
        flops=int(flops),
        transcendentals=int(2 * H * n * n + 3 * n),
        bytes_accessed=int(4 * (2 * n * D_ + 2 * n * n
                                + w_slab.size + v_slab.size + n * D_)),
    )

    vmem_spec = pl.BlockSpec(memory_space=pltpu.MemorySpace.VMEM)
    out2d = pl.pallas_call(
        decoder_layer_kernel,
        out_shape=jax.ShapeDtypeStruct((n, D_), jnp.float32),
        in_specs=[vmem_spec] * 6,
        out_specs=vmem_spec,
        cost_estimate=cost,
    )(y2d, x2d, smask, cmask, w_slab, v_slab)
    return out2d.reshape(B_, S_, D_)


# --------------------------- pure-JAX reference -------------------------------
def decoder_layer_ref(x, y, self_mask, cross_mask, p):
    B_, S_, D_ = y.shape

    def split_heads(t, parts):
        return t.reshape(B_, S_, H, parts * HD).transpose(0, 2, 1, 3)

    def merge_heads(t):
        return t.transpose(0, 2, 1, 3).reshape(B_, S_, D_)

    def sdpa(q, k, v, mask):
        s = jnp.einsum("bhqd,bhkd->bhqk", q, k) / math.sqrt(q.shape[-1])
        s = s + mask                       # (S, S) broadcasts over (B, H)
        a = jax.nn.softmax(s, axis=-1)
        return jnp.einsum("bhqk,bhkd->bhqd", a, v)

    def ln(t, g, bta):
        m = t.mean(-1, keepdims=True)
        var = ((t - m) ** 2).mean(-1, keepdims=True)
        return g * (t - m) / jnp.sqrt(var + EPS) + bta

    # self-attention
    qkv = split_heads(y @ p["wqkv"] + p["bqkv"], 3)
    q, k, v = qkv[..., :HD], qkv[..., HD:2 * HD], qkv[..., 2 * HD:]
    sa = merge_heads(sdpa(q, k, v, self_mask)) @ p["wo_self"] + p["bo_self"]
    y1 = ln(sa + y, p["gamma1"], p["beta1"])

    # cross-attention (kv from x, q from y1)
    kv = split_heads(x @ p["wkv"] + p["bkv"], 2)
    k, v = kv[..., :HD], kv[..., HD:]
    q = split_heads(y1 @ p["wq"] + p["bq"], 1)
    ca = merge_heads(sdpa(q, k, v, cross_mask)) @ p["wo_cross"] + p["bo_cross"]
    y2 = ln(ca + y1, p["gamma2"], p["beta2"])

    # FFN
    ff = jnp.maximum(y2 @ p["w1"] + p["b1"], 0.0) @ p["w2"] + p["b2"]
    return ln(ff + y2, p["gamma3"], p["beta3"])


# ----------------------------------- main --------------------------------------
if __name__ == "__main__":
    key = jax.random.PRNGKey(0)
    ks = jax.random.split(key, 20)
    sc = 0.1
    nrm = lambda k, shp: sc * jax.random.normal(k, shp, jnp.float32)

    params = {
        "wqkv": nrm(ks[0], (D, 3 * D)), "bqkv": nrm(ks[1], (3 * D,)),
        "wo_self": nrm(ks[2], (D, D)), "bo_self": nrm(ks[3], (D,)),
        "wkv": nrm(ks[4], (D, 2 * D)), "bkv": nrm(ks[5], (2 * D,)),
        "wq": nrm(ks[6], (D, D)), "bq": nrm(ks[7], (D,)),
        "wo_cross": nrm(ks[8], (D, D)), "bo_cross": nrm(ks[9], (D,)),
        "w1": nrm(ks[10], (D, FFN)), "b1": nrm(ks[11], (FFN,)),
        "w2": nrm(ks[12], (FFN, D)), "b2": nrm(ks[13], (D,)),
        "gamma1": jnp.ones((D,), jnp.float32), "beta1": jnp.zeros((D,), jnp.float32),
        "gamma2": jnp.ones((D,), jnp.float32), "beta2": jnp.zeros((D,), jnp.float32),
        "gamma3": jnp.ones((D,), jnp.float32), "beta3": jnp.zeros((D,), jnp.float32),
    }

    x = jax.random.normal(ks[14], (B, S, D), jnp.float32)   # encoder output
    y = jax.random.normal(ks[15], (B, S, D), jnp.float32)   # decoder input

    # additive masks shared across batch/heads: causal self-attn, no cross mask
    causal = jnp.tril(jnp.ones((S, S), jnp.float32))
    self_mask = jnp.where(causal > 0, 0.0, NEG).astype(jnp.float32)   # (S, S)
    cross_mask = jnp.zeros((S, S), jnp.float32)                       # (S, S)

    out = decoder_layer(x, y, self_mask, cross_mask, params)
    out = jax.block_until_ready(out)

    ref = decoder_layer_ref(x, y, self_mask, cross_mask, params)
    assert out.shape == (B, S, D)
    assert jnp.allclose(out, ref, atol=5e-4, rtol=5e-4), "mismatch vs JAX reference"

    print("KERNEL_OK")
</pallas_src>

<mosaic_0001>
module attributes {stable_mosaic.version = 11 : i64} {
  func.func @decoder_layer_kernel(%arg0: memref<16x32xf32, #tpu.memory_space<vmem>>, %arg1: memref<16x32xf32, #tpu.memory_space<vmem>>, %arg2: memref<16x16xf32, #tpu.memory_space<vmem>>, %arg3: memref<16x16xf32, #tpu.memory_space<vmem>>, %arg4: memref<256x96xf32, #tpu.memory_space<vmem>>, %arg5: memref<13x96xf32, #tpu.memory_space<vmem>>, %arg6: memref<16x32xf32, #tpu.memory_space<vmem>>) attributes {dimension_semantics = [], scalar_prefetch = 0 : i64, scratch_operands = 0 : i64, tpu.core_type = #tpu.core_type<tc>} {
    %c0 = arith.constant 0 : index
    %c0_0 = arith.constant 0 : index
    %0 = vector.load %arg0[%c0, %c0_0] : memref<16x32xf32, #tpu.memory_space<vmem>>, vector<16x32xf32>
    %c0_1 = arith.constant 0 : index
    %c0_2 = arith.constant 0 : index
    %1 = vector.load %arg1[%c0_1, %c0_2] : memref<16x32xf32, #tpu.memory_space<vmem>>, vector<16x32xf32>
    %c0_3 = arith.constant 0 : index
    %c0_4 = arith.constant 0 : index
    %2 = vector.load %arg2[%c0_3, %c0_4] : memref<16x16xf32, #tpu.memory_space<vmem>>, vector<16x16xf32>
    %c0_5 = arith.constant 0 : index
    %c0_6 = arith.constant 0 : index
    %3 = vector.load %arg3[%c0_5, %c0_6] : memref<16x16xf32, #tpu.memory_space<vmem>>, vector<16x16xf32>
    %c0_7 = arith.constant 0 : index
    %c0_8 = arith.constant 0 : index
    %4 = vector.load %arg5[%c0_7, %c0_8] : memref<13x96xf32, #tpu.memory_space<vmem>>, vector<13x96xf32>
    %c0_9 = arith.constant 0 : index
    %c0_10 = arith.constant 0 : index
    %5 = vector.load %arg4[%c0_9, %c0_10] : memref<256x96xf32, #tpu.memory_space<vmem>>, vector<32x96xf32>
    %cst = arith.constant dense<0.000000e+00> : vector<16x96xf32>
    %6 = tpu.matmul %0, %5, %cst {dimension_numbers = #tpu.dot_dimension_numbers<[1], [0], [0], [1], [0, 0, 1, 1], [], []>} : vector<16x32xf32>, vector<32x96xf32>, vector<16x96xf32> -> vector<16x96xf32>
    %7 = vector.extract_strided_slice %4 {offsets = [0, 0], sizes = [1, 96], strides = [1, 1]} : vector<13x96xf32> to vector<1x96xf32>
    %8 = vector.broadcast %7 : vector<1x96xf32> to vector<16x96xf32>
    %9 = arith.addf %6, %8 : vector<16x96xf32>
    %c32 = arith.constant 32 : index
    %c0_11 = arith.constant 0 : index
    %10 = vector.load %arg4[%c32, %c0_11] : memref<256x96xf32, #tpu.memory_space<vmem>>, vector<32x32xf32>
    %11 = vector.extract_strided_slice %9 {offsets = [0, 0], sizes = [16, 32], strides = [1, 1]} : vector<16x96xf32> to vector<16x32xf32>
    %12 = vector.extract_strided_slice %9 {offsets = [0, 32], sizes = [16, 32], strides = [1, 1]} : vector<16x96xf32> to vector<16x32xf32>
    %13 = vector.extract_strided_slice %9 {offsets = [0, 64], sizes = [16, 32], strides = [1, 1]} : vector<16x96xf32> to vector<16x32xf32>
    %14 = vector.extract_strided_slice %11 {offsets = [0, 0], sizes = [16, 8], strides = [1, 1]} : vector<16x32xf32> to vector<16x8xf32>
    %15 = vector.extract_strided_slice %12 {offsets = [0, 0], sizes = [16, 8], strides = [1, 1]} : vector<16x32xf32> to vector<16x8xf32>
    %16 = vector.extract_strided_slice %13 {offsets = [0, 0], sizes = [16, 8], strides = [1, 1]} : vector<16x32xf32> to vector<16x8xf32>
    %cst_12 = arith.constant dense<0.000000e+00> : vector<16x16xf32>
    %17 = tpu.matmul %14, %15, %cst_12 {dimension_numbers = #tpu.dot_dimension_numbers<[1], [1], [0], [0], [0, 0, 1, 0], [], []>} : vector<16x8xf32>, vector<16x8xf32>, vector<16x16xf32> -> vector<16x16xf32>
    %cst_13 = arith.constant 0.353553385 : f32
    %18 = vector.broadcast %cst_13 : f32 to vector<16x16xf32>
    %19 = arith.mulf %17, %18 : vector<16x16xf32>
    %20 = arith.addf %19, %2 : vector<16x16xf32>
    %cst_14 = arith.constant dense<0xFF800000> : vector<16xf32>
    %21 = vector.multi_reduction <maximumf>, %20, %cst_14 [1] : vector<16x16xf32> to vector<16xf32>
    %22 = vector.shape_cast %21 : vector<16xf32> to vector<16x1xf32>
    %23 = vector.broadcast %22 : vector<16x1xf32> to vector<16x16xf32>
    %24 = arith.subf %20, %23 : vector<16x16xf32>
    %25 = math.exp %24 : vector<16x16xf32>
    %cst_15 = arith.constant dense<0.000000e+00> : vector<16xf32>
    %26 = vector.multi_reduction <add>, %25, %cst_15 [1] : vector<16x16xf32> to vector<16xf32>
    %27 = vector.shape_cast %26 : vector<16xf32> to vector<16x1xf32>
    %28 = vector.broadcast %27 : vector<16x1xf32> to vector<16x16xf32>
    %29 = arith.divf %25, %28 : vector<16x16xf32>
    %cst_16 = arith.constant dense<0.000000e+00> : vector<16x8xf32>
    %30 = tpu.matmul %29, %16, %cst_16 {dimension_numbers = #tpu.dot_dimension_numbers<[1], [0], [0], [1], [0, 0, 1, 1], [], []>} : vector<16x16xf32>, vector<16x8xf32>, vector<16x8xf32> -> vector<16x8xf32>
    %31 = vector.extract_strided_slice %10 {offsets = [0, 0], sizes = [8, 32], strides = [1, 1]} : vector<32x32xf32> to vector<8x32xf32>
    %cst_17 = arith.constant dense<0.000000e+00> : vector<16x32xf32>
    %32 = tpu.matmul %30, %31, %cst_17 {dimension_numbers = #tpu.dot_dimension_numbers<[1], [0], [0], [1], [0, 0, 1, 1], [], []>} : vector<16x8xf32>, vector<8x32xf32>, vector<16x32xf32> -> vector<16x32xf32>
    %33 = vector.extract_strided_slice %11 {offsets = [0, 8], sizes = [16, 8], strides = [1, 1]} : vector<16x32xf32> to vector<16x8xf32>
    %34 = vector.extract_strided_slice %12 {offsets = [0, 8], sizes = [16, 8], strides = [1, 1]} : vector<16x32xf32> to vector<16x8xf32>
    %35 = vector.extract_strided_slice %13 {offsets = [0, 8], sizes = [16, 8], strides = [1, 1]} : vector<16x32xf32> to vector<16x8xf32>
    %cst_18 = arith.constant dense<0.000000e+00> : vector<16x16xf32>
    %36 = tpu.matmul %33, %34, %cst_18 {dimension_numbers = #tpu.dot_dimension_numbers<[1], [1], [0], [0], [0, 0, 1, 0], [], []>} : vector<16x8xf32>, vector<16x8xf32>, vector<16x16xf32> -> vector<16x16xf32>
    %cst_19 = arith.constant 0.353553385 : f32
    %37 = vector.broadcast %cst_19 : f32 to vector<16x16xf32>
    %38 = arith.mulf %36, %37 : vector<16x16xf32>
    %39 = arith.addf %38, %2 : vector<16x16xf32>
    %cst_20 = arith.constant dense<0xFF800000> : vector<16xf32>
    %40 = vector.multi_reduction <maximumf>, %39, %cst_20 [1] : vector<16x16xf32> to vector<16xf32>
    %41 = vector.shape_cast %40 : vector<16xf32> to vector<16x1xf32>
    %42 = vector.broadcast %41 : vector<16x1xf32> to vector<16x16xf32>
    %43 = arith.subf %39, %42 : vector<16x16xf32>
    %44 = math.exp %43 : vector<16x16xf32>
    %cst_21 = arith.constant dense<0.000000e+00> : vector<16xf32>
    %45 = vector.multi_reduction <add>, %44, %cst_21 [1] : vector<16x16xf32> to vector<16xf32>
    %46 = vector.shape_cast %45 : vector<16xf32> to vector<16x1xf32>
    %47 = vector.broadcast %46 : vector<16x1xf32> to vector<16x16xf32>
    %48 = arith.divf %44, %47 : vector<16x16xf32>
    %cst_22 = arith.constant dense<0.000000e+00> : vector<16x8xf32>
    %49 = tpu.matmul %48, %35, %cst_22 {dimension_numbers = #tpu.dot_dimension_numbers<[1], [0], [0], [1], [0, 0, 1, 1], [], []>} : vector<16x16xf32>, vector<16x8xf32>, vector<16x8xf32> -> vector<16x8xf32>
    %50 = vector.extract_strided_slice %10 {offsets = [8, 0], sizes = [8, 32], strides = [1, 1]} : vector<32x32xf32> to vector<8x32xf32>
    %cst_23 = arith.constant dense<0.000000e+00> : vector<16x32xf32>
    %51 = tpu.matmul %49, %50, %cst_23 {dimension_numbers = #tpu.dot_dimension_numbers<[1], [0], [0], [1], [0, 0, 1, 1], [], []>} : vector<16x8xf32>, vector<8x32xf32>, vector<16x32xf32> -> vector<16x32xf32>
    %52 = arith.addf %32, %51 : vector<16x32xf32>
    %53 = vector.extract_strided_slice %11 {offsets = [0, 16], sizes = [16, 8], strides = [1, 1]} : vector<16x32xf32> to vector<16x8xf32>
    %54 = vector.extract_strided_slice %12 {offsets = [0, 16], sizes = [16, 8], strides = [1, 1]} : vector<16x32xf32> to vector<16x8xf32>
    %55 = vector.extract_strided_slice %13 {offsets = [0, 16], sizes = [16, 8], strides = [1, 1]} : vector<16x32xf32> to vector<16x8xf32>
    %cst_24 = arith.constant dense<0.000000e+00> : vector<16x16xf32>
    %56 = tpu.matmul %53, %54, %cst_24 {dimension_numbers = #tpu.dot_dimension_numbers<[1], [1], [0], [0], [0, 0, 1, 0], [], []>} : vector<16x8xf32>, vector<16x8xf32>, vector<16x16xf32> -> vector<16x16xf32>
    %cst_25 = arith.constant 0.353553385 : f32
    %57 = vector.broadcast %cst_25 : f32 to vector<16x16xf32>
    %58 = arith.mulf %56, %57 : vector<16x16xf32>
    %59 = arith.addf %58, %2 : vector<16x16xf32>
    %cst_26 = arith.constant dense<0xFF800000> : vector<16xf32>
    %60 = vector.multi_reduction <maximumf>, %59, %cst_26 [1] : vector<16x16xf32> to vector<16xf32>
    %61 = vector.shape_cast %60 : vector<16xf32> to vector<16x1xf32>
    %62 = vector.broadcast %61 : vector<16x1xf32> to vector<16x16xf32>
    %63 = arith.subf %59, %62 : vector<16x16xf32>
    %64 = math.exp %63 : vector<16x16xf32>
    %cst_27 = arith.constant dense<0.000000e+00> : vector<16xf32>
    %65 = vector.multi_reduction <add>, %64, %cst_27 [1] : vector<16x16xf32> to vector<16xf32>
    %66 = vector.shape_cast %65 : vector<16xf32> to vector<16x1xf32>
    %67 = vector.broadcast %66 : vector<16x1xf32> to vector<16x16xf32>
    %68 = arith.divf %64, %67 : vector<16x16xf32>
    %cst_28 = arith.constant dense<0.000000e+00> : vector<16x8xf32>
    %69 = tpu.matmul %68, %55, %cst_28 {dimension_numbers = #tpu.dot_dimension_numbers<[1], [0], [0], [1], [0, 0, 1, 1], [], []>} : vector<16x16xf32>, vector<16x8xf32>, vector<16x8xf32> -> vector<16x8xf32>
    %70 = vector.extract_strided_slice %10 {offsets = [16, 0], sizes = [8, 32], strides = [1, 1]} : vector<32x32xf32> to vector<8x32xf32>
    %cst_29 = arith.constant dense<0.000000e+00> : vector<16x32xf32>
    %71 = tpu.matmul %69, %70, %cst_29 {dimension_numbers = #tpu.dot_dimension_numbers<[1], [0], [0], [1], [0, 0, 1, 1], [], []>} : vector<16x8xf32>, vector<8x32xf32>, vector<16x32xf32> -> vector<16x32xf32>
    %72 = arith.addf %52, %71 : vector<16x32xf32>
    %73 = vector.extract_strided_slice %11 {offsets = [0, 24], sizes = [16, 8], strides = [1, 1]} : vector<16x32xf32> to vector<16x8xf32>
    %74 = vector.extract_strided_slice %12 {offsets = [0, 24], sizes = [16, 8], strides = [1, 1]} : vector<16x32xf32> to vector<16x8xf32>
    %75 = vector.extract_strided_slice %13 {offsets = [0, 24], sizes = [16, 8], strides = [1, 1]} : vector<16x32xf32> to vector<16x8xf32>
    %cst_30 = arith.constant dense<0.000000e+00> : vector<16x16xf32>
    %76 = tpu.matmul %73, %74, %cst_30 {dimension_numbers = #tpu.dot_dimension_numbers<[1], [1], [0], [0], [0, 0, 1, 0], [], []>} : vector<16x8xf32>, vector<16x8xf32>, vector<16x16xf32> -> vector<16x16xf32>
    %cst_31 = arith.constant 0.353553385 : f32
    %77 = vector.broadcast %cst_31 : f32 to vector<16x16xf32>
    %78 = arith.mulf %76, %77 : vector<16x16xf32>
    %79 = arith.addf %78, %2 : vector<16x16xf32>
    %cst_32 = arith.constant dense<0xFF800000> : vector<16xf32>
    %80 = vector.multi_reduction <maximumf>, %79, %cst_32 [1] : vector<16x16xf32> to vector<16xf32>
    %81 = vector.shape_cast %80 : vector<16xf32> to vector<16x1xf32>
    %82 = vector.broadcast %81 : vector<16x1xf32> to vector<16x16xf32>
    %83 = arith.subf %79, %82 : vector<16x16xf32>
    %84 = math.exp %83 : vector<16x16xf32>
    %cst_33 = arith.constant dense<0.000000e+00> : vector<16xf32>
    %85 = vector.multi_reduction <add>, %84, %cst_33 [1] : vector<16x16xf32> to vector<16xf32>
    %86 = vector.shape_cast %85 : vector<16xf32> to vector<16x1xf32>
    %87 = vector.broadcast %86 : vector<16x1xf32> to vector<16x16xf32>
    %88 = arith.divf %84, %87 : vector<16x16xf32>
    %cst_34 = arith.constant dense<0.000000e+00> : vector<16x8xf32>
    %89 = tpu.matmul %88, %75, %cst_34 {dimension_numbers = #tpu.dot_dimension_numbers<[1], [0], [0], [1], [0, 0, 1, 1], [], []>} : vector<16x16xf32>, vector<16x8xf32>, vector<16x8xf32> -> vector<16x8xf32>
    %90 = vector.extract_strided_slice %10 {offsets = [24, 0], sizes = [8, 32], strides = [1, 1]} : vector<32x32xf32> to vector<8x32xf32>
    %cst_35 = arith.constant dense<0.000000e+00> : vector<16x32xf32>
    %91 = tpu.matmul %89, %90, %cst_35 {dimension_numbers = #tpu.dot_dimension_numbers<[1], [0], [0], [1], [0, 0, 1, 1], [], []>} : vector<16x8xf32>, vector<8x32xf32>, vector<16x32xf32> -> vector<16x32xf32>
    %92 = arith.addf %72, %91 : vector<16x32xf32>
    %93 = vector.extract_strided_slice %4 {offsets = [1, 0], sizes = [1, 32], strides = [1, 1]} : vector<13x96xf32> to vector<1x32xf32>
    %94 = vector.broadcast %93 : vector<1x32xf32> to vector<16x32xf32>
    %95 = arith.addf %92, %94 : vector<16x32xf32>
    %96 = arith.addf %95, %0 : vector<16x32xf32>
    %cst_36 = arith.constant dense<0.000000e+00> : vector<16xf32>
    %97 = vector.multi_reduction <add>, %96, %cst_36 [1] : vector<16x32xf32> to vector<16xf32>
    %98 = vector.shape_cast %97 : vector<16xf32> to vector<16x1xf32>
    %cst_37 = arith.constant 3.200000e+01 : f32
    %99 = vector.broadcast %cst_37 : f32 to vector<16x1xf32>
    %100 = arith.divf %98, %99 : vector<16x1xf32>
    %101 = vector.broadcast %100 : vector<16x1xf32> to vector<16x32xf32>
    %102 = arith.subf %96, %101 : vector<16x32xf32>
    %103 = arith.mulf %102, %102 : vector<16x32xf32>
    %cst_38 = arith.constant dense<0.000000e+00> : vector<16xf32>
    %104 = vector.multi_reduction <add>, %103, %cst_38 [1] : vector<16x32xf32> to vector<16xf32>
    %105 = vector.shape_cast %104 : vector<16xf32> to vector<16x1xf32>
    %cst_39 = arith.constant 3.200000e+01 : f32
    %106 = vector.broadcast %cst_39 : f32 to vector<16x1xf32>
    %107 = arith.divf %105, %106 : vector<16x1xf32>
    %108 = vector.extract_strided_slice %4 {offsets = [7, 0], sizes = [1, 32], strides = [1, 1]} : vector<13x96xf32> to vector<1x32xf32>
    %109 = vector.broadcast %100 : vector<16x1xf32> to vector<16x32xf32>
    %110 = arith.subf %96, %109 : vector<16x32xf32>
    %cst_40 = arith.constant 9.99999974E-6 : f32
    %111 = vector.broadcast %cst_40 : f32 to vector<16x1xf32>
    %112 = arith.addf %107, %111 : vector<16x1xf32>
    %113 = math.rsqrt %112 : vector<16x1xf32>
    %114 = vector.broadcast %113 : vector<16x1xf32> to vector<16x32xf32>
    %115 = arith.mulf %110, %114 : vector<16x32xf32>
    %116 = vector.broadcast %108 : vector<1x32xf32> to vector<16x32xf32>
    %117 = arith.mulf %116, %115 : vector<16x32xf32>
    %118 = vector.extract_strided_slice %4 {offsets = [8, 0], sizes = [1, 32], strides = [1, 1]} : vector<13x96xf32> to vector<1x32xf32>
    %119 = vector.broadcast %118 : vector<1x32xf32> to vector<16x32xf32>
    %120 = arith.addf %117, %119 : vector<16x32xf32>
    %c64 = arith.constant 64 : index
    %c0_41 = arith.constant 0 : index
    %121 = vector.load %arg4[%c64, %c0_41] : memref<256x96xf32, #tpu.memory_space<vmem>>, vector<32x64xf32>
    %cst_42 = arith.constant dense<0.000000e+00> : vector<16x64xf32>
    %122 = tpu.matmul %1, %121, %cst_42 {dimension_numbers = #tpu.dot_dimension_numbers<[1], [0], [0], [1], [0, 0, 1, 1], [], []>} : vector<16x32xf32>, vector<32x64xf32>, vector<16x64xf32> -> vector<16x64xf32>
    %123 = vector.extract_strided_slice %4 {offsets = [2, 0], sizes = [1, 64], strides = [1, 1]} : vector<13x96xf32> to vector<1x64xf32>
    %124 = vector.broadcast %123 : vector<1x64xf32> to vector<16x64xf32>
    %125 = arith.addf %122, %124 : vector<16x64xf32>
    %c96 = arith.constant 96 : index
    %c0_43 = arith.constant 0 : index
    %126 = vector.load %arg4[%c96, %c0_43] : memref<256x96xf32, #tpu.memory_space<vmem>>, vector<32x32xf32>
    %cst_44 = arith.constant dense<0.000000e+00> : vector<16x32xf32>
    %127 = tpu.matmul %120, %126, %cst_44 {dimension_numbers = #tpu.dot_dimension_numbers<[1], [0], [0], [1], [0, 0, 1, 1], [], []>} : vector<16x32xf32>, vector<32x32xf32>, vector<16x32xf32> -> vector<16x32xf32>
    %128 = vector.extract_strided_slice %4 {offsets = [3, 0], sizes = [1, 32], strides = [1, 1]} : vector<13x96xf32> to vector<1x32xf32>
    %129 = vector.broadcast %128 : vector<1x32xf32> to vector<16x32xf32>
    %130 = arith.addf %127, %129 : vector<16x32xf32>
    %c128 = arith.constant 128 : index
    %c0_45 = arith.constant 0 : index
    %131 = vector.load %arg4[%c128, %c0_45] : memref<256x96xf32, #tpu.memory_space<vmem>>, vector<32x32xf32>
    %132 = vector.extract_strided_slice %125 {offsets = [0, 0], sizes = [16, 32], strides = [1, 1]} : vector<16x64xf32> to vector<16x32xf32>
    %133 = vector.extract_strided_slice %125 {offsets = [0, 32], sizes = [16, 32], strides = [1, 1]} : vector<16x64xf32> to vector<16x32xf32>
    %134 = vector.extract_strided_slice %130 {offsets = [0, 0], sizes = [16, 8], strides = [1, 1]} : vector<16x32xf32> to vector<16x8xf32>
    %135 = vector.extract_strided_slice %132 {offsets = [0, 0], sizes = [16, 8], strides = [1, 1]} : vector<16x32xf32> to vector<16x8xf32>
    %136 = vector.extract_strided_slice %133 {offsets = [0, 0], sizes = [16, 8], strides = [1, 1]} : vector<16x32xf32> to vector<16x8xf32>
    %cst_46 = arith.constant dense<0.000000e+00> : vector<16x16xf32>
    %137 = tpu.matmul %134, %135, %cst_46 {dimension_numbers = #tpu.dot_dimension_numbers<[1], [1], [0], [0], [0, 0, 1, 0], [], []>} : vector<16x8xf32>, vector<16x8xf32>, vector<16x16xf32> -> vector<16x16xf32>
    %cst_47 = arith.constant 0.353553385 : f32
    %138 = vector.broadcast %cst_47 : f32 to vector<16x16xf32>
    %139 = arith.mulf %137, %138 : vector<16x16xf32>
    %140 = arith.addf %139, %3 : vector<16x16xf32>
    %cst_48 = arith.constant dense<0xFF800000> : vector<16xf32>
    %141 = vector.multi_reduction <maximumf>, %140, %cst_48 [1] : vector<16x16xf32> to vector<16xf32>
    %142 = vector.shape_cast %141 : vector<16xf32> to vector<16x1xf32>
    %143 = vector.broadcast %142 : vector<16x1xf32> to vector<16x16xf32>
    %144 = arith.subf %140, %143 : vector<16x16xf32>
    %145 = math.exp %144 : vector<16x16xf32>
    %cst_49 = arith.constant dense<0.000000e+00> : vector<16xf32>
    %146 = vector.multi_reduction <add>, %145, %cst_49 [1] : vector<16x16xf32> to vector<16xf32>
    %147 = vector.shape_cast %146 : vector<16xf32> to vector<16x1xf32>
    %148 = vector.broadcast %147 : vector<16x1xf32> to vector<16x16xf32>
    %149 = arith.divf %145, %148 : vector<16x16xf32>
    %cst_50 = arith.constant dense<0.000000e+00> : vector<16x8xf32>
    %150 = tpu.matmul %149, %136, %cst_50 {dimension_numbers = #tpu.dot_dimension_numbers<[1], [0], [0], [1], [0, 0, 1, 1], [], []>} : vector<16x16xf32>, vector<16x8xf32>, vector<16x8xf32> -> vector<16x8xf32>
    %151 = vector.extract_strided_slice %131 {offsets = [0, 0], sizes = [8, 32], strides = [1, 1]} : vector<32x32xf32> to vector<8x32xf32>
    %cst_51 = arith.constant dense<0.000000e+00> : vector<16x32xf32>
    %152 = tpu.matmul %150, %151, %cst_51 {dimension_numbers = #tpu.dot_dimension_numbers<[1], [0], [0], [1], [0, 0, 1, 1], [], []>} : vector<16x8xf32>, vector<8x32xf32>, vector<16x32xf32> -> vector<16x32xf32>
    %153 = vector.extract_strided_slice %130 {offsets = [0, 8], sizes = [16, 8], strides = [1, 1]} : vector<16x32xf32> to vector<16x8xf32>
    %154 = vector.extract_strided_slice %132 {offsets = [0, 8], sizes = [16, 8], strides = [1, 1]} : vector<16x32xf32> to vector<16x8xf32>
    %155 = vector.extract_strided_slice %133 {offsets = [0, 8], sizes = [16, 8], strides = [1, 1]} : vector<16x32xf32> to vector<16x8xf32>
    %cst_52 = arith.constant dense<0.000000e+00> : vector<16x16xf32>
    %156 = tpu.matmul %153, %154, %cst_52 {dimension_numbers = #tpu.dot_dimension_numbers<[1], [1], [0], [0], [0, 0, 1, 0], [], []>} : vector<16x8xf32>, vector<16x8xf32>, vector<16x16xf32> -> vector<16x16xf32>
    %cst_53 = arith.constant 0.353553385 : f32
    %157 = vector.broadcast %cst_53 : f32 to vector<16x16xf32>
    %158 = arith.mulf %156, %157 : vector<16x16xf32>
    %159 = arith.addf %158, %3 : vector<16x16xf32>
    %cst_54 = arith.constant dense<0xFF800000> : vector<16xf32>
    %160 = vector.multi_reduction <maximumf>, %159, %cst_54 [1] : vector<16x16xf32> to vector<16xf32>
    %161 = vector.shape_cast %160 : vector<16xf32> to vector<16x1xf32>
    %162 = vector.broadcast %161 : vector<16x1xf32> to vector<16x16xf32>
    %163 = arith.subf %159, %162 : vector<16x16xf32>
    %164 = math.exp %163 : vector<16x16xf32>
    %cst_55 = arith.constant dense<0.000000e+00> : vector<16xf32>
    %165 = vector.multi_reduction <add>, %164, %cst_55 [1] : vector<16x16xf32> to vector<16xf32>
    %166 = vector.shape_cast %165 : vector<16xf32> to vector<16x1xf32>
    %167 = vector.broadcast %166 : vector<16x1xf32> to vector<16x16xf32>
    %168 = arith.divf %164, %167 : vector<16x16xf32>
    %cst_56 = arith.constant dense<0.000000e+00> : vector<16x8xf32>
    %169 = tpu.matmul %168, %155, %cst_56 {dimension_numbers = #tpu.dot_dimension_numbers<[1], [0], [0], [1], [0, 0, 1, 1], [], []>} : vector<16x16xf32>, vector<16x8xf32>, vector<16x8xf32> -> vector<16x8xf32>
    %170 = vector.extract_strided_slice %131 {offsets = [8, 0], sizes = [8, 32], strides = [1, 1]} : vector<32x32xf32> to vector<8x32xf32>
    %cst_57 = arith.constant dense<0.000000e+00> : vector<16x32xf32>
    %171 = tpu.matmul %169, %170, %cst_57 {dimension_numbers = #tpu.dot_dimension_numbers<[1], [0], [0], [1], [0, 0, 1, 1], [], []>} : vector<16x8xf32>, vector<8x32xf32>, vector<16x32xf32> -> vector<16x32xf32>
    %172 = arith.addf %152, %171 : vector<16x32xf32>
    %173 = vector.extract_strided_slice %130 {offsets = [0, 16], sizes = [16, 8], strides = [1, 1]} : vector<16x32xf32> to vector<16x8xf32>
    %174 = vector.extract_strided_slice %132 {offsets = [0, 16], sizes = [16, 8], strides = [1, 1]} : vector<16x32xf32> to vector<16x8xf32>
    %175 = vector.extract_strided_slice %133 {offsets = [0, 16], sizes = [16, 8], strides = [1, 1]} : vector<16x32xf32> to vector<16x8xf32>
    %cst_58 = arith.constant dense<0.000000e+00> : vector<16x16xf32>
    %176 = tpu.matmul %173, %174, %cst_58 {dimension_numbers = #tpu.dot_dimension_numbers<[1], [1], [0], [0], [0, 0, 1, 0], [], []>} : vector<16x8xf32>, vector<16x8xf32>, vector<16x16xf32> -> vector<16x16xf32>
    %cst_59 = arith.constant 0.353553385 : f32
    %177 = vector.broadcast %cst_59 : f32 to vector<16x16xf32>
    %178 = arith.mulf %176, %177 : vector<16x16xf32>
    %179 = arith.addf %178, %3 : vector<16x16xf32>
    %cst_60 = arith.constant dense<0xFF800000> : vector<16xf32>
    %180 = vector.multi_reduction <maximumf>, %179, %cst_60 [1] : vector<16x16xf32> to vector<16xf32>
    %181 = vector.shape_cast %180 : vector<16xf32> to vector<16x1xf32>
    %182 = vector.broadcast %181 : vector<16x1xf32> to vector<16x16xf32>
    %183 = arith.subf %179, %182 : vector<16x16xf32>
    %184 = math.exp %183 : vector<16x16xf32>
    %cst_61 = arith.constant dense<0.000000e+00> : vector<16xf32>
    %185 = vector.multi_reduction <add>, %184, %cst_61 [1] : vector<16x16xf32> to vector<16xf32>
    %186 = vector.shape_cast %185 : vector<16xf32> to vector<16x1xf32>
    %187 = vector.broadcast %186 : vector<16x1xf32> to vector<16x16xf32>
    %188 = arith.divf %184, %187 : vector<16x16xf32>
    %cst_62 = arith.constant dense<0.000000e+00> : vector<16x8xf32>
    %189 = tpu.matmul %188, %175, %cst_62 {dimension_numbers = #tpu.dot_dimension_numbers<[1], [0], [0], [1], [0, 0, 1, 1], [], []>} : vector<16x16xf32>, vector<16x8xf32>, vector<16x8xf32> -> vector<16x8xf32>
    %190 = vector.extract_strided_slice %131 {offsets = [16, 0], sizes = [8, 32], strides = [1, 1]} : vector<32x32xf32> to vector<8x32xf32>
    %cst_63 = arith.constant dense<0.000000e+00> : vector<16x32xf32>
    %191 = tpu.matmul %189, %190, %cst_63 {dimension_numbers = #tpu.dot_dimension_numbers<[1], [0], [0], [1], [0, 0, 1, 1], [], []>} : vector<16x8xf32>, vector<8x32xf32>, vector<16x32xf32> -> vector<16x32xf32>
    %192 = arith.addf %172, %191 : vector<16x32xf32>
    %193 = vector.extract_strided_slice %130 {offsets = [0, 24], sizes = [16, 8], strides = [1, 1]} : vector<16x32xf32> to vector<16x8xf32>
    %194 = vector.extract_strided_slice %132 {offsets = [0, 24], sizes = [16, 8], strides = [1, 1]} : vector<16x32xf32> to vector<16x8xf32>
    %195 = vector.extract_strided_slice %133 {offsets = [0, 24], sizes = [16, 8], strides = [1, 1]} : vector<16x32xf32> to vector<16x8xf32>
    %cst_64 = arith.constant dense<0.000000e+00> : vector<16x16xf32>
    %196 = tpu.matmul %193, %194, %cst_64 {dimension_numbers = #tpu.dot_dimension_numbers<[1], [1], [0], [0], [0, 0, 1, 0], [], []>} : vector<16x8xf32>, vector<16x8xf32>, vector<16x16xf32> -> vector<16x16xf32>
    %cst_65 = arith.constant 0.353553385 : f32
    %197 = vector.broadcast %cst_65 : f32 to vector<16x16xf32>
    %198 = arith.mulf %196, %197 : vector<16x16xf32>
    %199 = arith.addf %198, %3 : vector<16x16xf32>
    %cst_66 = arith.constant dense<0xFF800000> : vector<16xf32>
    %200 = vector.multi_reduction <maximumf>, %199, %cst_66 [1] : vector<16x16xf32> to vector<16xf32>
    %201 = vector.shape_cast %200 : vector<16xf32> to vector<16x1xf32>
    %202 = vector.broadcast %201 : vector<16x1xf32> to vector<16x16xf32>
    %203 = arith.subf %199, %202 : vector<16x16xf32>
    %204 = math.exp %203 : vector<16x16xf32>
    %cst_67 = arith.constant dense<0.000000e+00> : vector<16xf32>
    %205 = vector.multi_reduction <add>, %204, %cst_67 [1] : vector<16x16xf32> to vector<16xf32>
    %206 = vector.shape_cast %205 : vector<16xf32> to vector<16x1xf32>
    %207 = vector.broadcast %206 : vector<16x1xf32> to vector<16x16xf32>
    %208 = arith.divf %204, %207 : vector<16x16xf32>
    %cst_68 = arith.constant dense<0.000000e+00> : vector<16x8xf32>
    %209 = tpu.matmul %208, %195, %cst_68 {dimension_numbers = #tpu.dot_dimension_numbers<[1], [0], [0], [1], [0, 0, 1, 1], [], []>} : vector<16x16xf32>, vector<16x8xf32>, vector<16x8xf32> -> vector<16x8xf32>
    %210 = vector.extract_strided_slice %131 {offsets = [24, 0], sizes = [8, 32], strides = [1, 1]} : vector<32x32xf32> to vector<8x32xf32>
    %cst_69 = arith.constant dense<0.000000e+00> : vector<16x32xf32>
    %211 = tpu.matmul %209, %210, %cst_69 {dimension_numbers = #tpu.dot_dimension_numbers<[1], [0], [0], [1], [0, 0, 1, 1], [], []>} : vector<16x8xf32>, vector<8x32xf32>, vector<16x32xf32> -> vector<16x32xf32>
    %212 = arith.addf %192, %211 : vector<16x32xf32>
    %213 = vector.extract_strided_slice %4 {offsets = [4, 0], sizes = [1, 32], strides = [1, 1]} : vector<13x96xf32> to vector<1x32xf32>
    %214 = vector.broadcast %213 : vector<1x32xf32> to vector<16x32xf32>
    %215 = arith.addf %212, %214 : vector<16x32xf32>
    %216 = arith.addf %215, %120 : vector<16x32xf32>
    %cst_70 = arith.constant dense<0.000000e+00> : vector<16xf32>
    %217 = vector.multi_reduction <add>, %216, %cst_70 [1] : vector<16x32xf32> to vector<16xf32>
    %218 = vector.shape_cast %217 : vector<16xf32> to vector<16x1xf32>
    %cst_71 = arith.constant 3.200000e+01 : f32
    %219 = vector.broadcast %cst_71 : f32 to vector<16x1xf32>
    %220 = arith.divf %218, %219 : vector<16x1xf32>
    %221 = vector.broadcast %220 : vector<16x1xf32> to vector<16x32xf32>
    %222 = arith.subf %216, %221 : vector<16x32xf32>
    %223 = arith.mulf %222, %222 : vector<16x32xf32>
    %cst_72 = arith.constant dense<0.000000e+00> : vector<16xf32>
    %224 = vector.multi_reduction <add>, %223, %cst_72 [1] : vector<16x32xf32> to vector<16xf32>
    %225 = vector.shape_cast %224 : vector<16xf32> to vector<16x1xf32>
    %cst_73 = arith.constant 3.200000e+01 : f32
    %226 = vector.broadcast %cst_73 : f32 to vector<16x1xf32>
    %227 = arith.divf %225, %226 : vector<16x1xf32>
    %228 = vector.extract_strided_slice %4 {offsets = [9, 0], sizes = [1, 32], strides = [1, 1]} : vector<13x96xf32> to vector<1x32xf32>
    %229 = vector.broadcast %220 : vector<16x1xf32> to vector<16x32xf32>
    %230 = arith.subf %216, %229 : vector<16x32xf32>
    %cst_74 = arith.constant 9.99999974E-6 : f32
    %231 = vector.broadcast %cst_74 : f32 to vector<16x1xf32>
    %232 = arith.addf %227, %231 : vector<16x1xf32>
    %233 = math.rsqrt %232 : vector<16x1xf32>
    %234 = vector.broadcast %233 : vector<16x1xf32> to vector<16x32xf32>
    %235 = arith.mulf %230, %234 : vector<16x32xf32>
    %236 = vector.broadcast %228 : vector<1x32xf32> to vector<16x32xf32>
    %237 = arith.mulf %236, %235 : vector<16x32xf32>
    %238 = vector.extract_strided_slice %4 {offsets = [10, 0], sizes = [1, 32], strides = [1, 1]} : vector<13x96xf32> to vector<1x32xf32>
    %239 = vector.broadcast %238 : vector<1x32xf32> to vector<16x32xf32>
    %240 = arith.addf %237, %239 : vector<16x32xf32>
    %c160 = arith.constant 160 : index
    %c0_75 = arith.constant 0 : index
    %241 = vector.load %arg4[%c160, %c0_75] : memref<256x96xf32, #tpu.memory_space<vmem>>, vector<32x64xf32>
    %c192 = arith.constant 192 : index
    %c0_76 = arith.constant 0 : index
    %242 = vector.load %arg4[%c192, %c0_76] : memref<256x96xf32, #tpu.memory_space<vmem>>, vector<64x32xf32>
    %cst_77 = arith.constant dense<0.000000e+00> : vector<16x64xf32>
    %243 = tpu.matmul %240, %241, %cst_77 {dimension_numbers = #tpu.dot_dimension_numbers<[1], [0], [0], [1], [0, 0, 1, 1], [], []>} : vector<16x32xf32>, vector<32x64xf32>, vector<16x64xf32> -> vector<16x64xf32>
    %244 = vector.extract_strided_slice %4 {offsets = [5, 0], sizes = [1, 64], strides = [1, 1]} : vector<13x96xf32> to vector<1x64xf32>
    %245 = vector.broadcast %244 : vector<1x64xf32> to vector<16x64xf32>
    %246 = arith.addf %243, %245 : vector<16x64xf32>
    %cst_78 = arith.constant 0.000000e+00 : f32
    %247 = vector.broadcast %cst_78 : f32 to vector<16x64xf32>
    %248 = arith.maximumf %246, %247 : vector<16x64xf32>
    %cst_79 = arith.constant dense<0.000000e+00> : vector<16x32xf32>
    %249 = tpu.matmul %248, %242, %cst_79 {dimension_numbers = #tpu.dot_dimension_numbers<[1], [0], [0], [1], [0, 0, 1, 1], [], []>} : vector<16x64xf32>, vector<64x32xf32>, vector<16x32xf32> -> vector<16x32xf32>
    %250 = vector.extract_strided_slice %4 {offsets = [6, 0], sizes = [1, 32], strides = [1, 1]} : vector<13x96xf32> to vector<1x32xf32>
    %251 = vector.broadcast %250 : vector<1x32xf32> to vector<16x32xf32>
    %252 = arith.addf %249, %251 : vector<16x32xf32>
    %253 = arith.addf %252, %240 : vector<16x32xf32>
    %cst_80 = arith.constant dense<0.000000e+00> : vector<16xf32>
    %254 = vector.multi_reduction <add>, %253, %cst_80 [1] : vector<16x32xf32> to vector<16xf32>
    %255 = vector.shape_cast %254 : vector<16xf32> to vector<16x1xf32>
    %cst_81 = arith.constant 3.200000e+01 : f32
    %256 = vector.broadcast %cst_81 : f32 to vector<16x1xf32>
    %257 = arith.divf %255, %256 : vector<16x1xf32>
    %258 = vector.broadcast %257 : vector<16x1xf32> to vector<16x32xf32>
    %259 = arith.subf %253, %258 : vector<16x32xf32>
    %260 = arith.mulf %259, %259 : vector<16x32xf32>
    %cst_82 = arith.constant dense<0.000000e+00> : vector<16xf32>
    %261 = vector.multi_reduction <add>, %260, %cst_82 [1] : vector<16x32xf32> to vector<16xf32>
    %262 = vector.shape_cast %261 : vector<16xf32> to vector<16x1xf32>
    %cst_83 = arith.constant 3.200000e+01 : f32
    %263 = vector.broadcast %cst_83 : f32 to vector<16x1xf32>
    %264 = arith.divf %262, %263 : vector<16x1xf32>
    %265 = vector.extract_strided_slice %4 {offsets = [11, 0], sizes = [1, 32], strides = [1, 1]} : vector<13x96xf32> to vector<1x32xf32>
    %266 = vector.broadcast %257 : vector<16x1xf32> to vector<16x32xf32>
    %267 = arith.subf %253, %266 : vector<16x32xf32>
    %cst_84 = arith.constant 9.99999974E-6 : f32
    %268 = vector.broadcast %cst_84 : f32 to vector<16x1xf32>
    %269 = arith.addf %264, %268 : vector<16x1xf32>
    %270 = math.rsqrt %269 : vector<16x1xf32>
    %271 = vector.broadcast %270 : vector<16x1xf32> to vector<16x32xf32>
    %272 = arith.mulf %267, %271 : vector<16x32xf32>
    %273 = vector.broadcast %265 : vector<1x32xf32> to vector<16x32xf32>
    %274 = arith.mulf %273, %272 : vector<16x32xf32>
    %275 = vector.extract_strided_slice %4 {offsets = [12, 0], sizes = [1, 32], strides = [1, 1]} : vector<13x96xf32> to vector<1x32xf32>
    %276 = vector.broadcast %275 : vector<1x32xf32> to vector<16x32xf32>
    %277 = arith.addf %274, %276 : vector<16x32xf32>
    %c0_85 = arith.constant 0 : index
    %c0_86 = arith.constant 0 : index
    %278 = vector.load %arg6[%c0_85, %c0_86] : memref<16x32xf32, #tpu.memory_space<vmem>>, vector<16x32xf32>
    tpu.vector_store %arg6[%c0_85, %c0_86], %277 {strides = array<i32>} : memref<16x32xf32, #tpu.memory_space<vmem>>, vector<16x32xf32>,
    return
  }
}

</mosaic_0001>

<llo_original>
// kernel: tpu_custom_call.1
$region0: #{tpu_custom_call.1}
  #allocation0 [shape = 'u32[]', space=smem, size = 0x4, offset = 0x4, fixed_abs, tag = 'smem constant byte address 0x4 - core index']
  #allocation1 [shape = 'u32[144,128]{1,0:T(1,128)}', space=vmem, size = 0x12000, scoped, tag = 'internal scratch']
  %s0 = inlined_call_operand.vmem [shape: f32[16,32], index: 0, kind: input, shape index: {}]
  %s1 = inlined_call_operand.vmem [shape: f32[16,32], index: 1, kind: input, shape index: {}]
  %s2 = inlined_call_operand.vmem [shape: f32[16,16], index: 2, kind: input, shape index: {}]
  %s3 = inlined_call_operand.vmem [shape: f32[16,16], index: 3, kind: input, shape index: {}]
  %s4 = inlined_call_operand.vmem [shape: f32[256,96], index: 4, kind: input, shape index: {}]
  %s5 = inlined_call_operand.vmem [shape: f32[13,96], index: 5, kind: input, shape index: {}]
  %s6 = inlined_call_operand.hbm [shape: f32[16,32], index: 6, kind: output, shape index: {}]
  %s7 = sld [smem:[#allocation0]]
  $region34: #{tpu_custom_call.1} parent=0
    _
  %s9 = ssub.s32 1, %s7
  %s10 = scalar_select 0, %s9, %s7
  $region1: #{tpu_custom_call.1} parent=0
    #allocation2 [shape = 'u8[8192]{0}', space=vmem, size = 0x2000, scoped, tag = 'output window, operand 0, single buffered']
    #allocation3 [shape = 's32[1]{0}', space=sflag, size = 0x4, scoped, tag = 'scoped memory for tpu_custom_call.1']
    %11 = vsyncpa [#allocation3], 0
    // Predicated region
    $region2: #{tpu_custom_call.1} parent=1 // pred_check
      _
    $region3: #{tpu_custom_call.1} parent=1 // pred_check_branch
      %13 = sbr.rel (0) target = $region5
    $region4: #{tpu_custom_call.1} parent=1 // pred_region
      _
    $region5: #{tpu_custom_call.1} parent=1 // pred_fallthru
      _
    // Predicated region
    $region6: #{tpu_custom_call.1} parent=1 // pred_check
      _
    $region7: #{tpu_custom_call.1} parent=1 // pred_check_branch
      %15 = sbr.rel (0) target = $region9
    $region8: #{tpu_custom_call.1} parent=1 // pred_region
      _
    $region9: #{tpu_custom_call.1} parent=1 // pred_fallthru
      _
    // Predicated region
    $region10: #{tpu_custom_call.1} parent=1 // pred_check
      _
    $region11: #{tpu_custom_call.1} parent=1 // pred_check_branch
      %17 = sbr.rel (0) target = $region13
    $region12: #{tpu_custom_call.1} parent=1 // pred_region
      _
    $region13: #{tpu_custom_call.1} parent=1 // pred_fallthru
      _
    // Predicated region
    $region14: #{tpu_custom_call.1} parent=1 // pred_check
      _
    $region15: #{tpu_custom_call.1} parent=1 // pred_check_branch
      %19 = sbr.rel (0) target = $region17
    $region16: #{tpu_custom_call.1} parent=1 // pred_region
      _
    $region17: #{tpu_custom_call.1} parent=1 // pred_fallthru
      _
    // Predicated region
    $region18: #{tpu_custom_call.1} parent=1 // pred_check
      _
    $region19: #{tpu_custom_call.1} parent=1 // pred_check_branch
      %21 = sbr.rel (0) target = $region21
    $region20: #{tpu_custom_call.1} parent=1 // pred_region
      _
    $region21: #{tpu_custom_call.1} parent=1 // pred_fallthru
      _
    // Predicated region
    $region22: #{tpu_custom_call.1} parent=1 // pred_check
      _
    $region23: #{tpu_custom_call.1} parent=1 // pred_check_branch
      %23 = sbr.rel (0) target = $region25
    $region24: #{tpu_custom_call.1} parent=1 // pred_region
      _
    $region25: #{tpu_custom_call.1} parent=1 // pred_fallthru
      _
    %v24 = vld [vmem:[%s0] sm:$0xff]
    %v25 = vld [vmem:[%s0 + $0x8] sm:$0xff]
    %v26 = vld [vmem:[%s1] sm:$0xff]
    %v27 = vld [vmem:[%s1 + $0x8] sm:$0xff]
    %v28 = vld [vmem:[%s2] sm:$0xff]
    %v29 = vld [vmem:[%s2 + $0x8] sm:$0xff]
    %v30 = vld [vmem:[%s3] sm:$0xff]
    %v31 = vld [vmem:[%s3 + $0x8] sm:$0xff]
    %v32 = vld [vmem:[%s5] sm:$0xff]
    %v33 = vld [vmem:[%s5 + $0x8] sm:$0x1f]
    %v34 = vld [vmem:[%s4] sm:$0xff]
    %v35 = vld [vmem:[%s4 + $0x8] sm:$0xff]
    %v36 = vld [vmem:[%s4 + $0x10] sm:$0xff]
    %v37 = vld [vmem:[%s4 + $0x18] sm:$0xff]
    %v38 = vlaneseq
    %v39 = vshrl.u32 %v38, 7
    %v40 = vsub.s32 0, %v39
    %v41 = vrot.slane %v32, %v40
    %vm42 = vcmask 261120
    %v44 = vsel %vm42, %v24, 0
    %v47 = vsel %vm42, %v25, 0
    %49 = vmatprep.subr.mxu0 0.0
    %50 = vmatpush1.msra.mxu0 %v34
    %51 = vmatprep.subr.mxu0 0.0
    %52 = vmatpush1.msra.mxu0 %v35
    %53 = vmatprep.subr.mxu0 0.0
    %54 = vmatpush1.msra.mxu0 %v36
    %55 = vmatprep.subr.mxu0 0.0
    %56 = vmatpush1.msra.mxu0 %v37
    %57 = vmatprep.subr.mxu0 0.0
    %58 = vmatpush1.msra.mxu0 0.0
    %59 = vmatprep.subr.mxu0 0.0
    %60 = vmatpush1.msra.mxu0 0.0
    %61 = vmatprep.subr.mxu0 0.0
    %62 = vmatpush1.msra.mxu0 0.0
    %63 = vmatprep.subr.mxu0 0.0
    %64 = vmatpush1.msra.mxu0 0.0
    %65 = vmatprep.subr.mxu0 0.0
    %66 = vmatpush1.msra.mxu0 0.0
    %67 = vmatprep.subr.mxu0 0.0
    %68 = vmatpush1.msra.mxu0 0.0
    %69 = vmatprep.subr.mxu0 0.0
    %70 = vmatpush1.msra.mxu0 0.0
    %71 = vmatprep.subr.mxu0 0.0
    %72 = vmatpush1.msra.mxu0 0.0
    %73 = vmatprep.subr.mxu0 0.0
    %74 = vmatpush1.msra.mxu0 0.0
    %75 = vmatprep.subr.mxu0 0.0
    %76 = vmatpush1.msra.mxu0 0.0
    %77 = vmatprep.subr.mxu0 0.0
    %78 = vmatpush1.msra.mxu0 0.0
    %79 = vmatprep.subr.mxu0 0.0
    %80 = vmatpush1.msra.mxu0 0.0
    %81 = vmatprep.subr.mxu0 0.0
    %82 = vmatpush1.msra.mxu0 0.0
    %83 = vmatprep.subr.mxu0 0.0
    %84 = vmatpush1.msra.mxu0 0.0
    %85 = vmatprep.subr.mxu0 0.0
    %86 = vmatpush1.msra.mxu0 0.0
    %87 = vmatprep.subr.mxu0 0.0
    %88 = vmatpush1.msra.mxu0 0.0
    %89 = vmatprep.subr.mxu0 0.0
    %90 = vmatpush1.msra.mxu0 0.0
    %91 = vmatprep.subr.mxu0 0.0
    %92 = vmatpush1.msra.mxu0 0.0
    %93 = vmatprep.subr.mxu0 0.0
    %94 = vmatpush1.msra.mxu0 0.0
    %95 = vmatprep.subr.mxu0 0.0
    %96 = vmatpush1.msra.mxu0 0.0
    %97 = vmatprep.subr.mxu0 0.0
    %98 = vmatpush1.msra.mxu0 0.0
    %99 = vmatprep.subr.mxu0 0.0
    %100 = vmatpush1.msra.mxu0 0.0
    %101 = vmatprep.subr.mxu0 0.0
    %102 = vmatpush1.msra.mxu0 0.0
    %103 = vmatprep.subr.mxu0 0.0
    %104 = vmatpush1.msra.mxu0 0.0
    %105 = vmatprep.subr.mxu0 0.0
    %106 = vmatpush1.msra.mxu0 0.0
    %107 = vmatprep.subr.mxu0 0.0
    %108 = vmatpush1.msra.mxu0 0.0
    %109 = vmatprep.subr.mxu0 0.0
    %110 = vmatpush1.msra.mxu0 0.0
    %111 = vmatprep.subr.mxu0 0.0
    %112 = vmatpush1.msra.mxu0 0.0
    %113 = vmatprep.mubr.f32.mxu0 0.0
    %114 = vmatmul.mubr.f32.gmra.mrb[0].mxu0 %v44
    %v115 = vpop.f32.mrb[0].mxu0
    %v116 = vadd.f32 %v41, %v115
    %v117 = vpop.f32.mrb[0].mxu0
    %118 = vmatprep.mubr.f32.mxu0 0.0
    %119 = vmatmul.mubr.f32.gmra.mrb[0].mxu0 %v47
    %v120 = vpop.f32.mrb[0].mxu0
    %v121 = vadd.f32 %v41, %v120
    %v122 = vpop.f32.mrb[0].mxu0
    %123 = vdwg.mxu0
    %v124 = vld [vmem:[%s4 + $0x20] sm:$0xff]
    %v125 = vld [vmem:[%s4 + $0x28] sm:$0xff]
    %v126 = vld [vmem:[%s4 + $0x30] sm:$0xff]
    %v127 = vld [vmem:[%s4 + $0x38] sm:$0xff]
    %130 = vrot.lane.b32.xlu0 %v116, 96
    %v131 = vpop.permute.xlu0 %130
    %132 = vrot.lane.b32.xlu0 %v121, 96
    %v133 = vpop.permute.xlu0 %132
    %vm134 = vcmask 64512
    %v135 = vsel %vm134, %v116, 0
    %v137 = vsel %vm134, %v121, 0
    %v139 = vsel %vm134, %v131, 0
    %v141 = vsel %vm134, %v133, 0
    %143 = vmatprep.subr.mxu0 0.0
    %144 = vmatpush1.xpose.msra.mxu0 %v139
    %145 = vmatprep.subr.mxu0 0.0
    %146 = vmatpush1.xpose.msra.mxu0 %v141
    %147 = vmatprep.subr.mxu0 0.0
    %148 = vmatpush1.xpose.msra.mxu0 0.0
    %149 = vmatprep.subr.mxu0 0.0
    %150 = vmatpush1.xpose.msra.mxu0 0.0
    %151 = vmatprep.subr.mxu0 0.0
    %152 = vmatpush1.xpose.msra.mxu0 0.0
    %153 = vmatprep.subr.mxu0 0.0
    %154 = vmatpush1.xpose.msra.mxu0 0.0
    %155 = vmatprep.subr.mxu0 0.0
    %156 = vmatpush1.xpose.msra.mxu0 0.0
    %157 = vmatprep.subr.mxu0 0.0
    %158 = vmatpush1.xpose.msra.mxu0 0.0
    %159 = vmatprep.subr.mxu0 0.0
    %160 = vmatpush1.xpose.msra.mxu0 0.0
    %161 = vmatprep.subr.mxu0 0.0
    %162 = vmatpush1.xpose.msra.mxu0 0.0
    %163 = vmatprep.subr.mxu0 0.0
    %164 = vmatpush1.xpose.msra.mxu0 0.0
    %165 = vmatprep.subr.mxu0 0.0
    %166 = vmatpush1.xpose.msra.mxu0 0.0
    %167 = vmatprep.subr.mxu0 0.0
    %168 = vmatpush1.xpose.msra.mxu0 0.0
    %169 = vmatprep.subr.mxu0 0.0
    %170 = vmatpush1.xpose.msra.mxu0 0.0
    %171 = vmatprep.subr.mxu0 0.0
    %172 = vmatpush1.xpose.msra.mxu0 0.0
    %173 = vmatprep.subr.mxu0 0.0
    %174 = vmatpush1.xpose.msra.mxu0 0.0
    %175 = vmatprep.subr.mxu0 0.0
    %176 = vmatpush1.xpose.msra.mxu0 0.0
    %177 = vmatprep.subr.mxu0 0.0
    %178 = vmatpush1.xpose.msra.mxu0 0.0
    %179 = vmatprep.subr.mxu0 0.0
    %180 = vmatpush1.xpose.msra.mxu0 0.0
    %181 = vmatprep.subr.mxu0 0.0
    %182 = vmatpush1.xpose.msra.mxu0 0.0
    %183 = vmatprep.subr.mxu0 0.0
    %184 = vmatpush1.xpose.msra.mxu0 0.0
    %185 = vmatprep.subr.mxu0 0.0
    %186 = vmatpush1.xpose.msra.mxu0 0.0
    %187 = vmatprep.subr.mxu0 0.0
    %188 = vmatpush1.xpose.msra.mxu0 0.0
    %189 = vmatprep.subr.mxu0 0.0
    %190 = vmatpush1.xpose.msra.mxu0 0.0
    %191 = vmatprep.subr.mxu0 0.0
    %192 = vmatpush1.xpose.msra.mxu0 0.0
    %193 = vmatprep.subr.mxu0 0.0
    %194 = vmatpush1.xpose.msra.mxu0 0.0
    %195 = vmatprep.subr.mxu0 0.0
    %196 = vmatpush1.xpose.msra.mxu0 0.0
    %197 = vmatprep.subr.mxu0 0.0
    %198 = vmatpush1.xpose.msra.mxu0 0.0
    %199 = vmatprep.subr.mxu0 0.0
    %200 = vmatpush1.xpose.msra.mxu0 0.0
    %201 = vmatprep.subr.mxu0 0.0
    %202 = vmatpush1.xpose.msra.mxu0 0.0
    %203 = vmatprep.subr.mxu0 0.0
    %204 = vmatpush1.xpose.msra.mxu0 0.0
    %205 = vmatprep.subr.mxu0 0.0
    %206 = vmatpush1.xpose.msra.mxu0 0.0
    %207 = vmatprep.mubr.f32.mxu0 0.0
    %208 = vmatmul.mubr.f32.gmra.mrb[0].mxu0 %v135
    %v209 = vpop.f32.mrb[0].mxu0
    %v210 = vadd.f32 0.0, %v209
    %v211 = vpop.f32.mrb[0].mxu0
    %212 = vmatprep.mubr.f32.mxu0 0.0
    %213 = vmatmul.mubr.f32.gmra.mrb[0].mxu0 %v137
    %v214 = vpop.f32.mrb[0].mxu0
    %v215 = vadd.f32 0.0, %v214
    %v216 = vpop.f32.mrb[0].mxu0
    %217 = vdwg.mxu0
    %v218 = vmul.f32 %v210, 0.35355338
    %v219 = vmul.f32 %v215, 0.35355338
    %v220 = vadd.f32 %v218, %v28
    %v221 = vadd.f32 %v219, %v29
    %vm222 = vcmask 130048
    %v223 = vsel %vm222, %v220, -inf
    %224 = vmax.xlane.f32.xlu0 %v223
    %v225 = vpop.xlane.xlu0 %224
    %v226 = vsel %vm222, %v221, -inf
    %227 = vmax.xlane.f32.xlu0 %v226
    %v228 = vpop.xlane.xlu0 %227
    %v229 = vsub.f32 %v220, %v225
    %v230 = vsub.f32 %v221, %v228
    %v231 = vmul.f32 %v229, 1.442695
    %v232 = vpow.pop %v231
    %v233 = vmul.f32 %v230, 1.442695
    %v234 = vpow.pop %v233
    %v235 = vsel %vm222, %v232, 0.0
    %236 = vadd.xlane.f32.xlu0 %v235
    %v237 = vpop.xlane.xlu0 %236
    %v238 = vsel %vm222, %v234, 0.0
    %239 = vadd.xlane.f32.xlu0 %v238
    %v240 = vpop.xlane.xlu0 %239
    %v241 = vrcp.pop %v237
    %v242 = vmul.f32 %v232, %v241
    %v243 = vrcp.pop %v240
    %v244 = vmul.f32 %v234, %v243
    %245 = vrot.lane.b32.xlu0 %v116, 64
    %v246 = vpop.permute.xlu0 %245
    %247 = vrot.lane.b32.xlu0 %v121, 64
    %v248 = vpop.permute.xlu0 %247
    %v252 = vsel %vm222, %v242, 0
    %v255 = vsel %vm222, %v244, 0
    %257 = vmatprep.subr.mxu0 0.0
    %258 = vmatpush1.msra.mxu0 %v246
    %259 = vmatprep.subr.mxu0 0.0
    %260 = vmatpush1.msra.mxu0 %v248
    %261 = vmatprep.subr.mxu0 0.0
    %262 = vmatpush1.msra.mxu0 0.0
    %263 = vmatprep.subr.mxu0 0.0
    %264 = vmatpush1.msra.mxu0 0.0
    %265 = vmatprep.subr.mxu0 0.0
    %266 = vmatpush1.msra.mxu0 0.0
    %267 = vmatprep.subr.mxu0 0.0
    %268 = vmatpush1.msra.mxu0 0.0
    %269 = vmatprep.subr.mxu0 0.0
    %270 = vmatpush1.msra.mxu0 0.0
    %271 = vmatprep.subr.mxu0 0.0
    %272 = vmatpush1.msra.mxu0 0.0
    %273 = vmatprep.subr.mxu0 0.0
    %274 = vmatpush1.msra.mxu0 0.0
    %275 = vmatprep.subr.mxu0 0.0
    %276 = vmatpush1.msra.mxu0 0.0
    %277 = vmatprep.subr.mxu0 0.0
    %278 = vmatpush1.msra.mxu0 0.0
    %279 = vmatprep.subr.mxu0 0.0
    %280 = vmatpush1.msra.mxu0 0.0
    %281 = vmatprep.subr.mxu0 0.0
    %282 = vmatpush1.msra.mxu0 0.0
    %283 = vmatprep.subr.mxu0 0.0
    %284 = vmatpush1.msra.mxu0 0.0
    %285 = vmatprep.subr.mxu0 0.0
    %286 = vmatpush1.msra.mxu0 0.0
    %287 = vmatprep.subr.mxu0 0.0
    %288 = vmatpush1.msra.mxu0 0.0
    %289 = vmatprep.subr.mxu0 0.0
    %290 = vmatpush1.msra.mxu0 0.0
    %291 = vmatprep.subr.mxu0 0.0
    %292 = vmatpush1.msra.mxu0 0.0
    %293 = vmatprep.subr.mxu0 0.0
    %294 = vmatpush1.msra.mxu0 0.0
    %295 = vmatprep.subr.mxu0 0.0
    %296 = vmatpush1.msra.mxu0 0.0
    %297 = vmatprep.subr.mxu0 0.0
    %298 = vmatpush1.msra.mxu0 0.0
    %299 = vmatprep.subr.mxu0 0.0
    %300 = vmatpush1.msra.mxu0 0.0
    %301 = vmatprep.subr.mxu0 0.0
    %302 = vmatpush1.msra.mxu0 0.0
    %303 = vmatprep.subr.mxu0 0.0
    %304 = vmatpush1.msra.mxu0 0.0
    %305 = vmatprep.subr.mxu0 0.0
    %306 = vmatpush1.msra.mxu0 0.0
    %307 = vmatprep.subr.mxu0 0.0
    %308 = vmatpush1.msra.mxu0 0.0
    %309 = vmatprep.subr.mxu0 0.0
    %310 = vmatpush1.msra.mxu0 0.0
    %311 = vmatprep.subr.mxu0 0.0
    %312 = vmatpush1.msra.mxu0 0.0
    %313 = vmatprep.subr.mxu0 0.0
    %314 = vmatpush1.msra.mxu0 0.0
    %315 = vmatprep.subr.mxu0 0.0
    %316 = vmatpush1.msra.mxu0 0.0
    %317 = vmatprep.subr.mxu0 0.0
    %318 = vmatpush1.msra.mxu0 0.0
    %319 = vmatprep.subr.mxu0 0.0
    %320 = vmatpush1.msra.mxu0 0.0
    %321 = vmatprep.mubr.f32.mxu0 0.0
    %322 = vmatmul.mubr.f32.gmra.mrb[0].mxu0 %v252
    %v323 = vpop.f32.mrb[0].mxu0
    %v324 = vadd.f32 0.0, %v323
    %v325 = vpop.f32.mrb[0].mxu0
    %326 = vmatprep.mubr.f32.mxu0 0.0
    %327 = vmatmul.mubr.f32.gmra.mrb[0].mxu0 %v255
    %v328 = vpop.f32.mrb[0].mxu0
    %v329 = vadd.f32 0.0, %v328
    %v330 = vpop.f32.mrb[0].mxu0
    %331 = vdwg.mxu0
    %332 = vrot.lane.b32.xlu0 %v116, 120
    %v333 = vpop.permute.xlu0 %332
    %334 = vrot.lane.b32.xlu0 %v121, 120
    %v335 = vpop.permute.xlu0 %334
    %336 = vrot.lane.b32.xlu0 %v116, 88
    %v337 = vpop.permute.xlu0 %336
    %338 = vrot.lane.b32.xlu0 %v121, 88
    %v339 = vpop.permute.xlu0 %338
    %v340 = vsel %vm134, %v333, 0
    %v342 = vsel %vm134, %v335, 0
    %v344 = vsel %vm134, %v337, 0
    %v346 = vsel %vm134, %v339, 0
    %348 = vmatprep.subr.mxu0 0.0
    %349 = vmatpush1.xpose.msra.mxu0 %v344
    %350 = vmatprep.subr.mxu0 0.0
    %351 = vmatpush1.xpose.msra.mxu0 %v346
    %352 = vmatprep.subr.mxu0 0.0
    %353 = vmatpush1.xpose.msra.mxu0 0.0
    %354 = vmatprep.subr.mxu0 0.0
    %355 = vmatpush1.xpose.msra.mxu0 0.0
    %356 = vmatprep.subr.mxu0 0.0
    %357 = vmatpush1.xpose.msra.mxu0 0.0
    %358 = vmatprep.subr.mxu0 0.0
    %359 = vmatpush1.xpose.msra.mxu0 0.0
    %360 = vmatprep.subr.mxu0 0.0
    %361 = vmatpush1.xpose.msra.mxu0 0.0
    %362 = vmatprep.subr.mxu0 0.0
    %363 = vmatpush1.xpose.msra.mxu0 0.0
    %364 = vmatprep.subr.mxu0 0.0
    %365 = vmatpush1.xpose.msra.mxu0 0.0
    %366 = vmatprep.subr.mxu0 0.0
    %367 = vmatpush1.xpose.msra.mxu0 0.0
    %368 = vmatprep.subr.mxu0 0.0
    %369 = vmatpush1.xpose.msra.mxu0 0.0
    %370 = vmatprep.subr.mxu0 0.0
    %371 = vmatpush1.xpose.msra.mxu0 0.0
    %372 = vmatprep.subr.mxu0 0.0
    %373 = vmatpush1.xpose.msra.mxu0 0.0
    %374 = vmatprep.subr.mxu0 0.0
    %375 = vmatpush1.xpose.msra.mxu0 0.0
    %376 = vmatprep.subr.mxu0 0.0
    %377 = vmatpush1.xpose.msra.mxu0 0.0
    %378 = vmatprep.subr.mxu0 0.0
    %379 = vmatpush1.xpose.msra.mxu0 0.0
    %380 = vmatprep.subr.mxu0 0.0
    %381 = vmatpush1.xpose.msra.mxu0 0.0
    %382 = vmatprep.subr.mxu0 0.0
    %383 = vmatpush1.xpose.msra.mxu0 0.0
    %384 = vmatprep.subr.mxu0 0.0
    %385 = vmatpush1.xpose.msra.mxu0 0.0
    %386 = vmatprep.subr.mxu0 0.0
    %387 = vmatpush1.xpose.msra.mxu0 0.0
    %388 = vmatprep.subr.mxu0 0.0
    %389 = vmatpush1.xpose.msra.mxu0 0.0
    %390 = vmatprep.subr.mxu0 0.0
    %391 = vmatpush1.xpose.msra.mxu0 0.0
    %392 = vmatprep.subr.mxu0 0.0
    %393 = vmatpush1.xpose.msra.mxu0 0.0
    %394 = vmatprep.subr.mxu0 0.0
    %395 = vmatpush1.xpose.msra.mxu0 0.0
    %396 = vmatprep.subr.mxu0 0.0
    %397 = vmatpush1.xpose.msra.mxu0 0.0
    %398 = vmatprep.subr.mxu0 0.0
    %399 = vmatpush1.xpose.msra.mxu0 0.0
    %400 = vmatprep.subr.mxu0 0.0
    %401 = vmatpush1.xpose.msra.mxu0 0.0
    %402 = vmatprep.subr.mxu0 0.0
    %403 = vmatpush1.xpose.msra.mxu0 0.0
    %404 = vmatprep.subr.mxu0 0.0
    %405 = vmatpush1.xpose.msra.mxu0 0.0
    %406 = vmatprep.subr.mxu0 0.0
    %407 = vmatpush1.xpose.msra.mxu0 0.0
    %408 = vmatprep.subr.mxu0 0.0
    %409 = vmatpush1.xpose.msra.mxu0 0.0
    %410 = vmatprep.subr.mxu0 0.0
    %411 = vmatpush1.xpose.msra.mxu0 0.0
    %412 = vmatprep.mubr.f32.mxu0 0.0
    %413 = vmatmul.mubr.f32.gmra.mrb[0].mxu0 %v340
    %v414 = vpop.f32.mrb[0].mxu0
    %v415 = vadd.f32 0.0, %v414
    %v416 = vpop.f32.mrb[0].mxu0
    %417 = vmatprep.mubr.f32.mxu0 0.0
    %418 = vmatmul.mubr.f32.gmra.mrb[0].mxu0 %v342
    %v419 = vpop.f32.mrb[0].mxu0
    %v420 = vadd.f32 0.0, %v419
    %v421 = vpop.f32.mrb[0].mxu0
    %422 = vdwg.mxu0
    %v423 = vmul.f32 %v415, 0.35355338
    %v424 = vmul.f32 %v420, 0.35355338
    %v425 = vadd.f32 %v423, %v28
    %v426 = vadd.f32 %v424, %v29
    %v427 = vsel %vm222, %v425, -inf
    %428 = vmax.xlane.f32.xlu0 %v427
    %v429 = vpop.xlane.xlu0 %428
    %v430 = vsel %vm222, %v426, -inf
    %431 = vmax.xlane.f32.xlu0 %v430
    %v432 = vpop.xlane.xlu0 %431
    %v433 = vsub.f32 %v425, %v429
    %v434 = vsub.f32 %v426, %v432
    %v435 = vmul.f32 %v433, 1.442695
    %v436 = vpow.pop %v435
    %v437 = vmul.f32 %v434, 1.442695
    %v438 = vpow.pop %v437
    %v439 = vsel %vm222, %v436, 0.0
    %440 = vadd.xlane.f32.xlu0 %v439
    %v441 = vpop.xlane.xlu0 %440
    %v442 = vsel %vm222, %v438, 0.0
    %443 = vadd.xlane.f32.xlu0 %v442
    %v444 = vpop.xlane.xlu0 %443
    %v445 = vrcp.pop %v441
    %v446 = vmul.f32 %v436, %v445
    %v447 = vrcp.pop %v444
    %v448 = vmul.f32 %v438, %v447
    %449 = vrot.lane.b32.xlu0 %v116, 56
    %v450 = vpop.permute.xlu0 %449
    %451 = vrot.lane.b32.xlu0 %v121, 56
    %v452 = vpop.permute.xlu0 %451
    %v456 = vsel %vm222, %v446, 0
    %v459 = vsel %vm222, %v448, 0
    %461 = vmatprep.subr.mxu0 0.0
    %462 = vmatpush1.msra.mxu0 %v450
    %463 = vmatprep.subr.mxu0 0.0
    %464 = vmatpush1.msra.mxu0 %v452
    %465 = vmatprep.subr.mxu0 0.0
    %466 = vmatpush1.msra.mxu0 0.0
    %467 = vmatprep.subr.mxu0 0.0
    %468 = vmatpush1.msra.mxu0 0.0
    %469 = vmatprep.subr.mxu0 0.0
    %470 = vmatpush1.msra.mxu0 0.0
    %471 = vmatprep.subr.mxu0 0.0
    %472 = vmatpush1.msra.mxu0 0.0
    %473 = vmatprep.subr.mxu0 0.0
    %474 = vmatpush1.msra.mxu0 0.0
    %475 = vmatprep.subr.mxu0 0.0
    %476 = vmatpush1.msra.mxu0 0.0
    %477 = vmatprep.subr.mxu0 0.0
    %478 = vmatpush1.msra.mxu0 0.0
    %479 = vmatprep.subr.mxu0 0.0
    %480 = vmatpush1.msra.mxu0 0.0
    %481 = vmatprep.subr.mxu0 0.0
    %482 = vmatpush1.msra.mxu0 0.0
    %483 = vmatprep.subr.mxu0 0.0
    %484 = vmatpush1.msra.mxu0 0.0
    %485 = vmatprep.subr.mxu0 0.0
    %486 = vmatpush1.msra.mxu0 0.0
    %487 = vmatprep.subr.mxu0 0.0
    %488 = vmatpush1.msra.mxu0 0.0
    %489 = vmatprep.subr.mxu0 0.0
    %490 = vmatpush1.msra.mxu0 0.0
    %491 = vmatprep.subr.mxu0 0.0
    %492 = vmatpush1.msra.mxu0 0.0
    %493 = vmatprep.subr.mxu0 0.0
    %494 = vmatpush1.msra.mxu0 0.0
    %495 = vmatprep.subr.mxu0 0.0
    %496 = vmatpush1.msra.mxu0 0.0
    %497 = vmatprep.subr.mxu0 0.0
    %498 = vmatpush1.msra.mxu0 0.0
    %499 = vmatprep.subr.mxu0 0.0
    %500 = vmatpush1.msra.mxu0 0.0
    %501 = vmatprep.subr.mxu0 0.0
    %502 = vmatpush1.msra.mxu0 0.0
    %503 = vmatprep.subr.mxu0 0.0
    %504 = vmatpush1.msra.mxu0 0.0
    %505 = vmatprep.subr.mxu0 0.0
    %506 = vmatpush1.msra.mxu0 0.0
    %507 = vmatprep.subr.mxu0 0.0
    %508 = vmatpush1.msra.mxu0 0.0
    %509 = vmatprep.subr.mxu0 0.0
    %510 = vmatpush1.msra.mxu0 0.0
    %511 = vmatprep.subr.mxu0 0.0
    %512 = vmatpush1.msra.mxu0 0.0
    %513 = vmatprep.subr.mxu0 0.0
    %514 = vmatpush1.msra.mxu0 0.0
    %515 = vmatprep.subr.mxu0 0.0
    %516 = vmatpush1.msra.mxu0 0.0
    %517 = vmatprep.subr.mxu0 0.0
    %518 = vmatpush1.msra.mxu0 0.0
    %519 = vmatprep.subr.mxu0 0.0
    %520 = vmatpush1.msra.mxu0 0.0
    %521 = vmatprep.subr.mxu0 0.0
    %522 = vmatpush1.msra.mxu0 0.0
    %523 = vmatprep.subr.mxu0 0.0
    %524 = vmatpush1.msra.mxu0 0.0
    %525 = vmatprep.mubr.f32.mxu0 0.0
    %526 = vmatmul.mubr.f32.gmra.mrb[0].mxu0 %v456
    %v527 = vpop.f32.mrb[0].mxu0
    %v528 = vadd.f32 0.0, %v527
    %v529 = vpop.f32.mrb[0].mxu0
    %530 = vmatprep.mubr.f32.mxu0 0.0
    %531 = vmatmul.mubr.f32.gmra.mrb[0].mxu0 %v459
    %v532 = vpop.f32.mrb[0].mxu0
    %v533 = vadd.f32 0.0, %v532
    %v534 = vpop.f32.mrb[0].mxu0
    %535 = vdwg.mxu0
    %v537 = vsel %vm134, %v528, 0
    %v540 = vsel %vm134, %v533, 0
    %542 = vmatprep.subr.mxu0 0.0
    %543 = vmatpush1.msra.mxu0 %v125
    %544 = vmatprep.subr.mxu0 0.0
    %545 = vmatpush1.msra.mxu0 0.0
    %546 = vmatprep.subr.mxu0 0.0
    %547 = vmatpush1.msra.mxu0 0.0
    %548 = vmatprep.subr.mxu0 0.0
    %549 = vmatpush1.msra.mxu0 0.0
    %550 = vmatprep.subr.mxu0 0.0
    %551 = vmatpush1.msra.mxu0 0.0
    %552 = vmatprep.subr.mxu0 0.0
    %553 = vmatpush1.msra.mxu0 0.0
    %554 = vmatprep.subr.mxu0 0.0
    %555 = vmatpush1.msra.mxu0 0.0
    %556 = vmatprep.subr.mxu0 0.0
    %557 = vmatpush1.msra.mxu0 0.0
    %558 = vmatprep.subr.mxu0 0.0
    %559 = vmatpush1.msra.mxu0 0.0
    %560 = vmatprep.subr.mxu0 0.0
    %561 = vmatpush1.msra.mxu0 0.0
    %562 = vmatprep.subr.mxu0 0.0
    %563 = vmatpush1.msra.mxu0 0.0
    %564 = vmatprep.subr.mxu0 0.0
    %565 = vmatpush1.msra.mxu0 0.0
    %566 = vmatprep.subr.mxu0 0.0
    %567 = vmatpush1.msra.mxu0 0.0
    %568 = vmatprep.subr.mxu0 0.0
    %569 = vmatpush1.msra.mxu0 0.0
    %570 = vmatprep.subr.mxu0 0.0
    %571 = vmatpush1.msra.mxu0 0.0
    %572 = vmatprep.subr.mxu0 0.0
    %573 = vmatpush1.msra.mxu0 0.0
    %574 = vmatprep.subr.mxu0 0.0
    %575 = vmatpush1.msra.mxu0 0.0
    %576 = vmatprep.subr.mxu0 0.0
    %577 = vmatpush1.msra.mxu0 0.0
    %578 = vmatprep.subr.mxu0 0.0
    %579 = vmatpush1.msra.mxu0 0.0
    %580 = vmatprep.subr.mxu0 0.0
    %581 = vmatpush1.msra.mxu0 0.0
    %582 = vmatprep.subr.mxu0 0.0
    %583 = vmatpush1.msra.mxu0 0.0
    %584 = vmatprep.subr.mxu0 0.0
    %585 = vmatpush1.msra.mxu0 0.0
    %586 = vmatprep.subr.mxu0 0.0
    %587 = vmatpush1.msra.mxu0 0.0
    %588 = vmatprep.subr.mxu0 0.0
    %589 = vmatpush1.msra.mxu0 0.0
    %590 = vmatprep.subr.mxu0 0.0
    %591 = vmatpush1.msra.mxu0 0.0
    %592 = vmatprep.subr.mxu0 0.0
    %593 = vmatpush1.msra.mxu0 0.0
    %594 = vmatprep.subr.mxu0 0.0
    %595 = vmatpush1.msra.mxu0 0.0
    %596 = vmatprep.subr.mxu0 0.0
    %597 = vmatpush1.msra.mxu0 0.0
    %598 = vmatprep.subr.mxu0 0.0
    %599 = vmatpush1.msra.mxu0 0.0
    %600 = vmatprep.subr.mxu0 0.0
    %601 = vmatpush1.msra.mxu0 0.0
    %602 = vmatprep.subr.mxu0 0.0
    %603 = vmatpush1.msra.mxu0 0.0
    %604 = vmatprep.subr.mxu0 0.0
    %605 = vmatpush1.msra.mxu0 0.0
    %606 = vmatprep.mubr.f32.mxu0 0.0
    %607 = vmatmul.mubr.f32.gmra.mrb[0].mxu0 %v537
    %v608 = vpop.f32.mrb[0].mxu0
    %v609 = vadd.f32 0.0, %v608
    %v610 = vpop.f32.mrb[0].mxu0
    %611 = vmatprep.mubr.f32.mxu0 0.0
    %612 = vmatmul.mubr.f32.gmra.mrb[0].mxu0 %v540
    %v613 = vpop.f32.mrb[0].mxu0
    %v614 = vadd.f32 0.0, %v613
    %v615 = vpop.f32.mrb[0].mxu0
    %616 = vdwg.mxu0
    %v618 = vsel %vm134, %v324, 0
    %v621 = vsel %vm134, %v329, 0
    %623 = vmatprep.subr.mxu0 0.0
    %624 = vmatpush1.msra.mxu0 %v124
    %625 = vmatprep.subr.mxu0 0.0
    %626 = vmatpush1.msra.mxu0 0.0
    %627 = vmatprep.subr.mxu0 0.0
    %628 = vmatpush1.msra.mxu0 0.0
    %629 = vmatprep.subr.mxu0 0.0
    %630 = vmatpush1.msra.mxu0 0.0
    %631 = vmatprep.subr.mxu0 0.0
    %632 = vmatpush1.msra.mxu0 0.0
    %633 = vmatprep.subr.mxu0 0.0
    %634 = vmatpush1.msra.mxu0 0.0
    %635 = vmatprep.subr.mxu0 0.0
    %636 = vmatpush1.msra.mxu0 0.0
    %637 = vmatprep.subr.mxu0 0.0
    %638 = vmatpush1.msra.mxu0 0.0
    %639 = vmatprep.subr.mxu0 0.0
    %640 = vmatpush1.msra.mxu0 0.0
    %641 = vmatprep.subr.mxu0 0.0
    %642 = vmatpush1.msra.mxu0 0.0
    %643 = vmatprep.subr.mxu0 0.0
    %644 = vmatpush1.msra.mxu0 0.0
    %645 = vmatprep.subr.mxu0 0.0
    %646 = vmatpush1.msra.mxu0 0.0
    %647 = vmatprep.subr.mxu0 0.0
    %648 = vmatpush1.msra.mxu0 0.0
    %649 = vmatprep.subr.mxu0 0.0
    %650 = vmatpush1.msra.mxu0 0.0
    %651 = vmatprep.subr.mxu0 0.0
    %652 = vmatpush1.msra.mxu0 0.0
    %653 = vmatprep.subr.mxu0 0.0
    %654 = vmatpush1.msra.mxu0 0.0
    %655 = vmatprep.subr.mxu0 0.0
    %656 = vmatpush1.msra.mxu0 0.0
    %657 = vmatprep.subr.mxu0 0.0
    %658 = vmatpush1.msra.mxu0 0.0
    %659 = vmatprep.subr.mxu0 0.0
    %660 = vmatpush1.msra.mxu0 0.0
    %661 = vmatprep.subr.mxu0 0.0
    %662 = vmatpush1.msra.mxu0 0.0
    %663 = vmatprep.subr.mxu0 0.0
    %664 = vmatpush1.msra.mxu0 0.0
    %665 = vmatprep.subr.mxu0 0.0
    %666 = vmatpush1.msra.mxu0 0.0
    %667 = vmatprep.subr.mxu0 0.0
    %668 = vmatpush1.msra.mxu0 0.0
    %669 = vmatprep.subr.mxu0 0.0
    %670 = vmatpush1.msra.mxu0 0.0
    %671 = vmatprep.subr.mxu0 0.0
    %672 = vmatpush1.msra.mxu0 0.0
    %673 = vmatprep.subr.mxu0 0.0
    %674 = vmatpush1.msra.mxu0 0.0
    %675 = vmatprep.subr.mxu0 0.0
    %676 = vmatpush1.msra.mxu0 0.0
    %677 = vmatprep.subr.mxu0 0.0
    %678 = vmatpush1.msra.mxu0 0.0
    %679 = vmatprep.subr.mxu0 0.0
    %680 = vmatpush1.msra.mxu0 0.0
    %681 = vmatprep.subr.mxu0 0.0
    %682 = vmatpush1.msra.mxu0 0.0
    %683 = vmatprep.subr.mxu0 0.0
    %684 = vmatpush1.msra.mxu0 0.0
    %685 = vmatprep.subr.mxu0 0.0
    %686 = vmatpush1.msra.mxu0 0.0
    %687 = vmatprep.mubr.f32.mxu0 0.0
    %688 = vmatmul.mubr.f32.gmra.mrb[0].mxu0 %v618
    %v689 = vpop.f32.mrb[0].mxu0
    %v690 = vadd.f32 %v609, %v689
    %v691 = vpop.f32.mrb[0].mxu0
    %692 = vmatprep.mubr.f32.mxu0 0.0
    %693 = vmatmul.mubr.f32.gmra.mrb[0].mxu0 %v621
    %v694 = vpop.f32.mrb[0].mxu0
    %v695 = vadd.f32 %v614, %v694
    %v696 = vpop.f32.mrb[0].mxu0
    %697 = vdwg.mxu0
    %698 = vrot.lane.b32.xlu0 %v116, 112
    %v699 = vpop.permute.xlu0 %698
    %700 = vrot.lane.b32.xlu0 %v121, 112
    %v701 = vpop.permute.xlu0 %700
    %702 = vrot.lane.b32.xlu0 %v116, 80
    %v703 = vpop.permute.xlu0 %702
    %704 = vrot.lane.b32.xlu0 %v121, 80
    %v705 = vpop.permute.xlu0 %704
    %v706 = vsel %vm134, %v699, 0
    %v708 = vsel %vm134, %v701, 0
    %v710 = vsel %vm134, %v703, 0
    %v712 = vsel %vm134, %v705, 0
    %714 = vmatprep.subr.mxu0 0.0
    %715 = vmatpush1.xpose.msra.mxu0 %v710
    %716 = vmatprep.subr.mxu0 0.0
    %717 = vmatpush1.xpose.msra.mxu0 %v712
    %718 = vmatprep.subr.mxu0 0.0
    %719 = vmatpush1.xpose.msra.mxu0 0.0
    %720 = vmatprep.subr.mxu0 0.0
    %721 = vmatpush1.xpose.msra.mxu0 0.0
    %722 = vmatprep.subr.mxu0 0.0
    %723 = vmatpush1.xpose.msra.mxu0 0.0
    %724 = vmatprep.subr.mxu0 0.0
    %725 = vmatpush1.xpose.msra.mxu0 0.0
    %726 = vmatprep.subr.mxu0 0.0
    %727 = vmatpush1.xpose.msra.mxu0 0.0
    %728 = vmatprep.subr.mxu0 0.0
    %729 = vmatpush1.xpose.msra.mxu0 0.0
    %730 = vmatprep.subr.mxu0 0.0
    %731 = vmatpush1.xpose.msra.mxu0 0.0
    %732 = vmatprep.subr.mxu0 0.0
    %733 = vmatpush1.xpose.msra.mxu0 0.0
    %734 = vmatprep.subr.mxu0 0.0
    %735 = vmatpush1.xpose.msra.mxu0 0.0
    %736 = vmatprep.subr.mxu0 0.0
    %737 = vmatpush1.xpose.msra.mxu0 0.0
    %738 = vmatprep.subr.mxu0 0.0
    %739 = vmatpush1.xpose.msra.mxu0 0.0
    %740 = vmatprep.subr.mxu0 0.0
    %741 = vmatpush1.xpose.msra.mxu0 0.0
    %742 = vmatprep.subr.mxu0 0.0
    %743 = vmatpush1.xpose.msra.mxu0 0.0
    %744 = vmatprep.subr.mxu0 0.0
    %745 = vmatpush1.xpose.msra.mxu0 0.0
    %746 = vmatprep.subr.mxu0 0.0
    %747 = vmatpush1.xpose.msra.mxu0 0.0
    %748 = vmatprep.subr.mxu0 0.0
    %749 = vmatpush1.xpose.msra.mxu0 0.0
    %750 = vmatprep.subr.mxu0 0.0
    %751 = vmatpush1.xpose.msra.mxu0 0.0
    %752 = vmatprep.subr.mxu0 0.0
    %753 = vmatpush1.xpose.msra.mxu0 0.0
    %754 = vmatprep.subr.mxu0 0.0
    %755 = vmatpush1.xpose.msra.mxu0 0.0
    %756 = vmatprep.subr.mxu0 0.0
    %757 = vmatpush1.xpose.msra.mxu0 0.0
    %758 = vmatprep.subr.mxu0 0.0
    %759 = vmatpush1.xpose.msra.mxu0 0.0
    %760 = vmatprep.subr.mxu0 0.0
    %761 = vmatpush1.xpose.msra.mxu0 0.0
    %762 = vmatprep.subr.mxu0 0.0
    %763 = vmatpush1.xpose.msra.mxu0 0.0
    %764 = vmatprep.subr.mxu0 0.0
    %765 = vmatpush1.xpose.msra.mxu0 0.0
    %766 = vmatprep.subr.mxu0 0.0
    %767 = vmatpush1.xpose.msra.mxu0 0.0
    %768 = vmatprep.subr.mxu0 0.0
    %769 = vmatpush1.xpose.msra.mxu0 0.0
    %770 = vmatprep.subr.mxu0 0.0
    %771 = vmatpush1.xpose.msra.mxu0 0.0
    %772 = vmatprep.subr.mxu0 0.0
    %773 = vmatpush1.xpose.msra.mxu0 0.0
    %774 = vmatprep.subr.mxu0 0.0
    %775 = vmatpush1.xpose.msra.mxu0 0.0
    %776 = vmatprep.subr.mxu0 0.0
    %777 = vmatpush1.xpose.msra.mxu0 0.0
    %778 = vmatprep.mubr.f32.mxu0 0.0
    %779 = vmatmul.mubr.f32.gmra.mrb[0].mxu0 %v706
    %v780 = vpop.f32.mrb[0].mxu0
    %v781 = vadd.f32 0.0, %v780
    %v782 = vpop.f32.mrb[0].mxu0
    %783 = vmatprep.mubr.f32.mxu0 0.0
    %784 = vmatmul.mubr.f32.gmra.mrb[0].mxu0 %v708
    %v785 = vpop.f32.mrb[0].mxu0
    %v786 = vadd.f32 0.0, %v785
    %v787 = vpop.f32.mrb[0].mxu0
    %788 = vdwg.mxu0
    %v789 = vmul.f32 %v781, 0.35355338
    %v790 = vmul.f32 %v786, 0.35355338
    %v791 = vadd.f32 %v789, %v28
    %v792 = vadd.f32 %v790, %v29
    %v793 = vsel %vm222, %v791, -inf
    %794 = vmax.xlane.f32.xlu0 %v793
    %v795 = vpop.xlane.xlu0 %794
    %v796 = vsel %vm222, %v792, -inf
    %797 = vmax.xlane.f32.xlu0 %v796
    %v798 = vpop.xlane.xlu0 %797
    %v799 = vsub.f32 %v791, %v795
    %v800 = vsub.f32 %v792, %v798
    %v801 = vmul.f32 %v799, 1.442695
    %v802 = vpow.pop %v801
    %v803 = vmul.f32 %v800, 1.442695
    %v804 = vpow.pop %v803
    %v805 = vsel %vm222, %v802, 0.0
    %806 = vadd.xlane.f32.xlu0 %v805
    %v807 = vpop.xlane.xlu0 %806
    %v808 = vsel %vm222, %v804, 0.0
    %809 = vadd.xlane.f32.xlu0 %v808
    %v810 = vpop.xlane.xlu0 %809
    %v811 = vrcp.pop %v807
    %v812 = vmul.f32 %v802, %v811
    %v813 = vrcp.pop %v810
    %v814 = vmul.f32 %v804, %v813
    %815 = vrot.lane.b32.xlu0 %v116, 48
    %v816 = vpop.permute.xlu0 %815
    %817 = vrot.lane.b32.xlu0 %v121, 48
    %v818 = vpop.permute.xlu0 %817
    %v822 = vsel %vm222, %v812, 0
    %v825 = vsel %vm222, %v814, 0
    %827 = vmatprep.subr.mxu0 0.0
    %828 = vmatpush1.msra.mxu0 %v816
    %829 = vmatprep.subr.mxu0 0.0
    %830 = vmatpush1.msra.mxu0 %v818
    %831 = vmatprep.subr.mxu0 0.0
    %832 = vmatpush1.msra.mxu0 0.0
    %833 = vmatprep.subr.mxu0 0.0
    %834 = vmatpush1.msra.mxu0 0.0
    %835 = vmatprep.subr.mxu0 0.0
    %836 = vmatpush1.msra.mxu0 0.0
    %837 = vmatprep.subr.mxu0 0.0
    %838 = vmatpush1.msra.mxu0 0.0
    %839 = vmatprep.subr.mxu0 0.0
    %840 = vmatpush1.msra.mxu0 0.0
    %841 = vmatprep.subr.mxu0 0.0
    %842 = vmatpush1.msra.mxu0 0.0
    %843 = vmatprep.subr.mxu0 0.0
    %844 = vmatpush1.msra.mxu0 0.0
    %845 = vmatprep.subr.mxu0 0.0
    %846 = vmatpush1.msra.mxu0 0.0
    %847 = vmatprep.subr.mxu0 0.0
    %848 = vmatpush1.msra.mxu0 0.0
    %849 = vmatprep.subr.mxu0 0.0
    %850 = vmatpush1.msra.mxu0 0.0
    %851 = vmatprep.subr.mxu0 0.0
    %852 = vmatpush1.msra.mxu0 0.0
    %853 = vmatprep.subr.mxu0 0.0
    %854 = vmatpush1.msra.mxu0 0.0
    %855 = vmatprep.subr.mxu0 0.0
    %856 = vmatpush1.msra.mxu0 0.0
    %857 = vmatprep.subr.mxu0 0.0
    %858 = vmatpush1.msra.mxu0 0.0
    %859 = vmatprep.subr.mxu0 0.0
    %860 = vmatpush1.msra.mxu0 0.0
    %861 = vmatprep.subr.mxu0 0.0
    %862 = vmatpush1.msra.mxu0 0.0
    %863 = vmatprep.subr.mxu0 0.0
    %864 = vmatpush1.msra.mxu0 0.0
    %865 = vmatprep.subr.mxu0 0.0
    %866 = vmatpush1.msra.mxu0 0.0
    %867 = vmatprep.subr.mxu0 0.0
    %868 = vmatpush1.msra.mxu0 0.0
    %869 = vmatprep.subr.mxu0 0.0
    %870 = vmatpush1.msra.mxu0 0.0
    %871 = vmatprep.subr.mxu0 0.0
    %872 = vmatpush1.msra.mxu0 0.0
    %873 = vmatprep.subr.mxu0 0.0
    %874 = vmatpush1.msra.mxu0 0.0
    %875 = vmatprep.subr.mxu0 0.0
    %876 = vmatpush1.msra.mxu0 0.0
    %877 = vmatprep.subr.mxu0 0.0
    %878 = vmatpush1.msra.mxu0 0.0
    %879 = vmatprep.subr.mxu0 0.0
    %880 = vmatpush1.msra.mxu0 0.0
    %881 = vmatprep.subr.mxu0 0.0
    %882 = vmatpush1.msra.mxu0 0.0
    %883 = vmatprep.subr.mxu0 0.0
    %884 = vmatpush1.msra.mxu0 0.0
    %885 = vmatprep.subr.mxu0 0.0
    %886 = vmatpush1.msra.mxu0 0.0
    %887 = vmatprep.subr.mxu0 0.0
    %888 = vmatpush1.msra.mxu0 0.0
    %889 = vmatprep.subr.mxu0 0.0
    %890 = vmatpush1.msra.mxu0 0.0
    %891 = vmatprep.mubr.f32.mxu0 0.0
    %892 = vmatmul.mubr.f32.gmra.mrb[0].mxu0 %v822
    %v893 = vpop.f32.mrb[0].mxu0
    %v894 = vadd.f32 0.0, %v893
    %v895 = vpop.f32.mrb[0].mxu0
    %896 = vmatprep.mubr.f32.mxu0 0.0
    %897 = vmatmul.mubr.f32.gmra.mrb[0].mxu0 %v825
    %v898 = vpop.f32.mrb[0].mxu0
    %v899 = vadd.f32 0.0, %v898
    %v900 = vpop.f32.mrb[0].mxu0
    %901 = vdwg.mxu0
    %v903 = vsel %vm134, %v894, 0
    %v906 = vsel %vm134, %v899, 0
    %908 = vmatprep.subr.mxu0 0.0
    %909 = vmatpush1.msra.mxu0 %v126
    %910 = vmatprep.subr.mxu0 0.0
    %911 = vmatpush1.msra.mxu0 0.0
    %912 = vmatprep.subr.mxu0 0.0
    %913 = vmatpush1.msra.mxu0 0.0
    %914 = vmatprep.subr.mxu0 0.0
    %915 = vmatpush1.msra.mxu0 0.0
    %916 = vmatprep.subr.mxu0 0.0
    %917 = vmatpush1.msra.mxu0 0.0
    %918 = vmatprep.subr.mxu0 0.0
    %919 = vmatpush1.msra.mxu0 0.0
    %920 = vmatprep.subr.mxu0 0.0
    %921 = vmatpush1.msra.mxu0 0.0
    %922 = vmatprep.subr.mxu0 0.0
    %923 = vmatpush1.msra.mxu0 0.0
    %924 = vmatprep.subr.mxu0 0.0
    %925 = vmatpush1.msra.mxu0 0.0
    %926 = vmatprep.subr.mxu0 0.0
    %927 = vmatpush1.msra.mxu0 0.0
    %928 = vmatprep.subr.mxu0 0.0
    %929 = vmatpush1.msra.mxu0 0.0
    %930 = vmatprep.subr.mxu0 0.0
    %931 = vmatpush1.msra.mxu0 0.0
    %932 = vmatprep.subr.mxu0 0.0
    %933 = vmatpush1.msra.mxu0 0.0
    %934 = vmatprep.subr.mxu0 0.0
    %935 = vmatpush1.msra.mxu0 0.0
    %936 = vmatprep.subr.mxu0 0.0
    %937 = vmatpush1.msra.mxu0 0.0
    %938 = vmatprep.subr.mxu0 0.0
    %939 = vmatpush1.msra.mxu0 0.0
    %940 = vmatprep.subr.mxu0 0.0
    %941 = vmatpush1.msra.mxu0 0.0
    %942 = vmatprep.subr.mxu0 0.0
    %943 = vmatpush1.msra.mxu0 0.0
    %944 = vmatprep.subr.mxu0 0.0
    %945 = vmatpush1.msra.mxu0 0.0
    %946 = vmatprep.subr.mxu0 0.0
    %947 = vmatpush1.msra.mxu0 0.0
    %948 = vmatprep.subr.mxu0 0.0
    %949 = vmatpush1.msra.mxu0 0.0
    %950 = vmatprep.subr.mxu0 0.0
    %951 = vmatpush1.msra.mxu0 0.0
    %952 = vmatprep.subr.mxu0 0.0
    %953 = vmatpush1.msra.mxu0 0.0
    %954 = vmatprep.subr.mxu0 0.0
    %955 = vmatpush1.msra.mxu0 0.0
    %956 = vmatprep.subr.mxu0 0.0
    %957 = vmatpush1.msra.mxu0 0.0
    %958 = vmatprep.subr.mxu0 0.0
    %959 = vmatpush1.msra.mxu0 0.0
    %960 = vmatprep.subr.mxu0 0.0
    %961 = vmatpush1.msra.mxu0 0.0
    %962 = vmatprep.subr.mxu0 0.0
    %963 = vmatpush1.msra.mxu0 0.0
    %964 = vmatprep.subr.mxu0 0.0
    %965 = vmatpush1.msra.mxu0 0.0
    %966 = vmatprep.subr.mxu0 0.0
    %967 = vmatpush1.msra.mxu0 0.0
    %968 = vmatprep.subr.mxu0 0.0
    %969 = vmatpush1.msra.mxu0 0.0
    %970 = vmatprep.subr.mxu0 0.0
    %971 = vmatpush1.msra.mxu0 0.0
    %972 = vmatprep.mubr.f32.mxu0 0.0
    %973 = vmatmul.mubr.f32.gmra.mrb[0].mxu0 %v903
    %v974 = vpop.f32.mrb[0].mxu0
    %v975 = vadd.f32 0.0, %v974
    %v976 = vpop.f32.mrb[0].mxu0
    %977 = vmatprep.mubr.f32.mxu0 0.0
    %978 = vmatmul.mubr.f32.gmra.mrb[0].mxu0 %v906
    %v979 = vpop.f32.mrb[0].mxu0
    %v980 = vadd.f32 0.0, %v979
    %v981 = vpop.f32.mrb[0].mxu0
    %982 = vdwg.mxu0
    %v983 = vadd.f32 %v690, %v975
    %v984 = vadd.f32 %v695, %v980
    %985 = vrot.lane.b32.xlu0 %v116, 104
    %v986 = vpop.permute.xlu0 %985
    %987 = vrot.lane.b32.xlu0 %v121, 104
    %v988 = vpop.permute.xlu0 %987
    %989 = vrot.lane.b32.xlu0 %v116, 72
    %v990 = vpop.permute.xlu0 %989
    %991 = vrot.lane.b32.xlu0 %v121, 72
    %v992 = vpop.permute.xlu0 %991
    %v993 = vsel %vm134, %v986, 0
    %v995 = vsel %vm134, %v988, 0
    %v997 = vsel %vm134, %v990, 0
    %v999 = vsel %vm134, %v992, 0
    %1001 = vmatprep.subr.mxu0 0.0
    %1002 = vmatpush1.xpose.msra.mxu0 %v997
    %1003 = vmatprep.subr.mxu0 0.0
    %1004 = vmatpush1.xpose.msra.mxu0 %v999
    %1005 = vmatprep.subr.mxu0 0.0
    %1006 = vmatpush1.xpose.msra.mxu0 0.0
    %1007 = vmatprep.subr.mxu0 0.0
    %1008 = vmatpush1.xpose.msra.mxu0 0.0
    %1009 = vmatprep.subr.mxu0 0.0
    %1010 = vmatpush1.xpose.msra.mxu0 0.0
    %1011 = vmatprep.subr.mxu0 0.0
    %1012 = vmatpush1.xpose.msra.mxu0 0.0
    %1013 = vmatprep.subr.mxu0 0.0
    %1014 = vmatpush1.xpose.msra.mxu0 0.0
    %1015 = vmatprep.subr.mxu0 0.0
    %1016 = vmatpush1.xpose.msra.mxu0 0.0
    %1017 = vmatprep.subr.mxu0 0.0
    %1018 = vmatpush1.xpose.msra.mxu0 0.0
    %1019 = vmatprep.subr.mxu0 0.0
    %1020 = vmatpush1.xpose.msra.mxu0 0.0
    %1021 = vmatprep.subr.mxu0 0.0
    %1022 = vmatpush1.xpose.msra.mxu0 0.0
    %1023 = vmatprep.subr.mxu0 0.0
    %1024 = vmatpush1.xpose.msra.mxu0 0.0
    %1025 = vmatprep.subr.mxu0 0.0
    %1026 = vmatpush1.xpose.msra.mxu0 0.0
    %1027 = vmatprep.subr.mxu0 0.0
    %1028 = vmatpush1.xpose.msra.mxu0 0.0
    %1029 = vmatprep.subr.mxu0 0.0
    %1030 = vmatpush1.xpose.msra.mxu0 0.0
    %1031 = vmatprep.subr.mxu0 0.0
    %1032 = vmatpush1.xpose.msra.mxu0 0.0
    %1033 = vmatprep.subr.mxu0 0.0
    %1034 = vmatpush1.xpose.msra.mxu0 0.0
    %1035 = vmatprep.subr.mxu0 0.0
    %1036 = vmatpush1.xpose.msra.mxu0 0.0
    %1037 = vmatprep.subr.mxu0 0.0
    %1038 = vmatpush1.xpose.msra.mxu0 0.0
    %1039 = vmatprep.subr.mxu0 0.0
    %1040 = vmatpush1.xpose.msra.mxu0 0.0
    %1041 = vmatprep.subr.mxu0 0.0
    %1042 = vmatpush1.xpose.msra.mxu0 0.0
    %1043 = vmatprep.subr.mxu0 0.0
    %1044 = vmatpush1.xpose.msra.mxu0 0.0
    %1045 = vmatprep.subr.mxu0 0.0
    %1046 = vmatpush1.xpose.msra.mxu0 0.0
    %1047 = vmatprep.subr.mxu0 0.0
    %1048 = vmatpush1.xpose.msra.mxu0 0.0
    %1049 = vmatprep.subr.mxu0 0.0
    %1050 = vmatpush1.xpose.msra.mxu0 0.0
    %1051 = vmatprep.subr.mxu0 0.0
    %1052 = vmatpush1.xpose.msra.mxu0 0.0
    %1053 = vmatprep.subr.mxu0 0.0
    %1054 = vmatpush1.xpose.msra.mxu0 0.0
    %1055 = vmatprep.subr.mxu0 0.0
    %1056 = vmatpush1.xpose.msra.mxu0 0.0
    %1057 = vmatprep.subr.mxu0 0.0
    %1058 = vmatpush1.xpose.msra.mxu0 0.0
    %1059 = vmatprep.subr.mxu0 0.0
    %1060 = vmatpush1.xpose.msra.mxu0 0.0
    %1061 = vmatprep.subr.mxu0 0.0
    %1062 = vmatpush1.xpose.msra.mxu0 0.0
    %1063 = vmatprep.subr.mxu0 0.0
    %1064 = vmatpush1.xpose.msra.mxu0 0.0
    %1065 = vmatprep.mubr.f32.mxu0 0.0
    %1066 = vmatmul.mubr.f32.gmra.mrb[0].mxu0 %v993
    %v1067 = vpop.f32.mrb[0].mxu0
    %v1068 = vadd.f32 0.0, %v1067
    %v1069 = vpop.f32.mrb[0].mxu0
    %1070 = vmatprep.mubr.f32.mxu0 0.0
    %1071 = vmatmul.mubr.f32.gmra.mrb[0].mxu0 %v995
    %v1072 = vpop.f32.mrb[0].mxu0
    %v1073 = vadd.f32 0.0, %v1072
    %v1074 = vpop.f32.mrb[0].mxu0
    %1075 = vdwg.mxu0
    %v1076 = vmul.f32 %v1068, 0.35355338
    %v1077 = vmul.f32 %v1073, 0.35355338
    %v1078 = vadd.f32 %v1076, %v28
    %v1079 = vadd.f32 %v1077, %v29
    %v1080 = vsel %vm222, %v1078, -inf
    %1081 = vmax.xlane.f32.xlu0 %v1080
    %v1082 = vpop.xlane.xlu0 %1081
    %v1083 = vsel %vm222, %v1079, -inf
    %1084 = vmax.xlane.f32.xlu0 %v1083
    %v1085 = vpop.xlane.xlu0 %1084
    %v1086 = vsub.f32 %v1078, %v1082
    %v1087 = vsub.f32 %v1079, %v1085
    %v1088 = vmul.f32 %v1086, 1.442695
    %v1089 = vpow.pop %v1088
    %v1090 = vmul.f32 %v1087, 1.442695
    %v1091 = vpow.pop %v1090
    %v1092 = vsel %vm222, %v1089, 0.0
    %1093 = vadd.xlane.f32.xlu0 %v1092
    %v1094 = vpop.xlane.xlu0 %1093
    %v1095 = vsel %vm222, %v1091, 0.0
    %1096 = vadd.xlane.f32.xlu0 %v1095
    %v1097 = vpop.xlane.xlu0 %1096
    %v1098 = vrcp.pop %v1094
    %v1099 = vmul.f32 %v1089, %v1098
    %v1100 = vrcp.pop %v1097
    %v1101 = vmul.f32 %v1091, %v1100
    %1102 = vrot.lane.b32.xlu0 %v116, 40
    %v1103 = vpop.permute.xlu0 %1102
    %1104 = vrot.lane.b32.xlu0 %v121, 40
    %v1105 = vpop.permute.xlu0 %1104
    %v1109 = vsel %vm222, %v1099, 0
    %v1112 = vsel %vm222, %v1101, 0
    %1114 = vmatprep.subr.mxu0 0.0
    %1115 = vmatpush1.msra.mxu0 %v1103
    %1116 = vmatprep.subr.mxu0 0.0
    %1117 = vmatpush1.msra.mxu0 %v1105
    %1118 = vmatprep.subr.mxu0 0.0
    %1119 = vmatpush1.msra.mxu0 0.0
    %1120 = vmatprep.subr.mxu0 0.0
    %1121 = vmatpush1.msra.mxu0 0.0
    %1122 = vmatprep.subr.mxu0 0.0
    %1123 = vmatpush1.msra.mxu0 0.0
    %1124 = vmatprep.subr.mxu0 0.0
    %1125 = vmatpush1.msra.mxu0 0.0
    %1126 = vmatprep.subr.mxu0 0.0
    %1127 = vmatpush1.msra.mxu0 0.0
    %1128 = vmatprep.subr.mxu0 0.0
    %1129 = vmatpush1.msra.mxu0 0.0
    %1130 = vmatprep.subr.mxu0 0.0
    %1131 = vmatpush1.msra.mxu0 0.0
    %1132 = vmatprep.subr.mxu0 0.0
    %1133 = vmatpush1.msra.mxu0 0.0
    %1134 = vmatprep.subr.mxu0 0.0
    %1135 = vmatpush1.msra.mxu0 0.0
    %1136 = vmatprep.subr.mxu0 0.0
    %1137 = vmatpush1.msra.mxu0 0.0
    %1138 = vmatprep.subr.mxu0 0.0
    %1139 = vmatpush1.msra.mxu0 0.0
    %1140 = vmatprep.subr.mxu0 0.0
    %1141 = vmatpush1.msra.mxu0 0.0
    %1142 = vmatprep.subr.mxu0 0.0
    %1143 = vmatpush1.msra.mxu0 0.0
    %1144 = vmatprep.subr.mxu0 0.0
    %1145 = vmatpush1.msra.mxu0 0.0
    %1146 = vmatprep.subr.mxu0 0.0
    %1147 = vmatpush1.msra.mxu0 0.0
    %1148 = vmatprep.subr.mxu0 0.0
    %1149 = vmatpush1.msra.mxu0 0.0
    %1150 = vmatprep.subr.mxu0 0.0
    %1151 = vmatpush1.msra.mxu0 0.0
    %1152 = vmatprep.subr.mxu0 0.0
    %1153 = vmatpush1.msra.mxu0 0.0
    %1154 = vmatprep.subr.mxu0 0.0
    %1155 = vmatpush1.msra.mxu0 0.0
    %1156 = vmatprep.subr.mxu0 0.0
    %1157 = vmatpush1.msra.mxu0 0.0
    %1158 = vmatprep.subr.mxu0 0.0
    %1159 = vmatpush1.msra.mxu0 0.0
    %1160 = vmatprep.subr.mxu0 0.0
    %1161 = vmatpush1.msra.mxu0 0.0
    %1162 = vmatprep.subr.mxu0 0.0
    %1163 = vmatpush1.msra.mxu0 0.0
    %1164 = vmatprep.subr.mxu0 0.0
    %1165 = vmatpush1.msra.mxu0 0.0
    %1166 = vmatprep.subr.mxu0 0.0
    %1167 = vmatpush1.msra.mxu0 0.0
    %1168 = vmatprep.subr.mxu0 0.0
    %1169 = vmatpush1.msra.mxu0 0.0
    %1170 = vmatprep.subr.mxu0 0.0
    %1171 = vmatpush1.msra.mxu0 0.0
    %1172 = vmatprep.subr.mxu0 0.0
    %1173 = vmatpush1.msra.mxu0 0.0
    %1174 = vmatprep.subr.mxu0 0.0
    %1175 = vmatpush1.msra.mxu0 0.0
    %1176 = vmatprep.subr.mxu0 0.0
    %1177 = vmatpush1.msra.mxu0 0.0
    %1178 = vmatprep.mubr.f32.mxu0 0.0
    %1179 = vmatmul.mubr.f32.gmra.mrb[0].mxu0 %v1109
    %v1180 = vpop.f32.mrb[0].mxu0
    %v1181 = vadd.f32 0.0, %v1180
    %v1182 = vpop.f32.mrb[0].mxu0
    %1183 = vmatprep.mubr.f32.mxu0 0.0
    %1184 = vmatmul.mubr.f32.gmra.mrb[0].mxu0 %v1112
    %v1185 = vpop.f32.mrb[0].mxu0
    %v1186 = vadd.f32 0.0, %v1185
    %v1187 = vpop.f32.mrb[0].mxu0
    %1188 = vdwg.mxu0
    %v1190 = vsel %vm134, %v1181, 0
    %v1193 = vsel %vm134, %v1186, 0
    %1195 = vmatprep.subr.mxu0 0.0
    %1196 = vmatpush1.msra.mxu0 %v127
    %1197 = vmatprep.subr.mxu0 0.0
    %1198 = vmatpush1.msra.mxu0 0.0
    %1199 = vmatprep.subr.mxu0 0.0
    %1200 = vmatpush1.msra.mxu0 0.0
    %1201 = vmatprep.subr.mxu0 0.0
    %1202 = vmatpush1.msra.mxu0 0.0
    %1203 = vmatprep.subr.mxu0 0.0
    %1204 = vmatpush1.msra.mxu0 0.0
    %1205 = vmatprep.subr.mxu0 0.0
    %1206 = vmatpush1.msra.mxu0 0.0
    %1207 = vmatprep.subr.mxu0 0.0
    %1208 = vmatpush1.msra.mxu0 0.0
    %1209 = vmatprep.subr.mxu0 0.0
    %1210 = vmatpush1.msra.mxu0 0.0
    %1211 = vmatprep.subr.mxu0 0.0
    %1212 = vmatpush1.msra.mxu0 0.0
    %1213 = vmatprep.subr.mxu0 0.0
    %1214 = vmatpush1.msra.mxu0 0.0
    %1215 = vmatprep.subr.mxu0 0.0
    %1216 = vmatpush1.msra.mxu0 0.0
    %1217 = vmatprep.subr.mxu0 0.0
    %1218 = vmatpush1.msra.mxu0 0.0
    %1219 = vmatprep.subr.mxu0 0.0
    %1220 = vmatpush1.msra.mxu0 0.0
    %1221 = vmatprep.subr.mxu0 0.0
    %1222 = vmatpush1.msra.mxu0 0.0
    %1223 = vmatprep.subr.mxu0 0.0
    %1224 = vmatpush1.msra.mxu0 0.0
    %1225 = vmatprep.subr.mxu0 0.0
    %1226 = vmatpush1.msra.mxu0 0.0
    %1227 = vmatprep.subr.mxu0 0.0
    %1228 = vmatpush1.msra.mxu0 0.0
    %1229 = vmatprep.subr.mxu0 0.0
    %1230 = vmatpush1.msra.mxu0 0.0
    %1231 = vmatprep.subr.mxu0 0.0
    %1232 = vmatpush1.msra.mxu0 0.0
    %1233 = vmatprep.subr.mxu0 0.0
    %1234 = vmatpush1.msra.mxu0 0.0
    %1235 = vmatprep.subr.mxu0 0.0
    %1236 = vmatpush1.msra.mxu0 0.0
    %1237 = vmatprep.subr.mxu0 0.0
    %1238 = vmatpush1.msra.mxu0 0.0
    %1239 = vmatprep.subr.mxu0 0.0
    %1240 = vmatpush1.msra.mxu0 0.0
    %1241 = vmatprep.subr.mxu0 0.0
    %1242 = vmatpush1.msra.mxu0 0.0
    %1243 = vmatprep.subr.mxu0 0.0
    %1244 = vmatpush1.msra.mxu0 0.0
    %1245 = vmatprep.subr.mxu0 0.0
    %1246 = vmatpush1.msra.mxu0 0.0
    %1247 = vmatprep.subr.mxu0 0.0
    %1248 = vmatpush1.msra.mxu0 0.0
    %1249 = vmatprep.subr.mxu0 0.0
    %1250 = vmatpush1.msra.mxu0 0.0
    %1251 = vmatprep.subr.mxu0 0.0
    %1252 = vmatpush1.msra.mxu0 0.0
    %1253 = vmatprep.subr.mxu0 0.0
    %1254 = vmatpush1.msra.mxu0 0.0
    %1255 = vmatprep.subr.mxu0 0.0
    %1256 = vmatpush1.msra.mxu0 0.0
    %1257 = vmatprep.subr.mxu0 0.0
    %1258 = vmatpush1.msra.mxu0 0.0
    %1259 = vmatprep.mubr.f32.mxu0 0.0
    %1260 = vmatmul.mubr.f32.gmra.mrb[0].mxu0 %v1190
    %v1261 = vpop.f32.mrb[0].mxu0
    %v1262 = vadd.f32 0.0, %v1261
    %v1263 = vpop.f32.mrb[0].mxu0
    %1264 = vmatprep.mubr.f32.mxu0 0.0
    %1265 = vmatmul.mubr.f32.gmra.mrb[0].mxu0 %v1193
    %v1266 = vpop.f32.mrb[0].mxu0
    %v1267 = vadd.f32 0.0, %v1266
    %v1268 = vpop.f32.mrb[0].mxu0
    %1269 = vdwg.mxu0
    %v1270 = vadd.f32 %v983, %v1262
    %v1271 = vadd.f32 %v984, %v1267
    %v1272 = vlaneseq
    %v1273 = vshrl.u32 %v1272, 7
    %v1274 = vsub.s32 1, %v1273
    %v1275 = vrot.slane %v32, %v1274
    %v1276 = vadd.f32 %v1270, %v1275
    %v1277 = vadd.f32 %v1271, %v1275
    %v1278 = vadd.f32 %v1276, %v24
    %v1279 = vadd.f32 %v1277, %v25
    %v1280 = vsel %vm42, %v1278, 0.0
    %1281 = vadd.xlane.f32.xlu0 %v1280
    %v1282 = vpop.xlane.xlu0 %1281
    %v1283 = vsel %vm42, %v1279, 0.0
    %1284 = vadd.xlane.f32.xlu0 %v1283
    %v1285 = vpop.xlane.xlu0 %1284
    %v1286 = vrcp.pop 32.0
    %v1287 = vmul.f32 %v1282, %v1286
    %v1288 = vmul.f32 %v1285, %v1286
    %v1289 = vsub.f32 %v1278, %v1287
    %v1290 = vsub.f32 %v1279, %v1288
    %v1291 = vmul.f32 %v1289, %v1289
    %v1292 = vmul.f32 %v1290, %v1290
    %v1293 = vsel %vm42, %v1291, 0.0
    %1294 = vadd.xlane.f32.xlu0 %v1293
    %v1295 = vpop.xlane.xlu0 %1294
    %v1296 = vsel %vm42, %v1292, 0.0
    %1297 = vadd.xlane.f32.xlu0 %v1296
    %v1298 = vpop.xlane.xlu0 %1297
    %v1299 = vmul.f32 %v1295, %v1286
    %v1300 = vmul.f32 %v1298, %v1286
    %v1301 = vadd.f32 %v1299, 1e-05
    %v1302 = vadd.f32 %v1300, 1e-05
    %v1303 = vrsqrt.pop %v1301
    %v1304 = vrsqrt.pop %v1302
    %v1305 = vmul.f32 %v1289, %v1303
    %v1306 = vmul.f32 %v1290, %v1304
    %v1307 = vlaneseq
    %v1308 = vshrl.u32 %v1307, 7
    %v1309 = vsub.s32 7, %v1308
    %v1310 = vrot.slane %v32, %v1309
    %v1311 = vmul.f32 %v1310, %v1305
    %v1312 = vmul.f32 %v1310, %v1306
    %v1313 = vlaneseq
    %v1314 = vshrl.u32 %v1313, 7
    %v1315 = vsub.s32 0, %v1314
    %v1316 = vrot.slane %v33, %v1315
    %v1317 = vadd.f32 %v1311, %v1316
    %v1318 = vadd.f32 %v1312, %v1316
    %v1319 = vld [vmem:[%s4 + $0x40] sm:$0xff]
    %v1320 = vld [vmem:[%s4 + $0x48] sm:$0xff]
    %v1321 = vld [vmem:[%s4 + $0x50] sm:$0xff]
    %v1322 = vld [vmem:[%s4 + $0x58] sm:$0xff]
    %v1323 = vlaneseq
    %v1324 = vshrl.u32 %v1323, 7
    %v1325 = vsub.s32 2, %v1324
    %v1326 = vrot.slane %v32, %v1325
    %v1328 = vsel %vm42, %v26, 0
    %v1331 = vsel %vm42, %v27, 0
    %1333 = vmatprep.subr.mxu0 0.0
    %1334 = vmatpush1.msra.mxu0 %v1319
    %1335 = vmatprep.subr.mxu0 0.0
    %1336 = vmatpush1.msra.mxu0 %v1320
    %1337 = vmatprep.subr.mxu0 0.0
    %1338 = vmatpush1.msra.mxu0 %v1321
    %1339 = vmatprep.subr.mxu0 0.0
    %1340 = vmatpush1.msra.mxu0 %v1322
    %1341 = vmatprep.subr.mxu0 0.0
    %1342 = vmatpush1.msra.mxu0 0.0
    %1343 = vmatprep.subr.mxu0 0.0
    %1344 = vmatpush1.msra.mxu0 0.0
    %1345 = vmatprep.subr.mxu0 0.0
    %1346 = vmatpush1.msra.mxu0 0.0
    %1347 = vmatprep.subr.mxu0 0.0
    %1348 = vmatpush1.msra.mxu0 0.0
    %1349 = vmatprep.subr.mxu0 0.0
    %1350 = vmatpush1.msra.mxu0 0.0
    %1351 = vmatprep.subr.mxu0 0.0
    %1352 = vmatpush1.msra.mxu0 0.0
    %1353 = vmatprep.subr.mxu0 0.0
    %1354 = vmatpush1.msra.mxu0 0.0
    %1355 = vmatprep.subr.mxu0 0.0
    %1356 = vmatpush1.msra.mxu0 0.0
    %1357 = vmatprep.subr.mxu0 0.0
    %1358 = vmatpush1.msra.mxu0 0.0
    %1359 = vmatprep.subr.mxu0 0.0
    %1360 = vmatpush1.msra.mxu0 0.0
    %1361 = vmatprep.subr.mxu0 0.0
    %1362 = vmatpush1.msra.mxu0 0.0
    %1363 = vmatprep.subr.mxu0 0.0
    %1364 = vmatpush1.msra.mxu0 0.0
    %1365 = vmatprep.subr.mxu0 0.0
    %1366 = vmatpush1.msra.mxu0 0.0
    %1367 = vmatprep.subr.mxu0 0.0
    %1368 = vmatpush1.msra.mxu0 0.0
    %1369 = vmatprep.subr.mxu0 0.0
    %1370 = vmatpush1.msra.mxu0 0.0
    %1371 = vmatprep.subr.mxu0 0.0
    %1372 = vmatpush1.msra.mxu0 0.0
    %1373 = vmatprep.subr.mxu0 0.0
    %1374 = vmatpush1.msra.mxu0 0.0
    %1375 = vmatprep.subr.mxu0 0.0
    %1376 = vmatpush1.msra.mxu0 0.0
    %1377 = vmatprep.subr.mxu0 0.0
    %1378 = vmatpush1.msra.mxu0 0.0
    %1379 = vmatprep.subr.mxu0 0.0
    %1380 = vmatpush1.msra.mxu0 0.0
    %1381 = vmatprep.subr.mxu0 0.0
    %1382 = vmatpush1.msra.mxu0 0.0
    %1383 = vmatprep.subr.mxu0 0.0
    %1384 = vmatpush1.msra.mxu0 0.0
    %1385 = vmatprep.subr.mxu0 0.0
    %1386 = vmatpush1.msra.mxu0 0.0
    %1387 = vmatprep.subr.mxu0 0.0
    %1388 = vmatpush1.msra.mxu0 0.0
    %1389 = vmatprep.subr.mxu0 0.0
    %1390 = vmatpush1.msra.mxu0 0.0
    %1391 = vmatprep.subr.mxu0 0.0
    %1392 = vmatpush1.msra.mxu0 0.0
    %1393 = vmatprep.subr.mxu0 0.0
    %1394 = vmatpush1.msra.mxu0 0.0
    %1395 = vmatprep.subr.mxu0 0.0
    %1396 = vmatpush1.msra.mxu0 0.0
    %1397 = vmatprep.mubr.f32.mxu0 0.0
    %1398 = vmatmul.mubr.f32.gmra.mrb[0].mxu0 %v1328
    %v1399 = vpop.f32.mrb[0].mxu0
    %v1400 = vadd.f32 %v1326, %v1399
    %v1401 = vpop.f32.mrb[0].mxu0
    %1402 = vmatprep.mubr.f32.mxu0 0.0
    %1403 = vmatmul.mubr.f32.gmra.mrb[0].mxu0 %v1331
    %v1404 = vpop.f32.mrb[0].mxu0
    %v1405 = vadd.f32 %v1326, %v1404
    %v1406 = vpop.f32.mrb[0].mxu0
    %1407 = vdwg.mxu0
    %v1408 = vld [vmem:[%s4 + $0x60] sm:$0xff]
    %v1409 = vld [vmem:[%s4 + $0x68] sm:$0xff]
    %v1410 = vld [vmem:[%s4 + $0x70] sm:$0xff]
    %v1411 = vld [vmem:[%s4 + $0x78] sm:$0xff]
    %v1412 = vlaneseq
    %v1413 = vshrl.u32 %v1412, 7
    %v1414 = vsub.s32 3, %v1413
    %v1415 = vrot.slane %v32, %v1414
    %v1417 = vsel %vm42, %v1317, 0
    %v1420 = vsel %vm42, %v1318, 0
    %1422 = vmatprep.subr.mxu0 0.0
    %1423 = vmatpush1.msra.mxu0 %v1408
    %1424 = vmatprep.subr.mxu0 0.0
    %1425 = vmatpush1.msra.mxu0 %v1409
    %1426 = vmatprep.subr.mxu0 0.0
    %1427 = vmatpush1.msra.mxu0 %v1410
    %1428 = vmatprep.subr.mxu0 0.0
    %1429 = vmatpush1.msra.mxu0 %v1411
    %1430 = vmatprep.subr.mxu0 0.0
    %1431 = vmatpush1.msra.mxu0 0.0
    %1432 = vmatprep.subr.mxu0 0.0
    %1433 = vmatpush1.msra.mxu0 0.0
    %1434 = vmatprep.subr.mxu0 0.0
    %1435 = vmatpush1.msra.mxu0 0.0
    %1436 = vmatprep.subr.mxu0 0.0
    %1437 = vmatpush1.msra.mxu0 0.0
    %1438 = vmatprep.subr.mxu0 0.0
    %1439 = vmatpush1.msra.mxu0 0.0
    %1440 = vmatprep.subr.mxu0 0.0
    %1441 = vmatpush1.msra.mxu0 0.0
    %1442 = vmatprep.subr.mxu0 0.0
    %1443 = vmatpush1.msra.mxu0 0.0
    %1444 = vmatprep.subr.mxu0 0.0
    %1445 = vmatpush1.msra.mxu0 0.0
    %1446 = vmatprep.subr.mxu0 0.0
    %1447 = vmatpush1.msra.mxu0 0.0
    %1448 = vmatprep.subr.mxu0 0.0
    %1449 = vmatpush1.msra.mxu0 0.0
    %1450 = vmatprep.subr.mxu0 0.0
    %1451 = vmatpush1.msra.mxu0 0.0
    %1452 = vmatprep.subr.mxu0 0.0
    %1453 = vmatpush1.msra.mxu0 0.0
    %1454 = vmatprep.subr.mxu0 0.0
    %1455 = vmatpush1.msra.mxu0 0.0
    %1456 = vmatprep.subr.mxu0 0.0
    %1457 = vmatpush1.msra.mxu0 0.0
    %1458 = vmatprep.subr.mxu0 0.0
    %1459 = vmatpush1.msra.mxu0 0.0
    %1460 = vmatprep.subr.mxu0 0.0
    %1461 = vmatpush1.msra.mxu0 0.0
    %1462 = vmatprep.subr.mxu0 0.0
    %1463 = vmatpush1.msra.mxu0 0.0
    %1464 = vmatprep.subr.mxu0 0.0
    %1465 = vmatpush1.msra.mxu0 0.0
    %1466 = vmatprep.subr.mxu0 0.0
    %1467 = vmatpush1.msra.mxu0 0.0
    %1468 = vmatprep.subr.mxu0 0.0
    %1469 = vmatpush1.msra.mxu0 0.0
    %1470 = vmatprep.subr.mxu0 0.0
    %1471 = vmatpush1.msra.mxu0 0.0
    %1472 = vmatprep.subr.mxu0 0.0
    %1473 = vmatpush1.msra.mxu0 0.0
    %1474 = vmatprep.subr.mxu0 0.0
    %1475 = vmatpush1.msra.mxu0 0.0
    %1476 = vmatprep.subr.mxu0 0.0
    %1477 = vmatpush1.msra.mxu0 0.0
    %1478 = vmatprep.subr.mxu0 0.0
    %1479 = vmatpush1.msra.mxu0 0.0
    %1480 = vmatprep.subr.mxu0 0.0
    %1481 = vmatpush1.msra.mxu0 0.0
    %1482 = vmatprep.subr.mxu0 0.0
    %1483 = vmatpush1.msra.mxu0 0.0
    %1484 = vmatprep.subr.mxu0 0.0
    %1485 = vmatpush1.msra.mxu0 0.0
    %1486 = vmatprep.mubr.f32.mxu0 0.0
    %1487 = vmatmul.mubr.f32.gmra.mrb[0].mxu0 %v1417
    %v1488 = vpop.f32.mrb[0].mxu0
    %v1489 = vadd.f32 %v1415, %v1488
    %v1490 = vpop.f32.mrb[0].mxu0
    %1491 = vmatprep.mubr.f32.mxu0 0.0
    %1492 = vmatmul.mubr.f32.gmra.mrb[0].mxu0 %v1420
    %v1493 = vpop.f32.mrb[0].mxu0
    %v1494 = vadd.f32 %v1415, %v1493
    %v1495 = vpop.f32.mrb[0].mxu0
    %1496 = vdwg.mxu0
    %v1497 = vld [vmem:[%s4 + $0x80] sm:$0xff]
    %v1498 = vld [vmem:[%s4 + $0x88] sm:$0xff]
    %v1499 = vld [vmem:[%s4 + $0x90] sm:$0xff]
    %v1500 = vld [vmem:[%s4 + $0x98] sm:$0xff]
    %v1502 = vsel %vm134, %v1489, 0
    %v1505 = vsel %vm134, %v1494, 0
    %v1508 = vsel %vm134, %v1400, 0
    %v1511 = vsel %vm134, %v1405, 0
    %1513 = vmatprep.subr.mxu0 0.0
    %1514 = vmatpush1.xpose.msra.mxu0 %v1508
    %1515 = vmatprep.subr.mxu0 0.0
    %1516 = vmatpush1.xpose.msra.mxu0 %v1511
    %1517 = vmatprep.subr.mxu0 0.0
    %1518 = vmatpush1.xpose.msra.mxu0 0.0
    %1519 = vmatprep.subr.mxu0 0.0
    %1520 = vmatpush1.xpose.msra.mxu0 0.0
    %1521 = vmatprep.subr.mxu0 0.0
    %1522 = vmatpush1.xpose.msra.mxu0 0.0
    %1523 = vmatprep.subr.mxu0 0.0
    %1524 = vmatpush1.xpose.msra.mxu0 0.0
    %1525 = vmatprep.subr.mxu0 0.0
    %1526 = vmatpush1.xpose.msra.mxu0 0.0
    %1527 = vmatprep.subr.mxu0 0.0
    %1528 = vmatpush1.xpose.msra.mxu0 0.0
    %1529 = vmatprep.subr.mxu0 0.0
    %1530 = vmatpush1.xpose.msra.mxu0 0.0
    %1531 = vmatprep.subr.mxu0 0.0
    %1532 = vmatpush1.xpose.msra.mxu0 0.0
    %1533 = vmatprep.subr.mxu0 0.0
    %1534 = vmatpush1.xpose.msra.mxu0 0.0
    %1535 = vmatprep.subr.mxu0 0.0
    %1536 = vmatpush1.xpose.msra.mxu0 0.0
    %1537 = vmatprep.subr.mxu0 0.0
    %1538 = vmatpush1.xpose.msra.mxu0 0.0
    %1539 = vmatprep.subr.mxu0 0.0
    %1540 = vmatpush1.xpose.msra.mxu0 0.0
    %1541 = vmatprep.subr.mxu0 0.0
    %1542 = vmatpush1.xpose.msra.mxu0 0.0
    %1543 = vmatprep.subr.mxu0 0.0
    %1544 = vmatpush1.xpose.msra.mxu0 0.0
    %1545 = vmatprep.subr.mxu0 0.0
    %1546 = vmatpush1.xpose.msra.mxu0 0.0
    %1547 = vmatprep.subr.mxu0 0.0
    %1548 = vmatpush1.xpose.msra.mxu0 0.0
    %1549 = vmatprep.subr.mxu0 0.0
    %1550 = vmatpush1.xpose.msra.mxu0 0.0
    %1551 = vmatprep.subr.mxu0 0.0
    %1552 = vmatpush1.xpose.msra.mxu0 0.0
    %1553 = vmatprep.subr.mxu0 0.0
    %1554 = vmatpush1.xpose.msra.mxu0 0.0
    %1555 = vmatprep.subr.mxu0 0.0
    %1556 = vmatpush1.xpose.msra.mxu0 0.0
    %1557 = vmatprep.subr.mxu0 0.0
    %1558 = vmatpush1.xpose.msra.mxu0 0.0
    %1559 = vmatprep.subr.mxu0 0.0
    %1560 = vmatpush1.xpose.msra.mxu0 0.0
    %1561 = vmatprep.subr.mxu0 0.0
    %1562 = vmatpush1.xpose.msra.mxu0 0.0
    %1563 = vmatprep.subr.mxu0 0.0
    %1564 = vmatpush1.xpose.msra.mxu0 0.0
    %1565 = vmatprep.subr.mxu0 0.0
    %1566 = vmatpush1.xpose.msra.mxu0 0.0
    %1567 = vmatprep.subr.mxu0 0.0
    %1568 = vmatpush1.xpose.msra.mxu0 0.0
    %1569 = vmatprep.subr.mxu0 0.0
    %1570 = vmatpush1.xpose.msra.mxu0 0.0
    %1571 = vmatprep.subr.mxu0 0.0
    %1572 = vmatpush1.xpose.msra.mxu0 0.0
    %1573 = vmatprep.subr.mxu0 0.0
    %1574 = vmatpush1.xpose.msra.mxu0 0.0
    %1575 = vmatprep.subr.mxu0 0.0
    %1576 = vmatpush1.xpose.msra.mxu0 0.0
    %1577 = vmatprep.mubr.f32.mxu0 0.0
    %1578 = vmatmul.mubr.f32.gmra.mrb[0].mxu0 %v1502
    %v1579 = vpop.f32.mrb[0].mxu0
    %v1580 = vadd.f32 0.0, %v1579
    %v1581 = vpop.f32.mrb[0].mxu0
    %1582 = vmatprep.mubr.f32.mxu0 0.0
    %1583 = vmatmul.mubr.f32.gmra.mrb[0].mxu0 %v1505
    %v1584 = vpop.f32.mrb[0].mxu0
    %v1585 = vadd.f32 0.0, %v1584
    %v1586 = vpop.f32.mrb[0].mxu0
    %1587 = vdwg.mxu0
    %v1588 = vmul.f32 %v1580, 0.35355338
    %v1589 = vmul.f32 %v1585, 0.35355338
    %v1590 = vadd.f32 %v1588, %v30
    %v1591 = vadd.f32 %v1589, %v31
    %v1592 = vsel %vm222, %v1590, -inf
    %1593 = vmax.xlane.f32.xlu0 %v1592
    %v1594 = vpop.xlane.xlu0 %1593
    %v1595 = vsel %vm222, %v1591, -inf
    %1596 = vmax.xlane.f32.xlu0 %v1595
    %v1597 = vpop.xlane.xlu0 %1596
    %v1598 = vsub.f32 %v1590, %v1594
    %v1599 = vsub.f32 %v1591, %v1597
    %v1600 = vmul.f32 %v1598, 1.442695
    %v1601 = vpow.pop %v1600
    %v1602 = vmul.f32 %v1599, 1.442695
    %v1603 = vpow.pop %v1602
    %v1604 = vsel %vm222, %v1601, 0.0
    %1605 = vadd.xlane.f32.xlu0 %v1604
    %v1606 = vpop.xlane.xlu0 %1605
    %v1607 = vsel %vm222, %v1603, 0.0
    %1608 = vadd.xlane.f32.xlu0 %v1607
    %v1609 = vpop.xlane.xlu0 %1608
    %v1610 = vrcp.pop %v1606
    %v1611 = vmul.f32 %v1601, %v1610
    %v1612 = vrcp.pop %v1609
    %v1613 = vmul.f32 %v1603, %v1612
    %1614 = vrot.lane.b32.xlu0 %v1400, 96
    %v1615 = vpop.permute.xlu0 %1614
    %1616 = vrot.lane.b32.xlu0 %v1405, 96
    %v1617 = vpop.permute.xlu0 %1616
    %v1621 = vsel %vm222, %v1611, 0
    %v1624 = vsel %vm222, %v1613, 0
    %1626 = vmatprep.subr.mxu0 0.0
    %1627 = vmatpush1.msra.mxu0 %v1615
    %1628 = vmatprep.subr.mxu0 0.0
    %1629 = vmatpush1.msra.mxu0 %v1617
    %1630 = vmatprep.subr.mxu0 0.0
    %1631 = vmatpush1.msra.mxu0 0.0
    %1632 = vmatprep.subr.mxu0 0.0
    %1633 = vmatpush1.msra.mxu0 0.0
    %1634 = vmatprep.subr.mxu0 0.0
    %1635 = vmatpush1.msra.mxu0 0.0
    %1636 = vmatprep.subr.mxu0 0.0
    %1637 = vmatpush1.msra.mxu0 0.0
    %1638 = vmatprep.subr.mxu0 0.0
    %1639 = vmatpush1.msra.mxu0 0.0
    %1640 = vmatprep.subr.mxu0 0.0
    %1641 = vmatpush1.msra.mxu0 0.0
    %1642 = vmatprep.subr.mxu0 0.0
    %1643 = vmatpush1.msra.mxu0 0.0
    %1644 = vmatprep.subr.mxu0 0.0
    %1645 = vmatpush1.msra.mxu0 0.0
    %1646 = vmatprep.subr.mxu0 0.0
    %1647 = vmatpush1.msra.mxu0 0.0
    %1648 = vmatprep.subr.mxu0 0.0
    %1649 = vmatpush1.msra.mxu0 0.0
    %1650 = vmatprep.subr.mxu0 0.0
    %1651 = vmatpush1.msra.mxu0 0.0
    %1652 = vmatprep.subr.mxu0 0.0
    %1653 = vmatpush1.msra.mxu0 0.0
    %1654 = vmatprep.subr.mxu0 0.0
    %1655 = vmatpush1.msra.mxu0 0.0
    %1656 = vmatprep.subr.mxu0 0.0
    %1657 = vmatpush1.msra.mxu0 0.0
    %1658 = vmatprep.subr.mxu0 0.0
    %1659 = vmatpush1.msra.mxu0 0.0
    %1660 = vmatprep.subr.mxu0 0.0
    %1661 = vmatpush1.msra.mxu0 0.0
    %1662 = vmatprep.subr.mxu0 0.0
    %1663 = vmatpush1.msra.mxu0 0.0
    %1664 = vmatprep.subr.mxu0 0.0
    %1665 = vmatpush1.msra.mxu0 0.0
    %1666 = vmatprep.subr.mxu0 0.0
    %1667 = vmatpush1.msra.mxu0 0.0
    %1668 = vmatprep.subr.mxu0 0.0
    %1669 = vmatpush1.msra.mxu0 0.0
    %1670 = vmatprep.subr.mxu0 0.0
    %1671 = vmatpush1.msra.mxu0 0.0
    %1672 = vmatprep.subr.mxu0 0.0
    %1673 = vmatpush1.msra.mxu0 0.0
    %1674 = vmatprep.subr.mxu0 0.0
    %1675 = vmatpush1.msra.mxu0 0.0
    %1676 = vmatprep.subr.mxu0 0.0
    %1677 = vmatpush1.msra.mxu0 0.0
    %1678 = vmatprep.subr.mxu0 0.0
    %1679 = vmatpush1.msra.mxu0 0.0
    %1680 = vmatprep.subr.mxu0 0.0
    %1681 = vmatpush1.msra.mxu0 0.0
    %1682 = vmatprep.subr.mxu0 0.0
    %1683 = vmatpush1.msra.mxu0 0.0
    %1684 = vmatprep.subr.mxu0 0.0
    %1685 = vmatpush1.msra.mxu0 0.0
    %1686 = vmatprep.subr.mxu0 0.0
    %1687 = vmatpush1.msra.mxu0 0.0
    %1688 = vmatprep.subr.mxu0 0.0
    %1689 = vmatpush1.msra.mxu0 0.0
    %1690 = vmatprep.mubr.f32.mxu0 0.0
    %1691 = vmatmul.mubr.f32.gmra.mrb[0].mxu0 %v1621
    %v1692 = vpop.f32.mrb[0].mxu0
    %v1693 = vadd.f32 0.0, %v1692
    %v1694 = vpop.f32.mrb[0].mxu0
    %1695 = vmatprep.mubr.f32.mxu0 0.0
    %1696 = vmatmul.mubr.f32.gmra.mrb[0].mxu0 %v1624
    %v1697 = vpop.f32.mrb[0].mxu0
    %v1698 = vadd.f32 0.0, %v1697
    %v1699 = vpop.f32.mrb[0].mxu0
    %1700 = vdwg.mxu0
    %1701 = vrot.lane.b32.xlu0 %v1489, 120
    %v1702 = vpop.permute.xlu0 %1701
    %1703 = vrot.lane.b32.xlu0 %v1494, 120
    %v1704 = vpop.permute.xlu0 %1703
    %1705 = vrot.lane.b32.xlu0 %v1400, 120
    %v1706 = vpop.permute.xlu0 %1705
    %1707 = vrot.lane.b32.xlu0 %v1405, 120
    %v1708 = vpop.permute.xlu0 %1707
    %v1709 = vsel %vm134, %v1702, 0
    %v1711 = vsel %vm134, %v1704, 0
    %v1713 = vsel %vm134, %v1706, 0
    %v1715 = vsel %vm134, %v1708, 0
    %1717 = vmatprep.subr.mxu0 0.0
    %1718 = vmatpush1.xpose.msra.mxu0 %v1713
    %1719 = vmatprep.subr.mxu0 0.0
    %1720 = vmatpush1.xpose.msra.mxu0 %v1715
    %1721 = vmatprep.subr.mxu0 0.0
    %1722 = vmatpush1.xpose.msra.mxu0 0.0
    %1723 = vmatprep.subr.mxu0 0.0
    %1724 = vmatpush1.xpose.msra.mxu0 0.0
    %1725 = vmatprep.subr.mxu0 0.0
    %1726 = vmatpush1.xpose.msra.mxu0 0.0
    %1727 = vmatprep.subr.mxu0 0.0
    %1728 = vmatpush1.xpose.msra.mxu0 0.0
    %1729 = vmatprep.subr.mxu0 0.0
    %1730 = vmatpush1.xpose.msra.mxu0 0.0
    %1731 = vmatprep.subr.mxu0 0.0
    %1732 = vmatpush1.xpose.msra.mxu0 0.0
    %1733 = vmatprep.subr.mxu0 0.0
    %1734 = vmatpush1.xpose.msra.mxu0 0.0
    %1735 = vmatprep.subr.mxu0 0.0
    %1736 = vmatpush1.xpose.msra.mxu0 0.0
    %1737 = vmatprep.subr.mxu0 0.0
    %1738 = vmatpush1.xpose.msra.mxu0 0.0
    %1739 = vmatprep.subr.mxu0 0.0
    %1740 = vmatpush1.xpose.msra.mxu0 0.0
    %1741 = vmatprep.subr.mxu0 0.0
    %1742 = vmatpush1.xpose.msra.mxu0 0.0
    %1743 = vmatprep.subr.mxu0 0.0
    %1744 = vmatpush1.xpose.msra.mxu0 0.0
    %1745 = vmatprep.subr.mxu0 0.0
    %1746 = vmatpush1.xpose.msra.mxu0 0.0
    %1747 = vmatprep.subr.mxu0 0.0
    %1748 = vmatpush1.xpose.msra.mxu0 0.0
    %1749 = vmatprep.subr.mxu0 0.0
    %1750 = vmatpush1.xpose.msra.mxu0 0.0
    %1751 = vmatprep.subr.mxu0 0.0
    %1752 = vmatpush1.xpose.msra.mxu0 0.0
    %1753 = vmatprep.subr.mxu0 0.0
    %1754 = vmatpush1.xpose.msra.mxu0 0.0
    %1755 = vmatprep.subr.mxu0 0.0
    %1756 = vmatpush1.xpose.msra.mxu0 0.0
    %1757 = vmatprep.subr.mxu0 0.0
    %1758 = vmatpush1.xpose.msra.mxu0 0.0
    %1759 = vmatprep.subr.mxu0 0.0
    %1760 = vmatpush1.xpose.msra.mxu0 0.0
    %1761 = vmatprep.subr.mxu0 0.0
    %1762 = vmatpush1.xpose.msra.mxu0 0.0
    %1763 = vmatprep.subr.mxu0 0.0
    %1764 = vmatpush1.xpose.msra.mxu0 0.0
    %1765 = vmatprep.subr.mxu0 0.0
    %1766 = vmatpush1.xpose.msra.mxu0 0.0
    %1767 = vmatprep.subr.mxu0 0.0
    %1768 = vmatpush1.xpose.msra.mxu0 0.0
    %1769 = vmatprep.subr.mxu0 0.0
    %1770 = vmatpush1.xpose.msra.mxu0 0.0
    %1771 = vmatprep.subr.mxu0 0.0
    %1772 = vmatpush1.xpose.msra.mxu0 0.0
    %1773 = vmatprep.subr.mxu0 0.0
    %1774 = vmatpush1.xpose.msra.mxu0 0.0
    %1775 = vmatprep.subr.mxu0 0.0
    %1776 = vmatpush1.xpose.msra.mxu0 0.0
    %1777 = vmatprep.subr.mxu0 0.0
    %1778 = vmatpush1.xpose.msra.mxu0 0.0
    %1779 = vmatprep.subr.mxu0 0.0
    %1780 = vmatpush1.xpose.msra.mxu0 0.0
    %1781 = vmatprep.mubr.f32.mxu0 0.0
    %1782 = vmatmul.mubr.f32.gmra.mrb[0].mxu0 %v1709
    %v1783 = vpop.f32.mrb[0].mxu0
    %v1784 = vadd.f32 0.0, %v1783
    %v1785 = vpop.f32.mrb[0].mxu0
    %1786 = vmatprep.mubr.f32.mxu0 0.0
    %1787 = vmatmul.mubr.f32.gmra.mrb[0].mxu0 %v1711
    %v1788 = vpop.f32.mrb[0].mxu0
    %v1789 = vadd.f32 0.0, %v1788
    %v1790 = vpop.f32.mrb[0].mxu0
    %1791 = vdwg.mxu0
    %v1792 = vmul.f32 %v1784, 0.35355338
    %v1793 = vmul.f32 %v1789, 0.35355338
    %v1794 = vadd.f32 %v1792, %v30
    %v1795 = vadd.f32 %v1793, %v31
    %v1796 = vsel %vm222, %v1794, -inf
    %1797 = vmax.xlane.f32.xlu0 %v1796
    %v1798 = vpop.xlane.xlu0 %1797
    %v1799 = vsel %vm222, %v1795, -inf
    %1800 = vmax.xlane.f32.xlu0 %v1799
    %v1801 = vpop.xlane.xlu0 %1800
    %v1802 = vsub.f32 %v1794, %v1798
    %v1803 = vsub.f32 %v1795, %v1801
    %v1804 = vmul.f32 %v1802, 1.442695
    %v1805 = vpow.pop %v1804
    %v1806 = vmul.f32 %v1803, 1.442695
    %v1807 = vpow.pop %v1806
    %v1808 = vsel %vm222, %v1805, 0.0
    %1809 = vadd.xlane.f32.xlu0 %v1808
    %v1810 = vpop.xlane.xlu0 %1809
    %v1811 = vsel %vm222, %v1807, 0.0
    %1812 = vadd.xlane.f32.xlu0 %v1811
    %v1813 = vpop.xlane.xlu0 %1812
    %v1814 = vrcp.pop %v1810
    %v1815 = vmul.f32 %v1805, %v1814
    %v1816 = vrcp.pop %v1813
    %v1817 = vmul.f32 %v1807, %v1816
    %1818 = vrot.lane.b32.xlu0 %v1400, 88
    %v1819 = vpop.permute.xlu0 %1818
    %1820 = vrot.lane.b32.xlu0 %v1405, 88
    %v1821 = vpop.permute.xlu0 %1820
    %v1825 = vsel %vm222, %v1815, 0
    %v1828 = vsel %vm222, %v1817, 0
    %1830 = vmatprep.subr.mxu0 0.0
    %1831 = vmatpush1.msra.mxu0 %v1819
    %1832 = vmatprep.subr.mxu0 0.0
    %1833 = vmatpush1.msra.mxu0 %v1821
    %1834 = vmatprep.subr.mxu0 0.0
    %1835 = vmatpush1.msra.mxu0 0.0
    %1836 = vmatprep.subr.mxu0 0.0
    %1837 = vmatpush1.msra.mxu0 0.0
    %1838 = vmatprep.subr.mxu0 0.0
    %1839 = vmatpush1.msra.mxu0 0.0
    %1840 = vmatprep.subr.mxu0 0.0
    %1841 = vmatpush1.msra.mxu0 0.0
    %1842 = vmatprep.subr.mxu0 0.0
    %1843 = vmatpush1.msra.mxu0 0.0
    %1844 = vmatprep.subr.mxu0 0.0
    %1845 = vmatpush1.msra.mxu0 0.0
    %1846 = vmatprep.subr.mxu0 0.0
    %1847 = vmatpush1.msra.mxu0 0.0
    %1848 = vmatprep.subr.mxu0 0.0
    %1849 = vmatpush1.msra.mxu0 0.0
    %1850 = vmatprep.subr.mxu0 0.0
    %1851 = vmatpush1.msra.mxu0 0.0
    %1852 = vmatprep.subr.mxu0 0.0
    %1853 = vmatpush1.msra.mxu0 0.0
    %1854 = vmatprep.subr.mxu0 0.0
    %1855 = vmatpush1.msra.mxu0 0.0
    %1856 = vmatprep.subr.mxu0 0.0
    %1857 = vmatpush1.msra.mxu0 0.0
    %1858 = vmatprep.subr.mxu0 0.0
    %1859 = vmatpush1.msra.mxu0 0.0
    %1860 = vmatprep.subr.mxu0 0.0
    %1861 = vmatpush1.msra.mxu0 0.0
    %1862 = vmatprep.subr.mxu0 0.0
    %1863 = vmatpush1.msra.mxu0 0.0
    %1864 = vmatprep.subr.mxu0 0.0
    %1865 = vmatpush1.msra.mxu0 0.0
    %1866 = vmatprep.subr.mxu0 0.0
    %1867 = vmatpush1.msra.mxu0 0.0
    %1868 = vmatprep.subr.mxu0 0.0
    %1869 = vmatpush1.msra.mxu0 0.0
    %1870 = vmatprep.subr.mxu0 0.0
    %1871 = vmatpush1.msra.mxu0 0.0
    %1872 = vmatprep.subr.mxu0 0.0
    %1873 = vmatpush1.msra.mxu0 0.0
    %1874 = vmatprep.subr.mxu0 0.0
    %1875 = vmatpush1.msra.mxu0 0.0
    %1876 = vmatprep.subr.mxu0 0.0
    %1877 = vmatpush1.msra.mxu0 0.0
    %1878 = vmatprep.subr.mxu0 0.0
    %1879 = vmatpush1.msra.mxu0 0.0
    %1880 = vmatprep.subr.mxu0 0.0
    %1881 = vmatpush1.msra.mxu0 0.0
    %1882 = vmatprep.subr.mxu0 0.0
    %1883 = vmatpush1.msra.mxu0 0.0
    %1884 = vmatprep.subr.mxu0 0.0
    %1885 = vmatpush1.msra.mxu0 0.0
    %1886 = vmatprep.subr.mxu0 0.0
    %1887 = vmatpush1.msra.mxu0 0.0
    %1888 = vmatprep.subr.mxu0 0.0
    %1889 = vmatpush1.msra.mxu0 0.0
    %1890 = vmatprep.subr.mxu0 0.0
    %1891 = vmatpush1.msra.mxu0 0.0
    %1892 = vmatprep.subr.mxu0 0.0
    %1893 = vmatpush1.msra.mxu0 0.0
    %1894 = vmatprep.mubr.f32.mxu0 0.0
    %1895 = vmatmul.mubr.f32.gmra.mrb[0].mxu0 %v1825
    %v1896 = vpop.f32.mrb[0].mxu0
    %v1897 = vadd.f32 0.0, %v1896
    %v1898 = vpop.f32.mrb[0].mxu0
    %1899 = vmatprep.mubr.f32.mxu0 0.0
    %1900 = vmatmul.mubr.f32.gmra.mrb[0].mxu0 %v1828
    %v1901 = vpop.f32.mrb[0].mxu0
    %v1902 = vadd.f32 0.0, %v1901
    %v1903 = vpop.f32.mrb[0].mxu0
    %1904 = vdwg.mxu0
    %v1906 = vsel %vm134, %v1897, 0
    %v1909 = vsel %vm134, %v1902, 0
    %1911 = vmatprep.subr.mxu0 0.0
    %1912 = vmatpush1.msra.mxu0 %v1498
    %1913 = vmatprep.subr.mxu0 0.0
    %1914 = vmatpush1.msra.mxu0 0.0
    %1915 = vmatprep.subr.mxu0 0.0
    %1916 = vmatpush1.msra.mxu0 0.0
    %1917 = vmatprep.subr.mxu0 0.0
    %1918 = vmatpush1.msra.mxu0 0.0
    %1919 = vmatprep.subr.mxu0 0.0
    %1920 = vmatpush1.msra.mxu0 0.0
    %1921 = vmatprep.subr.mxu0 0.0
    %1922 = vmatpush1.msra.mxu0 0.0
    %1923 = vmatprep.subr.mxu0 0.0
    %1924 = vmatpush1.msra.mxu0 0.0
    %1925 = vmatprep.subr.mxu0 0.0
    %1926 = vmatpush1.msra.mxu0 0.0
    %1927 = vmatprep.subr.mxu0 0.0
    %1928 = vmatpush1.msra.mxu0 0.0
    %1929 = vmatprep.subr.mxu0 0.0
    %1930 = vmatpush1.msra.mxu0 0.0
    %1931 = vmatprep.subr.mxu0 0.0
    %1932 = vmatpush1.msra.mxu0 0.0
    %1933 = vmatprep.subr.mxu0 0.0
    %1934 = vmatpush1.msra.mxu0 0.0
    %1935 = vmatprep.subr.mxu0 0.0
    %1936 = vmatpush1.msra.mxu0 0.0
    %1937 = vmatprep.subr.mxu0 0.0
    %1938 = vmatpush1.msra.mxu0 0.0
    %1939 = vmatprep.subr.mxu0 0.0
    %1940 = vmatpush1.msra.mxu0 0.0
    %1941 = vmatprep.subr.mxu0 0.0
    %1942 = vmatpush1.msra.mxu0 0.0
    %1943 = vmatprep.subr.mxu0 0.0
    %1944 = vmatpush1.msra.mxu0 0.0
    %1945 = vmatprep.subr.mxu0 0.0
    %1946 = vmatpush1.msra.mxu0 0.0
    %1947 = vmatprep.subr.mxu0 0.0
    %1948 = vmatpush1.msra.mxu0 0.0
    %1949 = vmatprep.subr.mxu0 0.0
    %1950 = vmatpush1.msra.mxu0 0.0
    %1951 = vmatprep.subr.mxu0 0.0
    %1952 = vmatpush1.msra.mxu0 0.0
    %1953 = vmatprep.subr.mxu0 0.0
    %1954 = vmatpush1.msra.mxu0 0.0
    %1955 = vmatprep.subr.mxu0 0.0
    %1956 = vmatpush1.msra.mxu0 0.0
    %1957 = vmatprep.subr.mxu0 0.0
    %1958 = vmatpush1.msra.mxu0 0.0
    %1959 = vmatprep.subr.mxu0 0.0
    %1960 = vmatpush1.msra.mxu0 0.0
    %1961 = vmatprep.subr.mxu0 0.0
    %1962 = vmatpush1.msra.mxu0 0.0
    %1963 = vmatprep.subr.mxu0 0.0
    %1964 = vmatpush1.msra.mxu0 0.0
    %1965 = vmatprep.subr.mxu0 0.0
    %1966 = vmatpush1.msra.mxu0 0.0
    %1967 = vmatprep.subr.mxu0 0.0
    %1968 = vmatpush1.msra.mxu0 0.0
    %1969 = vmatprep.subr.mxu0 0.0
    %1970 = vmatpush1.msra.mxu0 0.0
    %1971 = vmatprep.subr.mxu0 0.0
    %1972 = vmatpush1.msra.mxu0 0.0
    %1973 = vmatprep.subr.mxu0 0.0
    %1974 = vmatpush1.msra.mxu0 0.0
    %1975 = vmatprep.mubr.f32.mxu0 0.0
    %1976 = vmatmul.mubr.f32.gmra.mrb[0].mxu0 %v1906
    %v1977 = vpop.f32.mrb[0].mxu0
    %v1978 = vadd.f32 0.0, %v1977
    %v1979 = vpop.f32.mrb[0].mxu0
    %1980 = vmatprep.mubr.f32.mxu0 0.0
    %1981 = vmatmul.mubr.f32.gmra.mrb[0].mxu0 %v1909
    %v1982 = vpop.f32.mrb[0].mxu0
    %v1983 = vadd.f32 0.0, %v1982
    %v1984 = vpop.f32.mrb[0].mxu0
    %1985 = vdwg.mxu0
    %v1987 = vsel %vm134, %v1693, 0
    %v1990 = vsel %vm134, %v1698, 0
    %1992 = vmatprep.subr.mxu0 0.0
    %1993 = vmatpush1.msra.mxu0 %v1497
    %1994 = vmatprep.subr.mxu0 0.0
    %1995 = vmatpush1.msra.mxu0 0.0
    %1996 = vmatprep.subr.mxu0 0.0
    %1997 = vmatpush1.msra.mxu0 0.0
    %1998 = vmatprep.subr.mxu0 0.0
    %1999 = vmatpush1.msra.mxu0 0.0
    %2000 = vmatprep.subr.mxu0 0.0
    %2001 = vmatpush1.msra.mxu0 0.0
    %2002 = vmatprep.subr.mxu0 0.0
    %2003 = vmatpush1.msra.mxu0 0.0
    %2004 = vmatprep.subr.mxu0 0.0
    %2005 = vmatpush1.msra.mxu0 0.0
    %2006 = vmatprep.subr.mxu0 0.0
    %2007 = vmatpush1.msra.mxu0 0.0
    %2008 = vmatprep.subr.mxu0 0.0
    %2009 = vmatpush1.msra.mxu0 0.0
    %2010 = vmatprep.subr.mxu0 0.0
    %2011 = vmatpush1.msra.mxu0 0.0
    %2012 = vmatprep.subr.mxu0 0.0
    %2013 = vmatpush1.msra.mxu0 0.0
    %2014 = vmatprep.subr.mxu0 0.0
    %2015 = vmatpush1.msra.mxu0 0.0
    %2016 = vmatprep.subr.mxu0 0.0
    %2017 = vmatpush1.msra.mxu0 0.0
    %2018 = vmatprep.subr.mxu0 0.0
    %2019 = vmatpush1.msra.mxu0 0.0
    %2020 = vmatprep.subr.mxu0 0.0
    %2021 = vmatpush1.msra.mxu0 0.0
    %2022 = vmatprep.subr.mxu0 0.0
    %2023 = vmatpush1.msra.mxu0 0.0
    %2024 = vmatprep.subr.mxu0 0.0
    %2025 = vmatpush1.msra.mxu0 0.0
    %2026 = vmatprep.subr.mxu0 0.0
    %2027 = vmatpush1.msra.mxu0 0.0
    %2028 = vmatprep.subr.mxu0 0.0
    %2029 = vmatpush1.msra.mxu0 0.0
    %2030 = vmatprep.subr.mxu0 0.0
    %2031 = vmatpush1.msra.mxu0 0.0
    %2032 = vmatprep.subr.mxu0 0.0
    %2033 = vmatpush1.msra.mxu0 0.0
    %2034 = vmatprep.subr.mxu0 0.0
    %2035 = vmatpush1.msra.mxu0 0.0
    %2036 = vmatprep.subr.mxu0 0.0
    %2037 = vmatpush1.msra.mxu0 0.0
    %2038 = vmatprep.subr.mxu0 0.0
    %2039 = vmatpush1.msra.mxu0 0.0
    %2040 = vmatprep.subr.mxu0 0.0
    %2041 = vmatpush1.msra.mxu0 0.0
    %2042 = vmatprep.subr.mxu0 0.0
    %2043 = vmatpush1.msra.mxu0 0.0
    %2044 = vmatprep.subr.mxu0 0.0
    %2045 = vmatpush1.msra.mxu0 0.0
    %2046 = vmatprep.subr.mxu0 0.0
    %2047 = vmatpush1.msra.mxu0 0.0
    %2048 = vmatprep.subr.mxu0 0.0
    %2049 = vmatpush1.msra.mxu0 0.0
    %2050 = vmatprep.subr.mxu0 0.0
    %2051 = vmatpush1.msra.mxu0 0.0
    %2052 = vmatprep.subr.mxu0 0.0
    %2053 = vmatpush1.msra.mxu0 0.0
    %2054 = vmatprep.subr.mxu0 0.0
    %2055 = vmatpush1.msra.mxu0 0.0
    %2056 = vmatprep.mubr.f32.mxu0 0.0
    %2057 = vmatmul.mubr.f32.gmra.mrb[0].mxu0 %v1987
    %v2058 = vpop.f32.mrb[0].mxu0
    %v2059 = vadd.f32 %v1978, %v2058
    %v2060 = vpop.f32.mrb[0].mxu0
    %2061 = vmatprep.mubr.f32.mxu0 0.0
    %2062 = vmatmul.mubr.f32.gmra.mrb[0].mxu0 %v1990
    %v2063 = vpop.f32.mrb[0].mxu0
    %v2064 = vadd.f32 %v1983, %v2063
    %v2065 = vpop.f32.mrb[0].mxu0
    %2066 = vdwg.mxu0
    %2067 = vrot.lane.b32.xlu0 %v1489, 112
    %v2068 = vpop.permute.xlu0 %2067
    %2069 = vrot.lane.b32.xlu0 %v1494, 112
    %v2070 = vpop.permute.xlu0 %2069
    %2071 = vrot.lane.b32.xlu0 %v1400, 112
    %v2072 = vpop.permute.xlu0 %2071
    %2073 = vrot.lane.b32.xlu0 %v1405, 112
    %v2074 = vpop.permute.xlu0 %2073
    %v2075 = vsel %vm134, %v2068, 0
    %v2077 = vsel %vm134, %v2070, 0
    %v2079 = vsel %vm134, %v2072, 0
    %v2081 = vsel %vm134, %v2074, 0
    %2083 = vmatprep.subr.mxu0 0.0
    %2084 = vmatpush1.xpose.msra.mxu0 %v2079
    %2085 = vmatprep.subr.mxu0 0.0
    %2086 = vmatpush1.xpose.msra.mxu0 %v2081
    %2087 = vmatprep.subr.mxu0 0.0
    %2088 = vmatpush1.xpose.msra.mxu0 0.0
    %2089 = vmatprep.subr.mxu0 0.0
    %2090 = vmatpush1.xpose.msra.mxu0 0.0
    %2091 = vmatprep.subr.mxu0 0.0
    %2092 = vmatpush1.xpose.msra.mxu0 0.0
    %2093 = vmatprep.subr.mxu0 0.0
    %2094 = vmatpush1.xpose.msra.mxu0 0.0
    %2095 = vmatprep.subr.mxu0 0.0
    %2096 = vmatpush1.xpose.msra.mxu0 0.0
    %2097 = vmatprep.subr.mxu0 0.0
    %2098 = vmatpush1.xpose.msra.mxu0 0.0
    %2099 = vmatprep.subr.mxu0 0.0
    %2100 = vmatpush1.xpose.msra.mxu0 0.0
    %2101 = vmatprep.subr.mxu0 0.0
    %2102 = vmatpush1.xpose.msra.mxu0 0.0
    %2103 = vmatprep.subr.mxu0 0.0
    %2104 = vmatpush1.xpose.msra.mxu0 0.0
    %2105 = vmatprep.subr.mxu0 0.0
    %2106 = vmatpush1.xpose.msra.mxu0 0.0
    %2107 = vmatprep.subr.mxu0 0.0
    %2108 = vmatpush1.xpose.msra.mxu0 0.0
    %2109 = vmatprep.subr.mxu0 0.0
    %2110 = vmatpush1.xpose.msra.mxu0 0.0
    %2111 = vmatprep.subr.mxu0 0.0
    %2112 = vmatpush1.xpose.msra.mxu0 0.0
    %2113 = vmatprep.subr.mxu0 0.0
    %2114 = vmatpush1.xpose.msra.mxu0 0.0
    %2115 = vmatprep.subr.mxu0 0.0
    %2116 = vmatpush1.xpose.msra.mxu0 0.0
    %2117 = vmatprep.subr.mxu0 0.0
    %2118 = vmatpush1.xpose.msra.mxu0 0.0
    %2119 = vmatprep.subr.mxu0 0.0
    %2120 = vmatpush1.xpose.msra.mxu0 0.0
    %2121 = vmatprep.subr.mxu0 0.0
    %2122 = vmatpush1.xpose.msra.mxu0 0.0
    %2123 = vmatprep.subr.mxu0 0.0
    %2124 = vmatpush1.xpose.msra.mxu0 0.0
    %2125 = vmatprep.subr.mxu0 0.0
    %2126 = vmatpush1.xpose.msra.mxu0 0.0
    %2127 = vmatprep.subr.mxu0 0.0
    %2128 = vmatpush1.xpose.msra.mxu0 0.0
    %2129 = vmatprep.subr.mxu0 0.0
    %2130 = vmatpush1.xpose.msra.mxu0 0.0
    %2131 = vmatprep.subr.mxu0 0.0
    %2132 = vmatpush1.xpose.msra.mxu0 0.0
    %2133 = vmatprep.subr.mxu0 0.0
    %2134 = vmatpush1.xpose.msra.mxu0 0.0
    %2135 = vmatprep.subr.mxu0 0.0
    %2136 = vmatpush1.xpose.msra.mxu0 0.0
    %2137 = vmatprep.subr.mxu0 0.0
    %2138 = vmatpush1.xpose.msra.mxu0 0.0
    %2139 = vmatprep.subr.mxu0 0.0
    %2140 = vmatpush1.xpose.msra.mxu0 0.0
    %2141 = vmatprep.subr.mxu0 0.0
    %2142 = vmatpush1.xpose.msra.mxu0 0.0
    %2143 = vmatprep.subr.mxu0 0.0
    %2144 = vmatpush1.xpose.msra.mxu0 0.0
    %2145 = vmatprep.subr.mxu0 0.0
    %2146 = vmatpush1.xpose.msra.mxu0 0.0
    %2147 = vmatprep.mubr.f32.mxu0 0.0
    %2148 = vmatmul.mubr.f32.gmra.mrb[0].mxu0 %v2075
    %v2149 = vpop.f32.mrb[0].mxu0
    %v2150 = vadd.f32 0.0, %v2149
    %v2151 = vpop.f32.mrb[0].mxu0
    %2152 = vmatprep.mubr.f32.mxu0 0.0
    %2153 = vmatmul.mubr.f32.gmra.mrb[0].mxu0 %v2077
    %v2154 = vpop.f32.mrb[0].mxu0
    %v2155 = vadd.f32 0.0, %v2154
    %v2156 = vpop.f32.mrb[0].mxu0
    %2157 = vdwg.mxu0
    %v2158 = vmul.f32 %v2150, 0.35355338
    %v2159 = vmul.f32 %v2155, 0.35355338
    %v2160 = vadd.f32 %v2158, %v30
    %v2161 = vadd.f32 %v2159, %v31
    %v2162 = vsel %vm222, %v2160, -inf
    %2163 = vmax.xlane.f32.xlu0 %v2162
    %v2164 = vpop.xlane.xlu0 %2163
    %v2165 = vsel %vm222, %v2161, -inf
    %2166 = vmax.xlane.f32.xlu0 %v2165
    %v2167 = vpop.xlane.xlu0 %2166
    %v2168 = vsub.f32 %v2160, %v2164
    %v2169 = vsub.f32 %v2161, %v2167
    %v2170 = vmul.f32 %v2168, 1.442695
    %v2171 = vpow.pop %v2170
    %v2172 = vmul.f32 %v2169, 1.442695
    %v2173 = vpow.pop %v2172
    %v2174 = vsel %vm222, %v2171, 0.0
    %2175 = vadd.xlane.f32.xlu0 %v2174
    %v2176 = vpop.xlane.xlu0 %2175
    %v2177 = vsel %vm222, %v2173, 0.0
    %2178 = vadd.xlane.f32.xlu0 %v2177
    %v2179 = vpop.xlane.xlu0 %2178
    %v2180 = vrcp.pop %v2176
    %v2181 = vmul.f32 %v2171, %v2180
    %v2182 = vrcp.pop %v2179
    %v2183 = vmul.f32 %v2173, %v2182
    %2184 = vrot.lane.b32.xlu0 %v1400, 80
    %v2185 = vpop.permute.xlu0 %2184
    %2186 = vrot.lane.b32.xlu0 %v1405, 80
    %v2187 = vpop.permute.xlu0 %2186
    %v2191 = vsel %vm222, %v2181, 0
    %v2194 = vsel %vm222, %v2183, 0
    %2196 = vmatprep.subr.mxu0 0.0
    %2197 = vmatpush1.msra.mxu0 %v2185
    %2198 = vmatprep.subr.mxu0 0.0
    %2199 = vmatpush1.msra.mxu0 %v2187
    %2200 = vmatprep.subr.mxu0 0.0
    %2201 = vmatpush1.msra.mxu0 0.0
    %2202 = vmatprep.subr.mxu0 0.0
    %2203 = vmatpush1.msra.mxu0 0.0
    %2204 = vmatprep.subr.mxu0 0.0
    %2205 = vmatpush1.msra.mxu0 0.0
    %2206 = vmatprep.subr.mxu0 0.0
    %2207 = vmatpush1.msra.mxu0 0.0
    %2208 = vmatprep.subr.mxu0 0.0
    %2209 = vmatpush1.msra.mxu0 0.0
    %2210 = vmatprep.subr.mxu0 0.0
    %2211 = vmatpush1.msra.mxu0 0.0
    %2212 = vmatprep.subr.mxu0 0.0
    %2213 = vmatpush1.msra.mxu0 0.0
    %2214 = vmatprep.subr.mxu0 0.0
    %2215 = vmatpush1.msra.mxu0 0.0
    %2216 = vmatprep.subr.mxu0 0.0
    %2217 = vmatpush1.msra.mxu0 0.0
    %2218 = vmatprep.subr.mxu0 0.0
    %2219 = vmatpush1.msra.mxu0 0.0
    %2220 = vmatprep.subr.mxu0 0.0
    %2221 = vmatpush1.msra.mxu0 0.0
    %2222 = vmatprep.subr.mxu0 0.0
    %2223 = vmatpush1.msra.mxu0 0.0
    %2224 = vmatprep.subr.mxu0 0.0
    %2225 = vmatpush1.msra.mxu0 0.0
    %2226 = vmatprep.subr.mxu0 0.0
    %2227 = vmatpush1.msra.mxu0 0.0
    %2228 = vmatprep.subr.mxu0 0.0
    %2229 = vmatpush1.msra.mxu0 0.0
    %2230 = vmatprep.subr.mxu0 0.0
    %2231 = vmatpush1.msra.mxu0 0.0
    %2232 = vmatprep.subr.mxu0 0.0
    %2233 = vmatpush1.msra.mxu0 0.0
    %2234 = vmatprep.subr.mxu0 0.0
    %2235 = vmatpush1.msra.mxu0 0.0
    %2236 = vmatprep.subr.mxu0 0.0
    %2237 = vmatpush1.msra.mxu0 0.0
    %2238 = vmatprep.subr.mxu0 0.0
    %2239 = vmatpush1.msra.mxu0 0.0
    %2240 = vmatprep.subr.mxu0 0.0
    %2241 = vmatpush1.msra.mxu0 0.0
    %2242 = vmatprep.subr.mxu0 0.0
    %2243 = vmatpush1.msra.mxu0 0.0
    %2244 = vmatprep.subr.mxu0 0.0
    %2245 = vmatpush1.msra.mxu0 0.0
    %2246 = vmatprep.subr.mxu0 0.0
    %2247 = vmatpush1.msra.mxu0 0.0
    %2248 = vmatprep.subr.mxu0 0.0
    %2249 = vmatpush1.msra.mxu0 0.0
    %2250 = vmatprep.subr.mxu0 0.0
    %2251 = vmatpush1.msra.mxu0 0.0
    %2252 = vmatprep.subr.mxu0 0.0
    %2253 = vmatpush1.msra.mxu0 0.0
    %2254 = vmatprep.subr.mxu0 0.0
    %2255 = vmatpush1.msra.mxu0 0.0
    %2256 = vmatprep.subr.mxu0 0.0
    %2257 = vmatpush1.msra.mxu0 0.0
    %2258 = vmatprep.subr.mxu0 0.0
    %2259 = vmatpush1.msra.mxu0 0.0
    %2260 = vmatprep.mubr.f32.mxu0 0.0
    %2261 = vmatmul.mubr.f32.gmra.mrb[0].mxu0 %v2191
    %v2262 = vpop.f32.mrb[0].mxu0
    %v2263 = vadd.f32 0.0, %v2262
    %v2264 = vpop.f32.mrb[0].mxu0
    %2265 = vmatprep.mubr.f32.mxu0 0.0
    %2266 = vmatmul.mubr.f32.gmra.mrb[0].mxu0 %v2194
    %v2267 = vpop.f32.mrb[0].mxu0
    %v2268 = vadd.f32 0.0, %v2267
    %v2269 = vpop.f32.mrb[0].mxu0
    %2270 = vdwg.mxu0
    %v2272 = vsel %vm134, %v2263, 0
    %v2275 = vsel %vm134, %v2268, 0
    %2277 = vmatprep.subr.mxu0 0.0
    %2278 = vmatpush1.msra.mxu0 %v1499
    %2279 = vmatprep.subr.mxu0 0.0
    %2280 = vmatpush1.msra.mxu0 0.0
    %2281 = vmatprep.subr.mxu0 0.0
    %2282 = vmatpush1.msra.mxu0 0.0
    %2283 = vmatprep.subr.mxu0 0.0
    %2284 = vmatpush1.msra.mxu0 0.0
    %2285 = vmatprep.subr.mxu0 0.0
    %2286 = vmatpush1.msra.mxu0 0.0
    %2287 = vmatprep.subr.mxu0 0.0
    %2288 = vmatpush1.msra.mxu0 0.0
    %2289 = vmatprep.subr.mxu0 0.0
    %2290 = vmatpush1.msra.mxu0 0.0
    %2291 = vmatprep.subr.mxu0 0.0
    %2292 = vmatpush1.msra.mxu0 0.0
    %2293 = vmatprep.subr.mxu0 0.0
    %2294 = vmatpush1.msra.mxu0 0.0
    %2295 = vmatprep.subr.mxu0 0.0
    %2296 = vmatpush1.msra.mxu0 0.0
    %2297 = vmatprep.subr.mxu0 0.0
    %2298 = vmatpush1.msra.mxu0 0.0
    %2299 = vmatprep.subr.mxu0 0.0
    %2300 = vmatpush1.msra.mxu0 0.0
    %2301 = vmatprep.subr.mxu0 0.0
    %2302 = vmatpush1.msra.mxu0 0.0
    %2303 = vmatprep.subr.mxu0 0.0
    %2304 = vmatpush1.msra.mxu0 0.0
    %2305 = vmatprep.subr.mxu0 0.0
    %2306 = vmatpush1.msra.mxu0 0.0
    %2307 = vmatprep.subr.mxu0 0.0
    %2308 = vmatpush1.msra.mxu0 0.0
    %2309 = vmatprep.subr.mxu0 0.0
    %2310 = vmatpush1.msra.mxu0 0.0
    %2311 = vmatprep.subr.mxu0 0.0
    %2312 = vmatpush1.msra.mxu0 0.0
    %2313 = vmatprep.subr.mxu0 0.0
    %2314 = vmatpush1.msra.mxu0 0.0
    %2315 = vmatprep.subr.mxu0 0.0
    %2316 = vmatpush1.msra.mxu0 0.0
    %2317 = vmatprep.subr.mxu0 0.0
    %2318 = vmatpush1.msra.mxu0 0.0
    %2319 = vmatprep.subr.mxu0 0.0
    %2320 = vmatpush1.msra.mxu0 0.0
    %2321 = vmatprep.subr.mxu0 0.0
    %2322 = vmatpush1.msra.mxu0 0.0
    %2323 = vmatprep.subr.mxu0 0.0
    %2324 = vmatpush1.msra.mxu0 0.0
    %2325 = vmatprep.subr.mxu0 0.0
    %2326 = vmatpush1.msra.mxu0 0.0
    %2327 = vmatprep.subr.mxu0 0.0
    %2328 = vmatpush1.msra.mxu0 0.0
    %2329 = vmatprep.subr.mxu0 0.0
    %2330 = vmatpush1.msra.mxu0 0.0
    %2331 = vmatprep.subr.mxu0 0.0
    %2332 = vmatpush1.msra.mxu0 0.0
    %2333 = vmatprep.subr.mxu0 0.0
    %2334 = vmatpush1.msra.mxu0 0.0
    %2335 = vmatprep.subr.mxu0 0.0
    %2336 = vmatpush1.msra.mxu0 0.0
    %2337 = vmatprep.subr.mxu0 0.0
    %2338 = vmatpush1.msra.mxu0 0.0
    %2339 = vmatprep.subr.mxu0 0.0
    %2340 = vmatpush1.msra.mxu0 0.0
    %2341 = vmatprep.mubr.f32.mxu0 0.0
    %2342 = vmatmul.mubr.f32.gmra.mrb[0].mxu0 %v2272
    %v2343 = vpop.f32.mrb[0].mxu0
    %v2344 = vadd.f32 0.0, %v2343
    %v2345 = vpop.f32.mrb[0].mxu0
    %2346 = vmatprep.mubr.f32.mxu0 0.0
    %2347 = vmatmul.mubr.f32.gmra.mrb[0].mxu0 %v2275
    %v2348 = vpop.f32.mrb[0].mxu0
    %v2349 = vadd.f32 0.0, %v2348
    %v2350 = vpop.f32.mrb[0].mxu0
    %2351 = vdwg.mxu0
    %v2352 = vadd.f32 %v2059, %v2344
    %v2353 = vadd.f32 %v2064, %v2349
    %2354 = vrot.lane.b32.xlu0 %v1489, 104
    %v2355 = vpop.permute.xlu0 %2354
    %2356 = vrot.lane.b32.xlu0 %v1494, 104
    %v2357 = vpop.permute.xlu0 %2356
    %2358 = vrot.lane.b32.xlu0 %v1400, 104
    %v2359 = vpop.permute.xlu0 %2358
    %2360 = vrot.lane.b32.xlu0 %v1405, 104
    %v2361 = vpop.permute.xlu0 %2360
    %v2362 = vsel %vm134, %v2355, 0
    %v2364 = vsel %vm134, %v2357, 0
    %v2366 = vsel %vm134, %v2359, 0
    %v2368 = vsel %vm134, %v2361, 0
    %2370 = vmatprep.subr.mxu0 0.0
    %2371 = vmatpush1.xpose.msra.mxu0 %v2366
    %2372 = vmatprep.subr.mxu0 0.0
    %2373 = vmatpush1.xpose.msra.mxu0 %v2368
    %2374 = vmatprep.subr.mxu0 0.0
    %2375 = vmatpush1.xpose.msra.mxu0 0.0
    %2376 = vmatprep.subr.mxu0 0.0
    %2377 = vmatpush1.xpose.msra.mxu0 0.0
    %2378 = vmatprep.subr.mxu0 0.0
    %2379 = vmatpush1.xpose.msra.mxu0 0.0
    %2380 = vmatprep.subr.mxu0 0.0
    %2381 = vmatpush1.xpose.msra.mxu0 0.0
    %2382 = vmatprep.subr.mxu0 0.0
    %2383 = vmatpush1.xpose.msra.mxu0 0.0
    %2384 = vmatprep.subr.mxu0 0.0
    %2385 = vmatpush1.xpose.msra.mxu0 0.0
    %2386 = vmatprep.subr.mxu0 0.0
    %2387 = vmatpush1.xpose.msra.mxu0 0.0
    %2388 = vmatprep.subr.mxu0 0.0
    %2389 = vmatpush1.xpose.msra.mxu0 0.0
    %2390 = vmatprep.subr.mxu0 0.0
    %2391 = vmatpush1.xpose.msra.mxu0 0.0
    %2392 = vmatprep.subr.mxu0 0.0
    %2393 = vmatpush1.xpose.msra.mxu0 0.0
    %2394 = vmatprep.subr.mxu0 0.0
    %2395 = vmatpush1.xpose.msra.mxu0 0.0
    %2396 = vmatprep.subr.mxu0 0.0
    %2397 = vmatpush1.xpose.msra.mxu0 0.0
    %2398 = vmatprep.subr.mxu0 0.0
    %2399 = vmatpush1.xpose.msra.mxu0 0.0
    %2400 = vmatprep.subr.mxu0 0.0
    %2401 = vmatpush1.xpose.msra.mxu0 0.0
    %2402 = vmatprep.subr.mxu0 0.0
    %2403 = vmatpush1.xpose.msra.mxu0 0.0
    %2404 = vmatprep.subr.mxu0 0.0
    %2405 = vmatpush1.xpose.msra.mxu0 0.0
    %2406 = vmatprep.subr.mxu0 0.0
    %2407 = vmatpush1.xpose.msra.mxu0 0.0
    %2408 = vmatprep.subr.mxu0 0.0
    %2409 = vmatpush1.xpose.msra.mxu0 0.0
    %2410 = vmatprep.subr.mxu0 0.0
    %2411 = vmatpush1.xpose.msra.mxu0 0.0
    %2412 = vmatprep.subr.mxu0 0.0
    %2413 = vmatpush1.xpose.msra.mxu0 0.0
    %2414 = vmatprep.subr.mxu0 0.0
    %2415 = vmatpush1.xpose.msra.mxu0 0.0
    %2416 = vmatprep.subr.mxu0 0.0
    %2417 = vmatpush1.xpose.msra.mxu0 0.0
    %2418 = vmatprep.subr.mxu0 0.0
    %2419 = vmatpush1.xpose.msra.mxu0 0.0
    %2420 = vmatprep.subr.mxu0 0.0
    %2421 = vmatpush1.xpose.msra.mxu0 0.0
    %2422 = vmatprep.subr.mxu0 0.0
    %2423 = vmatpush1.xpose.msra.mxu0 0.0
    %2424 = vmatprep.subr.mxu0 0.0
    %2425 = vmatpush1.xpose.msra.mxu0 0.0
    %2426 = vmatprep.subr.mxu0 0.0
    %2427 = vmatpush1.xpose.msra.mxu0 0.0
    %2428 = vmatprep.subr.mxu0 0.0
    %2429 = vmatpush1.xpose.msra.mxu0 0.0
    %2430 = vmatprep.subr.mxu0 0.0
    %2431 = vmatpush1.xpose.msra.mxu0 0.0
    %2432 = vmatprep.subr.mxu0 0.0
    %2433 = vmatpush1.xpose.msra.mxu0 0.0
    %2434 = vmatprep.mubr.f32.mxu0 0.0
    %2435 = vmatmul.mubr.f32.gmra.mrb[0].mxu0 %v2362
    %v2436 = vpop.f32.mrb[0].mxu0
    %v2437 = vadd.f32 0.0, %v2436
    %v2438 = vpop.f32.mrb[0].mxu0
    %2439 = vmatprep.mubr.f32.mxu0 0.0
    %2440 = vmatmul.mubr.f32.gmra.mrb[0].mxu0 %v2364
    %v2441 = vpop.f32.mrb[0].mxu0
    %v2442 = vadd.f32 0.0, %v2441
    %v2443 = vpop.f32.mrb[0].mxu0
    %2444 = vdwg.mxu0
    %v2445 = vmul.f32 %v2437, 0.35355338
    %v2446 = vmul.f32 %v2442, 0.35355338
    %v2447 = vadd.f32 %v2445, %v30
    %v2448 = vadd.f32 %v2446, %v31
    %v2449 = vsel %vm222, %v2447, -inf
    %2450 = vmax.xlane.f32.xlu0 %v2449
    %v2451 = vpop.xlane.xlu0 %2450
    %v2452 = vsel %vm222, %v2448, -inf
    %2453 = vmax.xlane.f32.xlu0 %v2452
    %v2454 = vpop.xlane.xlu0 %2453
    %v2455 = vsub.f32 %v2447, %v2451
    %v2456 = vsub.f32 %v2448, %v2454
    %v2457 = vmul.f32 %v2455, 1.442695
    %v2458 = vpow.pop %v2457
    %v2459 = vmul.f32 %v2456, 1.442695
    %v2460 = vpow.pop %v2459
    %v2461 = vsel %vm222, %v2458, 0.0
    %2462 = vadd.xlane.f32.xlu0 %v2461
    %v2463 = vpop.xlane.xlu0 %2462
    %v2464 = vsel %vm222, %v2460, 0.0
    %2465 = vadd.xlane.f32.xlu0 %v2464
    %v2466 = vpop.xlane.xlu0 %2465
    %v2467 = vrcp.pop %v2463
    %v2468 = vmul.f32 %v2458, %v2467
    %v2469 = vrcp.pop %v2466
    %v2470 = vmul.f32 %v2460, %v2469
    %2471 = vrot.lane.b32.xlu0 %v1400, 72
    %v2472 = vpop.permute.xlu0 %2471
    %2473 = vrot.lane.b32.xlu0 %v1405, 72
    %v2474 = vpop.permute.xlu0 %2473
    %v2478 = vsel %vm222, %v2468, 0
    %v2481 = vsel %vm222, %v2470, 0
    %2483 = vmatprep.subr.mxu0 0.0
    %2484 = vmatpush1.msra.mxu0 %v2472
    %2485 = vmatprep.subr.mxu0 0.0
    %2486 = vmatpush1.msra.mxu0 %v2474
    %2487 = vmatprep.subr.mxu0 0.0
    %2488 = vmatpush1.msra.mxu0 0.0
    %2489 = vmatprep.subr.mxu0 0.0
    %2490 = vmatpush1.msra.mxu0 0.0
    %2491 = vmatprep.subr.mxu0 0.0
    %2492 = vmatpush1.msra.mxu0 0.0
    %2493 = vmatprep.subr.mxu0 0.0
    %2494 = vmatpush1.msra.mxu0 0.0
    %2495 = vmatprep.subr.mxu0 0.0
    %2496 = vmatpush1.msra.mxu0 0.0
    %2497 = vmatprep.subr.mxu0 0.0
    %2498 = vmatpush1.msra.mxu0 0.0
    %2499 = vmatprep.subr.mxu0 0.0
    %2500 = vmatpush1.msra.mxu0 0.0
    %2501 = vmatprep.subr.mxu0 0.0
    %2502 = vmatpush1.msra.mxu0 0.0
    %2503 = vmatprep.subr.mxu0 0.0
    %2504 = vmatpush1.msra.mxu0 0.0
    %2505 = vmatprep.subr.mxu0 0.0
    %2506 = vmatpush1.msra.mxu0 0.0
    %2507 = vmatprep.subr.mxu0 0.0
    %2508 = vmatpush1.msra.mxu0 0.0
    %2509 = vmatprep.subr.mxu0 0.0
    %2510 = vmatpush1.msra.mxu0 0.0
    %2511 = vmatprep.subr.mxu0 0.0
    %2512 = vmatpush1.msra.mxu0 0.0
    %2513 = vmatprep.subr.mxu0 0.0
    %2514 = vmatpush1.msra.mxu0 0.0
    %2515 = vmatprep.subr.mxu0 0.0
    %2516 = vmatpush1.msra.mxu0 0.0
    %2517 = vmatprep.subr.mxu0 0.0
    %2518 = vmatpush1.msra.mxu0 0.0
    %2519 = vmatprep.subr.mxu0 0.0
    %2520 = vmatpush1.msra.mxu0 0.0
    %2521 = vmatprep.subr.mxu0 0.0
    %2522 = vmatpush1.msra.mxu0 0.0
    %2523 = vmatprep.subr.mxu0 0.0
    %2524 = vmatpush1.msra.mxu0 0.0
    %2525 = vmatprep.subr.mxu0 0.0
    %2526 = vmatpush1.msra.mxu0 0.0
    %2527 = vmatprep.subr.mxu0 0.0
    %2528 = vmatpush1.msra.mxu0 0.0
    %2529 = vmatprep.subr.mxu0 0.0
    %2530 = vmatpush1.msra.mxu0 0.0
    %2531 = vmatprep.subr.mxu0 0.0
    %2532 = vmatpush1.msra.mxu0 0.0
    %2533 = vmatprep.subr.mxu0 0.0
    %2534 = vmatpush1.msra.mxu0 0.0
    %2535 = vmatprep.subr.mxu0 0.0
    %2536 = vmatpush1.msra.mxu0 0.0
    %2537 = vmatprep.subr.mxu0 0.0
    %2538 = vmatpush1.msra.mxu0 0.0
    %2539 = vmatprep.subr.mxu0 0.0
    %2540 = vmatpush1.msra.mxu0 0.0
    %2541 = vmatprep.subr.mxu0 0.0
    %2542 = vmatpush1.msra.mxu0 0.0
    %2543 = vmatprep.subr.mxu0 0.0
    %2544 = vmatpush1.msra.mxu0 0.0
    %2545 = vmatprep.subr.mxu0 0.0
    %2546 = vmatpush1.msra.mxu0 0.0
    %2547 = vmatprep.mubr.f32.mxu0 0.0
    %2548 = vmatmul.mubr.f32.gmra.mrb[0].mxu0 %v2478
    %v2549 = vpop.f32.mrb[0].mxu0
    %v2550 = vadd.f32 0.0, %v2549
    %v2551 = vpop.f32.mrb[0].mxu0
    %2552 = vmatprep.mubr.f32.mxu0 0.0
    %2553 = vmatmul.mubr.f32.gmra.mrb[0].mxu0 %v2481
    %v2554 = vpop.f32.mrb[0].mxu0
    %v2555 = vadd.f32 0.0, %v2554
    %v2556 = vpop.f32.mrb[0].mxu0
    %2557 = vdwg.mxu0
    %v2559 = vsel %vm134, %v2550, 0
    %v2562 = vsel %vm134, %v2555, 0
    %2564 = vmatprep.subr.mxu0 0.0
    %2565 = vmatpush1.msra.mxu0 %v1500
    %2566 = vmatprep.subr.mxu0 0.0
    %2567 = vmatpush1.msra.mxu0 0.0
    %2568 = vmatprep.subr.mxu0 0.0
    %2569 = vmatpush1.msra.mxu0 0.0
    %2570 = vmatprep.subr.mxu0 0.0
    %2571 = vmatpush1.msra.mxu0 0.0
    %2572 = vmatprep.subr.mxu0 0.0
    %2573 = vmatpush1.msra.mxu0 0.0
    %2574 = vmatprep.subr.mxu0 0.0
    %2575 = vmatpush1.msra.mxu0 0.0
    %2576 = vmatprep.subr.mxu0 0.0
    %2577 = vmatpush1.msra.mxu0 0.0
    %2578 = vmatprep.subr.mxu0 0.0
    %2579 = vmatpush1.msra.mxu0 0.0
    %2580 = vmatprep.subr.mxu0 0.0
    %2581 = vmatpush1.msra.mxu0 0.0
    %2582 = vmatprep.subr.mxu0 0.0
    %2583 = vmatpush1.msra.mxu0 0.0
    %2584 = vmatprep.subr.mxu0 0.0
    %2585 = vmatpush1.msra.mxu0 0.0
    %2586 = vmatprep.subr.mxu0 0.0
    %2587 = vmatpush1.msra.mxu0 0.0
    %2588 = vmatprep.subr.mxu0 0.0
    %2589 = vmatpush1.msra.mxu0 0.0
    %2590 = vmatprep.subr.mxu0 0.0
    %2591 = vmatpush1.msra.mxu0 0.0
    %2592 = vmatprep.subr.mxu0 0.0
    %2593 = vmatpush1.msra.mxu0 0.0
    %2594 = vmatprep.subr.mxu0 0.0
    %2595 = vmatpush1.msra.mxu0 0.0
    %2596 = vmatprep.subr.mxu0 0.0
    %2597 = vmatpush1.msra.mxu0 0.0
    %2598 = vmatprep.subr.mxu0 0.0
    %2599 = vmatpush1.msra.mxu0 0.0
    %2600 = vmatprep.subr.mxu0 0.0
    %2601 = vmatpush1.msra.mxu0 0.0
    %2602 = vmatprep.subr.mxu0 0.0
    %2603 = vmatpush1.msra.mxu0 0.0
    %2604 = vmatprep.subr.mxu0 0.0
    %2605 = vmatpush1.msra.mxu0 0.0
    %2606 = vmatprep.subr.mxu0 0.0
    %2607 = vmatpush1.msra.mxu0 0.0
    %2608 = vmatprep.subr.mxu0 0.0
    %2609 = vmatpush1.msra.mxu0 0.0
    %2610 = vmatprep.subr.mxu0 0.0
    %2611 = vmatpush1.msra.mxu0 0.0
    %2612 = vmatprep.subr.mxu0 0.0
    %2613 = vmatpush1.msra.mxu0 0.0
    %2614 = vmatprep.subr.mxu0 0.0
    %2615 = vmatpush1.msra.mxu0 0.0
    %2616 = vmatprep.subr.mxu0 0.0
    %2617 = vmatpush1.msra.mxu0 0.0
    %2618 = vmatprep.subr.mxu0 0.0
    %2619 = vmatpush1.msra.mxu0 0.0
    %2620 = vmatprep.subr.mxu0 0.0
    %2621 = vmatpush1.msra.mxu0 0.0
    %2622 = vmatprep.subr.mxu0 0.0
    %2623 = vmatpush1.msra.mxu0 0.0
    %2624 = vmatprep.subr.mxu0 0.0
    %2625 = vmatpush1.msra.mxu0 0.0
    %2626 = vmatprep.subr.mxu0 0.0
    %2627 = vmatpush1.msra.mxu0 0.0
    %2628 = vmatprep.mubr.f32.mxu0 0.0
    %2629 = vmatmul.mubr.f32.gmra.mrb[0].mxu0 %v2559
    %v2630 = vpop.f32.mrb[0].mxu0
    %v2631 = vadd.f32 0.0, %v2630
    %v2632 = vpop.f32.mrb[0].mxu0
    %2633 = vmatprep.mubr.f32.mxu0 0.0
    %2634 = vmatmul.mubr.f32.gmra.mrb[0].mxu0 %v2562
    %v2635 = vpop.f32.mrb[0].mxu0
    %v2636 = vadd.f32 0.0, %v2635
    %v2637 = vpop.f32.mrb[0].mxu0
    %2638 = vdwg.mxu0
    %v2639 = vadd.f32 %v2352, %v2631
    %v2640 = vadd.f32 %v2353, %v2636
    %v2641 = vlaneseq
    %v2642 = vshrl.u32 %v2641, 7
    %v2643 = vsub.s32 4, %v2642
    %v2644 = vrot.slane %v32, %v2643
    %v2645 = vadd.f32 %v2639, %v2644
    %v2646 = vadd.f32 %v2640, %v2644
    %v2647 = vadd.f32 %v2645, %v1317
    %v2648 = vadd.f32 %v2646, %v1318
    %v2649 = vsel %vm42, %v2647, 0.0
    %2650 = vadd.xlane.f32.xlu0 %v2649
    %v2651 = vpop.xlane.xlu0 %2650
    %v2652 = vsel %vm42, %v2648, 0.0
    %2653 = vadd.xlane.f32.xlu0 %v2652
    %v2654 = vpop.xlane.xlu0 %2653
    %v2655 = vmul.f32 %v2651, %v1286
    %v2656 = vmul.f32 %v2654, %v1286
    %v2657 = vsub.f32 %v2647, %v2655
    %v2658 = vsub.f32 %v2648, %v2656
    %v2659 = vmul.f32 %v2657, %v2657
    %v2660 = vmul.f32 %v2658, %v2658
    %v2661 = vsel %vm42, %v2659, 0.0
    %2662 = vadd.xlane.f32.xlu0 %v2661
    %v2663 = vpop.xlane.xlu0 %2662
    %v2664 = vsel %vm42, %v2660, 0.0
    %2665 = vadd.xlane.f32.xlu0 %v2664
    %v2666 = vpop.xlane.xlu0 %2665
    %v2667 = vmul.f32 %v2663, %v1286
    %v2668 = vmul.f32 %v2666, %v1286
    %v2669 = vadd.f32 %v2667, 1e-05
    %v2670 = vadd.f32 %v2668, 1e-05
    %v2671 = vrsqrt.pop %v2669
    %v2672 = vrsqrt.pop %v2670
    %v2673 = vmul.f32 %v2657, %v2671
    %v2674 = vmul.f32 %v2658, %v2672
    %v2675 = vlaneseq
    %v2676 = vshrl.u32 %v2675, 7
    %v2677 = vsub.s32 1, %v2676
    %v2678 = vrot.slane %v33, %v2677
    %v2679 = vmul.f32 %v2678, %v2673
    %v2680 = vmul.f32 %v2678, %v2674
    %v2681 = vlaneseq
    %v2682 = vshrl.u32 %v2681, 7
    %v2683 = vsub.s32 2, %v2682
    %v2684 = vrot.slane %v33, %v2683
    %v2685 = vadd.f32 %v2679, %v2684
    %v2686 = vadd.f32 %v2680, %v2684
    %v2687 = vld [vmem:[%s4 + $0xa0] sm:$0xff]
    %v2688 = vld [vmem:[%s4 + $0xa8] sm:$0xff]
    %v2689 = vld [vmem:[%s4 + $0xb0] sm:$0xff]
    %v2690 = vld [vmem:[%s4 + $0xb8] sm:$0xff]
    %v2691 = vld [vmem:[%s4 + $0xc0] sm:$0xff]
    %v2692 = vld [vmem:[%s4 + $0xc8] sm:$0xff]
    %v2693 = vld [vmem:[%s4 + $0xd0] sm:$0xff]
    %v2694 = vld [vmem:[%s4 + $0xd8] sm:$0xff]
    %v2695 = vld [vmem:[%s4 + $0xe0] sm:$0xff]
    %v2696 = vld [vmem:[%s4 + $0xe8] sm:$0xff]
    %v2697 = vld [vmem:[%s4 + $0xf0] sm:$0xff]
    %v2698 = vld [vmem:[%s4 + $0xf8] sm:$0xff]
    %v2699 = vlaneseq
    %v2700 = vshrl.u32 %v2699, 7
    %v2701 = vsub.s32 5, %v2700
    %v2702 = vrot.slane %v32, %v2701
    %v2704 = vsel %vm42, %v2685, 0
    %v2707 = vsel %vm42, %v2686, 0
    %2709 = vmatprep.subr.mxu0 0.0
    %2710 = vmatpush1.msra.mxu0 %v2687
    %2711 = vmatprep.subr.mxu0 0.0
    %2712 = vmatpush1.msra.mxu0 %v2688
    %2713 = vmatprep.subr.mxu0 0.0
    %2714 = vmatpush1.msra.mxu0 %v2689
    %2715 = vmatprep.subr.mxu0 0.0
    %2716 = vmatpush1.msra.mxu0 %v2690
    %2717 = vmatprep.subr.mxu0 0.0
    %2718 = vmatpush1.msra.mxu0 0.0
    %2719 = vmatprep.subr.mxu0 0.0
    %2720 = vmatpush1.msra.mxu0 0.0
    %2721 = vmatprep.subr.mxu0 0.0
    %2722 = vmatpush1.msra.mxu0 0.0
    %2723 = vmatprep.subr.mxu0 0.0
    %2724 = vmatpush1.msra.mxu0 0.0
    %2725 = vmatprep.subr.mxu0 0.0
    %2726 = vmatpush1.msra.mxu0 0.0
    %2727 = vmatprep.subr.mxu0 0.0
    %2728 = vmatpush1.msra.mxu0 0.0
    %2729 = vmatprep.subr.mxu0 0.0
    %2730 = vmatpush1.msra.mxu0 0.0
    %2731 = vmatprep.subr.mxu0 0.0
    %2732 = vmatpush1.msra.mxu0 0.0
    %2733 = vmatprep.subr.mxu0 0.0
    %2734 = vmatpush1.msra.mxu0 0.0
    %2735 = vmatprep.subr.mxu0 0.0
    %2736 = vmatpush1.msra.mxu0 0.0
    %2737 = vmatprep.subr.mxu0 0.0
    %2738 = vmatpush1.msra.mxu0 0.0
    %2739 = vmatprep.subr.mxu0 0.0
    %2740 = vmatpush1.msra.mxu0 0.0
    %2741 = vmatprep.subr.mxu0 0.0
    %2742 = vmatpush1.msra.mxu0 0.0
    %2743 = vmatprep.subr.mxu0 0.0
    %2744 = vmatpush1.msra.mxu0 0.0
    %2745 = vmatprep.subr.mxu0 0.0
    %2746 = vmatpush1.msra.mxu0 0.0
    %2747 = vmatprep.subr.mxu0 0.0
    %2748 = vmatpush1.msra.mxu0 0.0
    %2749 = vmatprep.subr.mxu0 0.0
    %2750 = vmatpush1.msra.mxu0 0.0
    %2751 = vmatprep.subr.mxu0 0.0
    %2752 = vmatpush1.msra.mxu0 0.0
    %2753 = vmatprep.subr.mxu0 0.0
    %2754 = vmatpush1.msra.mxu0 0.0
    %2755 = vmatprep.subr.mxu0 0.0
    %2756 = vmatpush1.msra.mxu0 0.0
    %2757 = vmatprep.subr.mxu0 0.0
    %2758 = vmatpush1.msra.mxu0 0.0
    %2759 = vmatprep.subr.mxu0 0.0
    %2760 = vmatpush1.msra.mxu0 0.0
    %2761 = vmatprep.subr.mxu0 0.0
    %2762 = vmatpush1.msra.mxu0 0.0
    %2763 = vmatprep.subr.mxu0 0.0
    %2764 = vmatpush1.msra.mxu0 0.0
    %2765 = vmatprep.subr.mxu0 0.0
    %2766 = vmatpush1.msra.mxu0 0.0
    %2767 = vmatprep.subr.mxu0 0.0
    %2768 = vmatpush1.msra.mxu0 0.0
    %2769 = vmatprep.subr.mxu0 0.0
    %2770 = vmatpush1.msra.mxu0 0.0
    %2771 = vmatprep.subr.mxu0 0.0
    %2772 = vmatpush1.msra.mxu0 0.0
    %2773 = vmatprep.mubr.f32.mxu0 0.0
    %2774 = vmatmul.mubr.f32.gmra.mrb[0].mxu0 %v2704
    %v2775 = vpop.f32.mrb[0].mxu0
    %v2776 = vadd.f32 %v2702, %v2775
    %v2777 = vpop.f32.mrb[0].mxu0
    %2778 = vmatprep.mubr.f32.mxu0 0.0
    %2779 = vmatmul.mubr.f32.gmra.mrb[0].mxu0 %v2707
    %v2780 = vpop.f32.mrb[0].mxu0
    %v2781 = vadd.f32 %v2702, %v2780
    %v2782 = vpop.f32.mrb[0].mxu0
    %2783 = vdwg.mxu0
    %v2784 = vmax.f32 %v2776, 0.0
    %v2785 = vmax.f32 %v2781, 0.0
    %v2786 = vlaneseq
    %v2787 = vshrl.u32 %v2786, 7
    %v2788 = vsub.s32 6, %v2787
    %v2789 = vrot.slane %v32, %v2788
    %vm2790 = vcmask 523264
    %v2792 = vsel %vm2790, %v2784, 0
    %v2795 = vsel %vm2790, %v2785, 0
    %2797 = vmatprep.subr.mxu0 0.0
    %2798 = vmatpush1.msra.mxu0 %v2691
    %2799 = vmatprep.subr.mxu0 0.0
    %2800 = vmatpush1.msra.mxu0 %v2692
    %2801 = vmatprep.subr.mxu0 0.0
    %2802 = vmatpush1.msra.mxu0 %v2693
    %2803 = vmatprep.subr.mxu0 0.0
    %2804 = vmatpush1.msra.mxu0 %v2694
    %2805 = vmatprep.subr.mxu0 0.0
    %2806 = vmatpush1.msra.mxu0 %v2695
    %2807 = vmatprep.subr.mxu0 0.0
    %2808 = vmatpush1.msra.mxu0 %v2696
    %2809 = vmatprep.subr.mxu0 0.0
    %2810 = vmatpush1.msra.mxu0 %v2697
    %2811 = vmatprep.subr.mxu0 0.0
    %2812 = vmatpush1.msra.mxu0 %v2698
    %2813 = vmatprep.subr.mxu0 0.0
    %2814 = vmatpush1.msra.mxu0 0.0
    %2815 = vmatprep.subr.mxu0 0.0
    %2816 = vmatpush1.msra.mxu0 0.0
    %2817 = vmatprep.subr.mxu0 0.0
    %2818 = vmatpush1.msra.mxu0 0.0
    %2819 = vmatprep.subr.mxu0 0.0
    %2820 = vmatpush1.msra.mxu0 0.0
    %2821 = vmatprep.subr.mxu0 0.0
    %2822 = vmatpush1.msra.mxu0 0.0
    %2823 = vmatprep.subr.mxu0 0.0
    %2824 = vmatpush1.msra.mxu0 0.0
    %2825 = vmatprep.subr.mxu0 0.0
    %2826 = vmatpush1.msra.mxu0 0.0
    %2827 = vmatprep.subr.mxu0 0.0
    %2828 = vmatpush1.msra.mxu0 0.0
    %2829 = vmatprep.subr.mxu0 0.0
    %2830 = vmatpush1.msra.mxu0 0.0
    %2831 = vmatprep.subr.mxu0 0.0
    %2832 = vmatpush1.msra.mxu0 0.0
    %2833 = vmatprep.subr.mxu0 0.0
    %2834 = vmatpush1.msra.mxu0 0.0
    %2835 = vmatprep.subr.mxu0 0.0
    %2836 = vmatpush1.msra.mxu0 0.0
    %2837 = vmatprep.subr.mxu0 0.0
    %2838 = vmatpush1.msra.mxu0 0.0
    %2839 = vmatprep.subr.mxu0 0.0
    %2840 = vmatpush1.msra.mxu0 0.0
    %2841 = vmatprep.subr.mxu0 0.0
    %2842 = vmatpush1.msra.mxu0 0.0
    %2843 = vmatprep.subr.mxu0 0.0
    %2844 = vmatpush1.msra.mxu0 0.0
    %2845 = vmatprep.subr.mxu0 0.0
    %2846 = vmatpush1.msra.mxu0 0.0
    %2847 = vmatprep.subr.mxu0 0.0
    %2848 = vmatpush1.msra.mxu0 0.0
    %2849 = vmatprep.subr.mxu0 0.0
    %2850 = vmatpush1.msra.mxu0 0.0
    %2851 = vmatprep.subr.mxu0 0.0
    %2852 = vmatpush1.msra.mxu0 0.0
    %2853 = vmatprep.subr.mxu0 0.0
    %2854 = vmatpush1.msra.mxu0 0.0
    %2855 = vmatprep.subr.mxu0 0.0
    %2856 = vmatpush1.msra.mxu0 0.0
    %2857 = vmatprep.subr.mxu0 0.0
    %2858 = vmatpush1.msra.mxu0 0.0
    %2859 = vmatprep.subr.mxu0 0.0
    %2860 = vmatpush1.msra.mxu0 0.0
    %2861 = vmatprep.mubr.f32.mxu0 0.0
    %2862 = vmatmul.mubr.f32.gmra.mrb[0].mxu0 %v2792
    %v2863 = vpop.f32.mrb[0].mxu0
    %v2864 = vadd.f32 %v2789, %v2863
    %v2865 = vpop.f32.mrb[0].mxu0
    %2866 = vmatprep.mubr.f32.mxu0 0.0
    %2867 = vmatmul.mubr.f32.gmra.mrb[0].mxu0 %v2795
    %v2868 = vpop.f32.mrb[0].mxu0
    %v2869 = vadd.f32 %v2789, %v2868
    %v2870 = vpop.f32.mrb[0].mxu0
    %2871 = vdwg.mxu0
    %v2872 = vadd.f32 %v2864, %v2685
    %v2873 = vadd.f32 %v2869, %v2686
    %v2874 = vsel %vm42, %v2872, 0.0
    %2875 = vadd.xlane.f32.xlu0 %v2874
    %v2876 = vpop.xlane.xlu0 %2875
    %v2877 = vsel %vm42, %v2873, 0.0
    %2878 = vadd.xlane.f32.xlu0 %v2877
    %v2879 = vpop.xlane.xlu0 %2878
    %v2880 = vmul.f32 %v2876, %v1286
    %v2881 = vmul.f32 %v2879, %v1286
    %v2882 = vsub.f32 %v2872, %v2880
    %v2883 = vsub.f32 %v2873, %v2881
    %v2884 = vmul.f32 %v2882, %v2882
    %v2885 = vmul.f32 %v2883, %v2883
    %v2886 = vsel %vm42, %v2884, 0.0
    %2887 = vadd.xlane.f32.xlu0 %v2886
    %v2888 = vpop.xlane.xlu0 %2887
    %v2889 = vsel %vm42, %v2885, 0.0
    %2890 = vadd.xlane.f32.xlu0 %v2889
    %v2891 = vpop.xlane.xlu0 %2890
    %v2892 = vmul.f32 %v2888, %v1286
    %v2893 = vmul.f32 %v2891, %v1286
    %v2894 = vadd.f32 %v2892, 1e-05
    %v2895 = vadd.f32 %v2893, 1e-05
    %v2896 = vrsqrt.pop %v2894
    %v2897 = vrsqrt.pop %v2895
    %v2898 = vmul.f32 %v2882, %v2896
    %v2899 = vmul.f32 %v2883, %v2897
    %v2900 = vlaneseq
    %v2901 = vshrl.u32 %v2900, 7
    %v2902 = vsub.s32 3, %v2901
    %v2903 = vrot.slane %v33, %v2902
    %v2904 = vmul.f32 %v2903, %v2898
    %v2905 = vmul.f32 %v2903, %v2899
    %v2906 = vlaneseq
    %v2907 = vshrl.u32 %v2906, 7
    %v2908 = vsub.s32 4, %v2907
    %v2909 = vrot.slane %v33, %v2908
    %v2910 = vadd.f32 %v2904, %v2909
    %v2911 = vadd.f32 %v2905, %v2909
    %2912 = vst.msk [vmem:[#allocation2] sm:$0xff] %vm42, %v2910
    %2913 = vst.msk [vmem:[#allocation2 + $0x8] sm:$0xff] %vm42, %v2911
    // Predicated region
    $region26: #{tpu_custom_call.1} parent=1 // pred_check
      _
    $region27: #{tpu_custom_call.1} parent=1 // pred_check_branch
      %2915 = sbr.rel (0) target = $region29
    $region28: #{tpu_custom_call.1} parent=1 // pred_region
      %s2917 = ssub.s32 256, 256
      %2918 = vsyncadd [#allocation3], %s2917
      %s2919 = sshll.u32 [#allocation2], 4
      %s2920 = int_to_ptr.vmem [resolvable:$true] %s2919
      %2925 = dma.vmem_to_hbm [thread:$0]  %s2920, 256, %s6, [#allocation3], 128, 128, 8
    $region29: #{tpu_custom_call.1} parent=1 // pred_fallthru
      _
    // Predicated region
    $region30: #{tpu_custom_call.1} parent=1 // pred_check
      _
    $region31: #{tpu_custom_call.1} parent=1 // pred_check_branch
      %2927 = sbr.rel (0) target = $region33
    $region32: #{tpu_custom_call.1} parent=1 // pred_region
      %2928 = dma.done [#allocation3], 256
    $region33: #{tpu_custom_call.1} parent=1 // pred_fallthru
      _
    %2929 = vsyncpa [#allocation3], 1

</llo_original>
